<compile_context>
chip_gen: v7x
topology: tpu7x:2x2x1
jax: 0.10.0
libtpu: 0.0.40
codegen_flags: <defaults>
</compile_context>

<pallas_src>
import jax
import jax.numpy as jnp
from jax.experimental import pallas as pl
from jax.experimental.pallas import tpu as pltpu

FEAT = 2048  # resnet50.fc.in_features (feature dim after the backbone avgpool)


# ------------------------------ helper: tiling ------------------------------ #

def _pick_spatial_tile(hw, cap=512):
    """Largest multiple-of-8 divisor of hw up to `cap` (falls back to hw)."""
    for ts in (512, 256, 128, 64, 32, 16, 8):
        if ts <= cap and ts <= hw and hw % ts == 0:
            return ts
    return hw


# ----------------------- fused conv3x3 + ReLU + GAP ------------------------- #

def _conv_relu_pool(patches_nsk, conv_w_bf16, conv_b, hw):
    """patches: (N, HW, K) bf16; conv_w: (K, FEAT) bf16; conv_b: (1, FEAT) f32.

    Returns pooled features (N, FEAT) f32 == mean_over_HW(relu(patches @ W + b)).
    Grid is (batch, spatial-chunks); the pooled row accumulates in VMEM scratch,
    initialized on the first spatial step and normalized/stored on the last, so
    the (N*HW, FEAT) conv activation is never written to HBM.
    """
    n, s, k = patches_nsk.shape
    feat = conv_w_bf16.shape[1]
    ts = _pick_spatial_tile(s)
    inv_hw = 1.0 / float(hw)

    def kernel(p_ref, w_ref, b_ref, o_ref, acc_ref):
        si = pl.program_id(1)

        @pl.when(si == 0)
        def _init():
            acc_ref[...] = jnp.zeros_like(acc_ref)

        # (ts, K) bf16 @ (K, FEAT) bf16 -> (ts, FEAT) f32 on the MXU.
        x = jnp.dot(p_ref[0], w_ref[...], preferred_element_type=jnp.float32)
        x = jnp.maximum(x + b_ref[...], 0.0)
        acc_ref[...] += jnp.sum(x, axis=0, keepdims=True)

        @pl.when(si == pl.num_programs(1) - 1)
        def _finalize():
            o_ref[0] = acc_ref[...] * inv_hw

    pooled3 = pl.pallas_call(
        kernel,
        out_shape=jax.ShapeDtypeStruct((n, 1, feat), jnp.float32),
        grid_spec=pltpu.PrefetchScalarGridSpec(
            num_scalar_prefetch=0,
            grid=(n, s // ts),
            in_specs=[
                pl.BlockSpec((1, ts, k), lambda b, si: (b, si, 0)),
                pl.BlockSpec((k, feat), lambda b, si: (0, 0)),   # resident weights
                pl.BlockSpec((1, feat), lambda b, si: (0, 0)),   # resident bias
            ],
            out_specs=pl.BlockSpec((1, 1, feat), lambda b, si: (b, 0, 0)),
            scratch_shapes=[pltpu.VMEM((1, feat), jnp.float32)],
        ),
        compiler_params=pltpu.CompilerParams(
            dimension_semantics=("parallel", "arbitrary"),
            vmem_limit_bytes=64 * 1024 * 1024,
        ),
    )(patches_nsk, conv_w_bf16, conv_b)
    return pooled3[:, 0, :]


# --------------------------- embed Linear (lane-dense) ---------------------- #

def _linear(x, w, b):
    """x: (N, FEAT) f32; w: (FEAT, E) f32; b: (1, E) f32 -> (N, E) f32.

    Output is computed lane-dense: E is padded up to a multiple of 128 so the
    store is an unmasked full-lane vst; the wrapper slices back to E.
    """
    n, k = x.shape
    e = w.shape[1]
    e_pad = ((e + 127) // 128) * 128
    w_p = jnp.pad(w, ((0, 0), (0, e_pad - e))).astype(jnp.bfloat16)
    b_p = jnp.pad(b, ((0, 0), (0, e_pad - e)))

    def kernel(x_ref, w_ref, b_ref, o_ref):
        xb = x_ref[...].astype(jnp.bfloat16)
        o_ref[...] = (
            jnp.dot(xb, w_ref[...], preferred_element_type=jnp.float32)
            + b_ref[...]
        )

    out = pl.pallas_call(
        kernel,
        out_shape=jax.ShapeDtypeStruct((n, e_pad), jnp.float32),
        grid_spec=pltpu.PrefetchScalarGridSpec(
            num_scalar_prefetch=0,
            grid=(e_pad // 128,),
            in_specs=[
                pl.BlockSpec((n, k), lambda j: (0, 0)),
                pl.BlockSpec((k, 128), lambda j: (0, j)),
                pl.BlockSpec((1, 128), lambda j: (0, j)),
            ],
            out_specs=pl.BlockSpec((n, 128), lambda j: (0, j)),
        ),
        compiler_params=pltpu.CompilerParams(
            dimension_semantics=("parallel",)),
    )(x, w_p, b_p)
    return out[:, :e]


# ------------------------------ JAX wrapper --------------------------------- #

def _im2col_3x3(images_nchw):
    """3x3, stride 1, pad 1 patches. NCHW -> (N*H*W, C*9), channels-last glue."""
    n, c, h, w = images_nchw.shape
    x = jnp.pad(images_nchw, ((0, 0), (0, 0), (1, 1), (1, 1)))
    cols = []
    for di in range(3):
        for dj in range(3):
            cols.append(x[:, :, di:di + h, dj:dj + w])  # (N, C, H, W)
    patches = jnp.stack(cols, axis=2)                    # (N, C, 9, H, W)
    patches = jnp.transpose(patches, (0, 3, 4, 1, 2))    # (N, H, W, C, 9)
    return patches.reshape(n * h * w, c * 9)


def init_params(embed_size, in_channels=3, seed=0):
    key = jax.random.PRNGKey(seed)
    k1, k2, k3, k4 = jax.random.split(key, 4)
    return {
        # backbone stand-in: conv3x3 (in_channels -> FEAT), im2col layout (C*9, FEAT)
        "conv_w": 0.05 * jax.random.normal(k1, (in_channels * 9, FEAT), jnp.float32),
        "conv_b": 0.05 * jax.random.normal(k2, (1, FEAT), jnp.float32),
        # embed: Linear(FEAT, embed_size)
        "embed_w": 0.02 * jax.random.normal(k3, (FEAT, embed_size), jnp.float32),
        "embed_b": 0.02 * jax.random.normal(k4, (1, embed_size), jnp.float32),
    }


def encoder_cnn_forward(images_nchw, params):
    """images: (N, 3, H, W) float32  ->  features: (N, embed_size) float32."""
    n, c, h, w = images_nchw.shape
    hw = h * w
    patches = _im2col_3x3(images_nchw).astype(jnp.bfloat16)     # (N*HW, C*9) bf16
    patches = patches.reshape(n, hw, c * 9)                     # (N, HW, K)
    conv_w = params["conv_w"].astype(jnp.bfloat16)
    pooled = _conv_relu_pool(patches, conv_w, params["conv_b"], hw)   # (N, FEAT)
    features = _linear(pooled, params["embed_w"], params["embed_b"])  # (N, E)
    return features


def _reference_forward(images_nchw, params):
    """Pure-jnp reference of the same bf16-input pipeline (correctness check)."""
    n, c, h, w = images_nchw.shape
    patches = _im2col_3x3(images_nchw).astype(jnp.bfloat16).astype(jnp.float32)
    conv_w = params["conv_w"].astype(jnp.bfloat16).astype(jnp.float32)
    conv = jnp.maximum(patches @ conv_w + params["conv_b"], 0.0)
    pooled = conv.reshape(n, h * w, FEAT).mean(axis=1)
    x_bf = pooled.astype(jnp.bfloat16).astype(jnp.float32)
    w_bf = params["embed_w"].astype(jnp.bfloat16).astype(jnp.float32)
    return x_bf @ w_bf + params["embed_b"]


if __name__ == "__main__":
    embed_size = 64
    batch, channels, spatial = 2, 3, 16

    key = jax.random.PRNGKey(0)
    images = jax.random.normal(key, (batch, channels, spatial, spatial), jnp.float32)
    params = init_params(embed_size, in_channels=channels, seed=0)

    out = encoder_cnn_forward(images, params)
    out = jax.block_until_ready(out)

    ref = _reference_forward(images, params)
    assert out.shape == (batch, embed_size), out.shape
    assert jnp.allclose(out, ref, atol=2e-2, rtol=2e-2), "mismatch vs reference"

    print("KERNEL_OK")
</pallas_src>

<mosaic_0001>
module attributes {stable_mosaic.version = 11 : i64} {
  func.func @kernel(%arg0: i32, %arg1: i32, %arg2: memref<1x256x27xbf16, #tpu.memory_space<vmem>>, %arg3: memref<27x2048xbf16, #tpu.memory_space<vmem>>, %arg4: memref<1x2048xf32, #tpu.memory_space<vmem>>, %arg5: memref<1x1x2048xf32, #tpu.memory_space<vmem>>, %arg6: memref<1x2048xf32, #tpu.memory_space<vmem>>) attributes {dimension_semantics = [#tpu.dimension_semantics<parallel>, #tpu.dimension_semantics<arbitrary>], iteration_bounds = array<i64: 2, 1>, scalar_prefetch = 0 : i64, scratch_operands = 1 : i64, tpu.core_type = #tpu.core_type<tc>, window_params = [{transform_indices = @transform_0, window_bounds = array<i64: 1, 256, 27>}, {pipeline_mode = #tpu.pipeline_mode<synchronous>, transform_indices = @transform_1, window_bounds = array<i64: 27, 2048>}, {pipeline_mode = #tpu.pipeline_mode<synchronous>, transform_indices = @transform_2, window_bounds = array<i64: 1, 2048>}, {transform_indices = @transform_3, window_bounds = array<i64: 1, 1, 2048>}]} {
    %c0_i32 = arith.constant 0 : i32
    %0 = arith.cmpi eq, %arg1, %c0_i32 : i32
    %1 = arith.extui %0 : i1 to i32
    %c0_i32_0 = arith.constant 0 : i32
    %2 = arith.cmpi ne, %1, %c0_i32_0 : i32
    scf.if %2 {
      %cst_15 = arith.constant 0.000000e+00 : f32
      %20 = vector.broadcast %cst_15 : f32 to vector<1x2048xf32>
      %c0_16 = arith.constant 0 : index
      %c0_17 = arith.constant 0 : index
      %21 = vector.load %arg6[%c0_16, %c0_17] : memref<1x2048xf32, #tpu.memory_space<vmem>>, vector<1x2048xf32>
      tpu.vector_store %arg6[%c0_16, %c0_17], %20 {strides = array<i32>} : memref<1x2048xf32, #tpu.memory_space<vmem>>, vector<1x2048xf32>,
    } else {
    }
    %c0 = arith.constant 0 : index
    %c0_1 = arith.constant 0 : index
    %c0_2 = arith.constant 0 : index
    %3 = vector.load %arg2[%c0, %c0_1, %c0_2] : memref<1x256x27xbf16, #tpu.memory_space<vmem>>, vector<1x256x27xbf16>
    %4 = vector.shape_cast %3 : vector<1x256x27xbf16> to vector<256x27xbf16>
    %c0_3 = arith.constant 0 : index
    %c0_4 = arith.constant 0 : index
    %5 = vector.load %arg3[%c0_3, %c0_4] : memref<27x2048xbf16, #tpu.memory_space<vmem>>, vector<27x2048xbf16>
    %cst = arith.constant dense<0.000000e+00> : vector<256x2048xf32>
    %6 = tpu.matmul %4, %5, %cst {dimension_numbers = #tpu.dot_dimension_numbers<[1], [0], [0], [1], [0, 0, 1, 1], [], []>} : vector<256x27xbf16>, vector<27x2048xbf16>, vector<256x2048xf32> -> vector<256x2048xf32>
    %c0_5 = arith.constant 0 : index
    %c0_6 = arith.constant 0 : index
    %7 = vector.load %arg4[%c0_5, %c0_6] : memref<1x2048xf32, #tpu.memory_space<vmem>>, vector<1x2048xf32>
    %8 = vector.broadcast %7 : vector<1x2048xf32> to vector<256x2048xf32>
    %9 = arith.addf %6, %8 : vector<256x2048xf32>
    %cst_7 = arith.constant 0.000000e+00 : f32
    %10 = vector.broadcast %cst_7 : f32 to vector<256x2048xf32>
    %11 = arith.maximumf %9, %10 : vector<256x2048xf32>
    %c0_8 = arith.constant 0 : index
    %c0_9 = arith.constant 0 : index
    %12 = vector.load %arg6[%c0_8, %c0_9] : memref<1x2048xf32, #tpu.memory_space<vmem>>, vector<1x2048xf32>
    %cst_10 = arith.constant dense<0.000000e+00> : vector<2048xf32>
    %13 = vector.multi_reduction <add>, %11, %cst_10 [0] : vector<256x2048xf32> to vector<2048xf32>
    %14 = vector.shape_cast %13 : vector<2048xf32> to vector<1x2048xf32>
    %15 = arith.addf %12, %14 : vector<1x2048xf32>
    %c0_11 = arith.constant 0 : index
    %c0_12 = arith.constant 0 : index
    %16 = vector.load %arg6[%c0_11, %c0_12] : memref<1x2048xf32, #tpu.memory_space<vmem>>, vector<1x2048xf32>
    tpu.vector_store %arg6[%c0_11, %c0_12], %15 {strides = array<i32>} : memref<1x2048xf32, #tpu.memory_space<vmem>>, vector<1x2048xf32>,
    %c0_i32_13 = arith.constant 0 : i32
    %17 = arith.cmpi eq, %arg1, %c0_i32_13 : i32
    %18 = arith.extui %17 : i1 to i32
    %c0_i32_14 = arith.constant 0 : i32
    %19 = arith.cmpi ne, %18, %c0_i32_14 : i32
    scf.if %19 {
      %c0_15 = arith.constant 0 : index
      %c0_16 = arith.constant 0 : index
      %20 = vector.load %arg6[%c0_15, %c0_16] : memref<1x2048xf32, #tpu.memory_space<vmem>>, vector<1x2048xf32>
      %cst_17 = arith.constant 3.906250e-03 : f32
      %21 = vector.broadcast %cst_17 : f32 to vector<1x2048xf32>
      %22 = arith.mulf %20, %21 : vector<1x2048xf32>
      %c0_18 = arith.constant 0 : index
      %c0_19 = arith.constant 0 : index
      %c0_20 = arith.constant 0 : index
      %23 = vector.load %arg5[%c0_18, %c0_19, %c0_20] : memref<1x1x2048xf32, #tpu.memory_space<vmem>>, vector<1x1x2048xf32>
      %24 = vector.shape_cast %23 : vector<1x1x2048xf32> to vector<1x2048xf32>
      %25 = vector.shape_cast %22 : vector<1x2048xf32> to vector<1x1x2048xf32>
      tpu.vector_store %arg5[%c0_18, %c0_19, %c0_20], %25 {strides = array<i32>} : memref<1x1x2048xf32, #tpu.memory_space<vmem>>, vector<1x1x2048xf32>,
    } else {
    }
    return
  }
  func.func @transform_0(%arg0: i32, %arg1: i32) -> (i32, i32, i32) {
    %c0_i32 = arith.constant 0 : i32
    %c0_i32_0 = arith.constant 0 : i32
    return %arg0, %arg1, %c0_i32 : i32, i32, i32
  }
  func.func @transform_1(%arg0: i32, %arg1: i32) -> (i32, i32) {
    %c0_i32 = arith.constant 0 : i32
    %c0_i32_0 = arith.constant 0 : i32
    %c0_i32_1 = arith.constant 0 : i32
    return %c0_i32, %c0_i32_0 : i32, i32
  }
  func.func @transform_2(%arg0: i32, %arg1: i32) -> (i32, i32) {
    %c0_i32 = arith.constant 0 : i32
    %c0_i32_0 = arith.constant 0 : i32
    %c0_i32_1 = arith.constant 0 : i32
    return %c0_i32, %c0_i32_0 : i32, i32
  }
  func.func @transform_3(%arg0: i32, %arg1: i32) -> (i32, i32, i32) {
    %c0_i32 = arith.constant 0 : i32
    %c0_i32_0 = arith.constant 0 : i32
    %c0_i32_1 = arith.constant 0 : i32
    return %arg0, %c0_i32, %c0_i32_0 : i32, i32, i32
  }
}

</mosaic_0001>

<llo_original>
// kernel: tpu_custom_call.1
$region0: #{tpu_custom_call.1}
  #allocation0 [shape = 'u32[]', space=smem, size = 0x4, offset = 0x4, fixed_abs, tag = 'smem constant byte address 0x4 - core index']
  #allocation1 [shape = 'u32[144,128]{1,0:T(1,128)}', space=vmem, size = 0x12000, scoped, tag = 'internal scratch']
  #allocation2 [shape = 'f32[1,2048]{1,0:T(1,128)}', space=vmem, size = 0x2000, scoped, tag = 'scratch operand']
  %s0 = inlined_call_operand.hbm [shape: bf16[2,256,27], index: 0, kind: input, shape index: {}]
  %s1 = inlined_call_operand.hbm [shape: bf16[27,2048], index: 1, kind: input, shape index: {}]
  %s2 = inlined_call_operand.hbm [shape: f32[1,2048], index: 2, kind: input, shape index: {}]
  %s3 = inlined_call_operand.hbm [shape: f32[2,1,2048], index: 3, kind: output, shape index: {}]
  %s4 = sld [smem:[#allocation0]]
  $region65: #{tpu_custom_call.1} parent=0
    _
  %s6 = ssub.s32 1, %s4
  %s7 = scalar_select 0, %s6, %s4
  $region1: #{tpu_custom_call.1} parent=0
    #allocation3 [shape = 'u8[131072]{0}', space=vmem, size = 0x20000, scoped, tag = 'input window, operand 0']
    #allocation4 [shape = 's32[2]{0}', space=sflag, size = 0x8, scoped, tag = 'scoped memory for tpu_custom_call.1']
    #allocation5 [shape = 's32[2]{0}', space=sflag, size = 0x8, scoped, tag = 'scoped memory for tpu_custom_call.1']
    #allocation6 [shape = 'u8[131072]{0}', space=vmem, size = 0x20000, scoped, tag = 'input window, operand 1, single buffered']
    #allocation7 [shape = 's32[1]{0}', space=sflag, size = 0x4, scoped, tag = 'scoped memory for tpu_custom_call.1']
    #allocation8 [shape = 'u8[8192]{0}', space=vmem, size = 0x2000, scoped, tag = 'input window, operand 2, single buffered']
    #allocation9 [shape = 'u8[16384]{0}', space=vmem, size = 0x4000, scoped, tag = 'output window, operand 0']
    %8 = vsyncpa [#allocation4], 0
    %s9 = scalar_lea.sflag [#allocation4], 1
    %10 = vsyncpa %s9, 0
    %11 = vsyncpa [#allocation7], 0
    %12 = vsyncpa [#allocation5], 0
    %s13 = scalar_lea.sflag [#allocation5], 1
    %14 = vsyncpa %s13, 0
    loop: start=0, step=1, limit=4
    $region2: #{tpu_custom_call.1} parent=1 // loop_pre_header
      _
    $region3: #{tpu_custom_call.1} parent=1 // loop_header
      %s16 = sphi 0, %s20
      %p17 = scmp.ge.s32.totalorder %s16, 4
      %s23 = sphi 0, %s35
      %s24 = sphi 0, %s31
      %s25 = sphi 0, %s23
      %s26 = sphi 0, %s24
      %s27 = sphi 0, %s25
      %s28 = sphi 0, %s26
      %s40 = sphi 0, %s42
      %s43 = sphi 0, %s40
      %s44 = sphi 0, %s43
      %s60 = sphi 0, %s44
      %s64 = sphi 0, %s64
      %s66 = sphi 0, %s64
      %s67 = sphi 0, %s66
      %s81 = sphi 0, %s67
      %s85 = sphi 0, %s85
      %s87 = sphi 0, %s85
      %s88 = sphi 0, %s87
      %s102 = sphi 0, %s88
      %s108 = sphi 0, %s110
      %s111 = sphi 0, %s108
      %s112 = sphi 0, %s111
      %s128 = sphi 0, %s112
    $region4: #{tpu_custom_call.1} parent=1 // loop_header_branch
      %19 = sbr.rel (%p17) target = $region8
    $region5: #{tpu_custom_call.1} parent=1 // loop_body
      %s21 = ssub.s32 %s16, 1
      %s22 = ssub.s32 %s16, 2
      %s29 = sadd.s32 1, %s24
      %p30 = scmp.ge.s32.totalorder %s29, 1
      %s31 = scalar_select %p30, 0, %s29
      %s32 = sadd.s32 1, %s23
      %s33 = scalar_select %p30, %s32, %s23
      %p34 = scmp.ge.s32.totalorder %s33, 2
      %s35 = scalar_select %p34, 0, %s33
      %s36 = ssub.s32 %s23, %s35
      %s37 = ssub.s32 %s24, %s31
      %s38 = sor.u32 %s36, %s37
      %p39 = scmp.eq.s32.totalorder %s38, 0
      %s41 = sadd.s32 %s40, 1
      %s42 = scalar_select %p39, %s40, %s41
      %p45 = pneg %p39
      %p46 = scmp.eq.s32.totalorder %s16, 1
      %p47 = por %p45, %p46
      %p48 = scmp.ne.s32.totalorder %s40, %s43
      %p49 = scmp.eq.s32.totalorder %s16, 0
      %p50 = por %p48, %p49
      %p51 = scmp.ne.s32.totalorder %s40, %s43
      %p52 = scmp.eq.s32.totalorder %s21, 1
      %p53 = por %p51, %p52
      %p54 = scmp.ne.s32.totalorder %s43, %s44
      %p55 = scmp.eq.s32.totalorder %s21, 0
      %p56 = por %p54, %p55
      %p57 = scmp.ne.s32.totalorder %s43, %s44
      %p58 = scmp.eq.s32.totalorder %s22, 1
      %p59 = por %p57, %p58
      %p61 = scmp.ne.s32.totalorder %s44, %s60
      %p62 = scmp.eq.s32.totalorder %s22, 0
      %p63 = por %p61, %p62
      %s65 = sadd.s32 %s64, 1
      %p68 = scmp.eq.s32.totalorder %s16, 1
      %p69 = scmp.ne.s32.totalorder %s64, %s66
      %p70 = scmp.eq.s32.totalorder %s16, 0
      %p71 = por %p69, %p70
      %p72 = scmp.ne.s32.totalorder %s64, %s66
      %p73 = scmp.eq.s32.totalorder %s21, 1
      %p74 = por %p72, %p73
      %p75 = scmp.ne.s32.totalorder %s66, %s67
      %p76 = scmp.eq.s32.totalorder %s21, 0
      %p77 = por %p75, %p76
      %p78 = scmp.ne.s32.totalorder %s66, %s67
      %p79 = scmp.eq.s32.totalorder %s22, 1
      %p80 = por %p78, %p79
      %p82 = scmp.ne.s32.totalorder %s67, %s81
      %p83 = scmp.eq.s32.totalorder %s22, 0
      %p84 = por %p82, %p83
      %s86 = sadd.s32 %s85, 1
      %p89 = scmp.eq.s32.totalorder %s16, 1
      %p90 = scmp.ne.s32.totalorder %s85, %s87
      %p91 = scmp.eq.s32.totalorder %s16, 0
      %p92 = por %p90, %p91
      %p93 = scmp.ne.s32.totalorder %s85, %s87
      %p94 = scmp.eq.s32.totalorder %s21, 1
      %p95 = por %p93, %p94
      %p96 = scmp.ne.s32.totalorder %s87, %s88
      %p97 = scmp.eq.s32.totalorder %s21, 0
      %p98 = por %p96, %p97
      %p99 = scmp.ne.s32.totalorder %s87, %s88
      %p100 = scmp.eq.s32.totalorder %s22, 1
      %p101 = por %p99, %p100
      %p103 = scmp.ne.s32.totalorder %s88, %s102
      %p104 = scmp.eq.s32.totalorder %s22, 0
      %p105 = por %p103, %p104
      %s106 = ssub.s32 %s23, %s35
      %p107 = scmp.eq.s32.totalorder %s106, 0
      %s109 = sadd.s32 %s108, 1
      %s110 = scalar_select %p107, %s108, %s109
      %p113 = pneg %p107
      %p114 = scmp.eq.s32.totalorder %s16, 1
      %p115 = por %p113, %p114
      %p116 = scmp.ne.s32.totalorder %s108, %s111
      %p117 = scmp.eq.s32.totalorder %s16, 0
      %p118 = por %p116, %p117
      %p119 = scmp.ne.s32.totalorder %s108, %s111
      %p120 = scmp.eq.s32.totalorder %s21, 1
      %p121 = por %p119, %p120
      %p122 = scmp.ne.s32.totalorder %s111, %s112
      %p123 = scmp.eq.s32.totalorder %s21, 0
      %p124 = por %p122, %p123
      %p125 = scmp.ne.s32.totalorder %s111, %s112
      %p126 = scmp.eq.s32.totalorder %s22, 1
      %p127 = por %p125, %p126
      %p129 = scmp.ne.s32.totalorder %s112, %s128
      %p130 = scmp.eq.s32.totalorder %s22, 0
      %p131 = por %p129, %p130
      %p132 = scmp.le.s32.totalorder 1, %s16
      %p133 = scmp.lt.s32.totalorder %s16, 3
      %p134 = pnand %p132, %p133
      %p135 = pneg %p134
      // Predicated region
      $region9: #{tpu_custom_call.1} parent=5 // pred_check
        _
      $region10: #{tpu_custom_call.1} parent=5 // pred_check_branch
        %137 = sbr.rel (%p134) target = $region12
      $region11: #{tpu_custom_call.1} parent=5 // pred_region
        %s138 = ssub.s32 %s16, 1
        // Predicated region
        $region13: #{tpu_custom_call.1} parent=11 // pred_check
          %p139 = pneg %p77
        $region14: #{tpu_custom_call.1} parent=11 // pred_check_branch
          %141 = sbr.rel (%p139) target = $region16
        $region15: #{tpu_custom_call.1} parent=11 // pred_region
          %s143 = ssub.s32 4096, 4096
          %144 = vsyncadd [#allocation7], %s143
          %s145 = sshll.u32 [#allocation6], 4
          %s146 = int_to_ptr.vmem [resolvable:$true] %s145
          %151 = dma.hbm_to_vmem [thread:$0]  %s1, 4096, %s146, [#allocation7], 1024, 1024, 64
        $region16: #{tpu_custom_call.1} parent=11 // pred_fallthru
          _
        // Predicated region
        $region17: #{tpu_custom_call.1} parent=11 // pred_check
          %p152 = pneg %p98
        $region18: #{tpu_custom_call.1} parent=11 // pred_check_branch
          %154 = sbr.rel (%p152) target = $region20
        $region19: #{tpu_custom_call.1} parent=11 // pred_region
          %s156 = ssub.s32 256, 256
          %157 = vsyncadd [#allocation7], %s156
          %s159 = sshll.u32 [#allocation8], 4
          %s160 = int_to_ptr.vmem [resolvable:$true] %s159
          %162 = dma.hbm_to_vmem [thread:$0]  %s2, 256, %s160, [#allocation7]
        $region20: #{tpu_custom_call.1} parent=11 // pred_fallthru
          _
      $region12: #{tpu_custom_call.1} parent=5 // pred_fallthru
        _
      %p163 = scmp.lt.s32.totalorder %s16, 2
      // Predicated region
      $region21: #{tpu_custom_call.1} parent=5 // pred_check
        %p164 = pneg %p163
      $region22: #{tpu_custom_call.1} parent=5 // pred_check_branch
        %166 = sbr.rel (%p164) target = $region24
      $region23: #{tpu_custom_call.1} parent=5 // pred_region
        // Predicated region
        $region25: #{tpu_custom_call.1} parent=23 // pred_check
          %p167 = pneg %p50
        $region26: #{tpu_custom_call.1} parent=23 // pred_check_branch
          %169 = sbr.rel (%p167) target = $region28
        $region27: #{tpu_custom_call.1} parent=23 // pred_region
          %s170 = sand.u32 %s40, 1
          %s171 = scalar_lea.sflag [#allocation4], %s170
          %s172 = sand.u32 %s40, 1
          %s173 = smul.addr %s172, 128
          %s174 = scalar_lea.vmem [#allocation3], %s173
          %s175 = smul.u32 32, %s24
          %s177 = ssub.s32 2048, 2048
          %178 = vsyncadd %s171, %s177
          %s179 = smul.addr %s23, 32
          %s180 = sadd.s32 %s175, %s179
          %s181 = smul.addr %s180, 64
          %s182 = scalar_lea.hbm %s0, %s181
          %s183 = sshll.u32 %s174, 4
          %s184 = int_to_ptr.vmem [resolvable:$true] %s183
          %189 = dma.hbm_to_vmem [thread:$0]  %s182, 2048, %s184, %s171, 64, 64, 4
        $region28: #{tpu_custom_call.1} parent=23 // pred_fallthru
          _
      $region24: #{tpu_custom_call.1} parent=5 // pred_fallthru
        _
      %p190 = scmp.le.s32.totalorder 1, %s16
      %p191 = scmp.lt.s32.totalorder %s16, 3
      %p192 = pnand %p190, %p191
      %p193 = pneg %p192
      // Predicated region
      $region29: #{tpu_custom_call.1} parent=5 // pred_check
        _
      $region30: #{tpu_custom_call.1} parent=5 // pred_check_branch
        %195 = sbr.rel (%p192) target = $region32
      $region31: #{tpu_custom_call.1} parent=5 // pred_region
        %s196 = ssub.s32 %s16, 1
        %s197 = sand.u32 %s43, 1
        %s198 = scalar_lea.sflag [#allocation4], %s197
        %s199 = sand.u32 %s43, 1
        %s200 = smul.addr %s199, 128
        %s201 = scalar_lea.vmem [#allocation3], %s200
        // Predicated region
        $region33: #{tpu_custom_call.1} parent=31 // pred_check
          %p202 = pneg %p56
        $region34: #{tpu_custom_call.1} parent=31 // pred_check_branch
          %204 = sbr.rel (%p202) target = $region36
        $region35: #{tpu_custom_call.1} parent=31 // pred_region
          %205 = dma.done %s198, 2048
        $region36: #{tpu_custom_call.1} parent=31 // pred_fallthru
          _
        // Predicated region
        $region37: #{tpu_custom_call.1} parent=31 // pred_check
          %p206 = pneg %p77
        $region38: #{tpu_custom_call.1} parent=31 // pred_check_branch
          %208 = sbr.rel (%p206) target = $region40
        $region39: #{tpu_custom_call.1} parent=31 // pred_region
          %209 = dma.done [#allocation7], 4096
        $region40: #{tpu_custom_call.1} parent=31 // pred_fallthru
          _
        // Predicated region
        $region41: #{tpu_custom_call.1} parent=31 // pred_check
          %p210 = pneg %p98
        $region42: #{tpu_custom_call.1} parent=31 // pred_check_branch
          %212 = sbr.rel (%p210) target = $region44
        $region43: #{tpu_custom_call.1} parent=31 // pred_region
          %213 = dma.done [#allocation7], 256
        $region44: #{tpu_custom_call.1} parent=31 // pred_fallthru
          _
        %s214 = sand.u32 %s43, 1
        %s215 = scalar_lea.sflag [#allocation4], %s214
        %s216 = sand.u32 %s43, 1
        %s217 = smul.addr %s216, 128
        %s218 = scalar_lea.vmem [#allocation3], %s217
        %p219 = pneg %p56
        %p220 = pneg %p53
        %p221 = pneg %p77
        %p222 = pneg %p74
        %p223 = pneg %p98
        %p224 = pneg %p95
        %p225 = pneg %p124
        %p226 = pneg %p121
        %s227 = sand.u32 %s111, 1
        %s228 = scalar_lea.sflag [#allocation5], %s227
        %s229 = sand.u32 %s111, 1
        %s230 = smul.addr %s229, 16
        %s231 = scalar_lea.vmem [#allocation9], %s230
        %s232 = smul.u32 32, %s26
        %p234 = scmp.eq.s32.totalorder %s26, 0
        // Predicated region
        $region45: #{tpu_custom_call.1} parent=31 // pred_check
          %p235 = pneg %p234
        $region46: #{tpu_custom_call.1} parent=31 // pred_check_branch
          %237 = sbr.rel (%p235) target = $region48
        $region47: #{tpu_custom_call.1} parent=31 // pred_region
          %238 = vst [vmem:[#allocation2] sm:$0xff] 0.0
          %239 = vst [vmem:[#allocation2 + $0x8] sm:$0xff] 0.0
        $region48: #{tpu_custom_call.1} parent=31 // pred_fallthru
          _
        %v240 = vld [vmem:[%s201] sm:$0xf]
        %v241 = vld [vmem:[%s201 + $0x4] sm:$0xf]
        %v242 = vld [vmem:[%s201 + $0x8] sm:$0xf]
        %v243 = vld [vmem:[%s201 + $0xc] sm:$0xf]
        %v244 = vld [vmem:[%s201 + $0x10] sm:$0xf]
        %v245 = vld [vmem:[%s201 + $0x14] sm:$0xf]
        %v246 = vld [vmem:[%s201 + $0x18] sm:$0xf]
        %v247 = vld [vmem:[%s201 + $0x1c] sm:$0xf]
        %v248 = vld [vmem:[%s201 + $0x20] sm:$0xf]
        %v249 = vld [vmem:[%s201 + $0x24] sm:$0xf]
        %v250 = vld [vmem:[%s201 + $0x28] sm:$0xf]
        %v251 = vld [vmem:[%s201 + $0x2c] sm:$0xf]
        %v252 = vld [vmem:[%s201 + $0x30] sm:$0xf]
        %v253 = vld [vmem:[%s201 + $0x34] sm:$0xf]
        %v254 = vld [vmem:[%s201 + $0x38] sm:$0xf]
        %v255 = vld [vmem:[%s201 + $0x3c] sm:$0xf]
        %v256 = vld [vmem:[%s201 + $0x40] sm:$0xf]
        %v257 = vld [vmem:[%s201 + $0x44] sm:$0xf]
        %v258 = vld [vmem:[%s201 + $0x48] sm:$0xf]
        %v259 = vld [vmem:[%s201 + $0x4c] sm:$0xf]
        %v260 = vld [vmem:[%s201 + $0x50] sm:$0xf]
        %v261 = vld [vmem:[%s201 + $0x54] sm:$0xf]
        %v262 = vld [vmem:[%s201 + $0x58] sm:$0xf]
        %v263 = vld [vmem:[%s201 + $0x5c] sm:$0xf]
        %v264 = vld [vmem:[%s201 + $0x60] sm:$0xf]
        %v265 = vld [vmem:[%s201 + $0x64] sm:$0xf]
        %v266 = vld [vmem:[%s201 + $0x68] sm:$0xf]
        %v267 = vld [vmem:[%s201 + $0x6c] sm:$0xf]
        %v268 = vld [vmem:[%s201 + $0x70] sm:$0xf]
        %v269 = vld [vmem:[%s201 + $0x74] sm:$0xf]
        %v270 = vld [vmem:[%s201 + $0x78] sm:$0xf]
        %v271 = vld [vmem:[%s201 + $0x7c] sm:$0xf]
        %v272 = vld [vmem:[#allocation6] sm:$0xff]
        %v273 = vld [vmem:[#allocation6 + $0x8] sm:$0xff]
        %v274 = vld [vmem:[#allocation6 + $0x10] sm:$0xff]
        %v275 = vld [vmem:[#allocation6 + $0x18] sm:$0xff]
        %v276 = vld [vmem:[#allocation6 + $0x20] sm:$0xff]
        %v277 = vld [vmem:[#allocation6 + $0x28] sm:$0xff]
        %v278 = vld [vmem:[#allocation6 + $0x30] sm:$0xff]
        %v279 = vld [vmem:[#allocation6 + $0x38] sm:$0xff]
        %v280 = vld [vmem:[#allocation6 + $0x40] sm:$0xff]
        %v281 = vld [vmem:[#allocation6 + $0x48] sm:$0xff]
        %v282 = vld [vmem:[#allocation6 + $0x50] sm:$0xff]
        %v283 = vld [vmem:[#allocation6 + $0x58] sm:$0xff]
        %v284 = vld [vmem:[#allocation6 + $0x60] sm:$0xff]
        %v285 = vld [vmem:[#allocation6 + $0x68] sm:$0xff]
        %v286 = vld [vmem:[#allocation6 + $0x70] sm:$0xff]
        %v287 = vld [vmem:[#allocation6 + $0x78] sm:$0xff]
        %v288 = vld [vmem:[#allocation6 + $0x80] sm:$0xff]
        %v289 = vld [vmem:[#allocation6 + $0x88] sm:$0xff]
        %v290 = vld [vmem:[#allocation6 + $0x90] sm:$0xff]
        %v291 = vld [vmem:[#allocation6 + $0x98] sm:$0xff]
        %v292 = vld [vmem:[#allocation6 + $0xa0] sm:$0xff]
        %v293 = vld [vmem:[#allocation6 + $0xa8] sm:$0xff]
        %v294 = vld [vmem:[#allocation6 + $0xb0] sm:$0xff]
        %v295 = vld [vmem:[#allocation6 + $0xb8] sm:$0xff]
        %v296 = vld [vmem:[#allocation6 + $0xc0] sm:$0x33]
        %v297 = vld [vmem:[#allocation6 + $0xc8] sm:$0x33]
        %v298 = vld [vmem:[#allocation6 + $0xd0] sm:$0x33]
        %v299 = vld [vmem:[#allocation6 + $0xd8] sm:$0x33]
        %v300 = vld [vmem:[#allocation6 + $0xe0] sm:$0x33]
        %v301 = vld [vmem:[#allocation6 + $0xe8] sm:$0x33]
        %v302 = vld [vmem:[#allocation6 + $0xf0] sm:$0x33]
        %v303 = vld [vmem:[#allocation6 + $0xf8] sm:$0x33]
        %v304 = vld [vmem:[#allocation8] sm:$0xff]
        %v305 = vld [vmem:[#allocation8 + $0x8] sm:$0xff]
        %v308 = vlaneseq
        %v309 = vshrl.u32 %v308, 7
        %v310 = vsub.s32 0, %v309
        %v311 = vrot.slane %v304, %v310
        %v312 = vlaneseq
        %v313 = vshrl.u32 %v312, 7
        %v314 = vsub.s32 1, %v313
        %v315 = vrot.slane %v304, %v314
        %v316 = vlaneseq
        %v317 = vshrl.u32 %v316, 7
        %v318 = vsub.s32 2, %v317
        %v319 = vrot.slane %v304, %v318
        %v320 = vlaneseq
        %v321 = vshrl.u32 %v320, 7
        %v322 = vsub.s32 3, %v321
        %v323 = vrot.slane %v304, %v322
        %v324 = vlaneseq
        %v325 = vshrl.u32 %v324, 7
        %v326 = vsub.s32 4, %v325
        %v327 = vrot.slane %v304, %v326
        %v328 = vlaneseq
        %v329 = vshrl.u32 %v328, 7
        %v330 = vsub.s32 5, %v329
        %v331 = vrot.slane %v304, %v330
        %v332 = vlaneseq
        %v333 = vshrl.u32 %v332, 7
        %v334 = vsub.s32 6, %v333
        %v335 = vrot.slane %v304, %v334
        %v336 = vlaneseq
        %v337 = vshrl.u32 %v336, 7
        %v338 = vsub.s32 7, %v337
        %v339 = vrot.slane %v304, %v338
        %v340 = vlaneseq
        %v341 = vshrl.u32 %v340, 7
        %v342 = vsub.s32 0, %v341
        %v343 = vrot.slane %v305, %v342
        %v344 = vlaneseq
        %v345 = vshrl.u32 %v344, 7
        %v346 = vsub.s32 1, %v345
        %v347 = vrot.slane %v305, %v346
        %v348 = vlaneseq
        %v349 = vshrl.u32 %v348, 7
        %v350 = vsub.s32 2, %v349
        %v351 = vrot.slane %v305, %v350
        %v352 = vlaneseq
        %v353 = vshrl.u32 %v352, 7
        %v354 = vsub.s32 3, %v353
        %v355 = vrot.slane %v305, %v354
        %v356 = vlaneseq
        %v357 = vshrl.u32 %v356, 7
        %v358 = vsub.s32 4, %v357
        %v359 = vrot.slane %v305, %v358
        %v360 = vlaneseq
        %v361 = vshrl.u32 %v360, 7
        %v362 = vsub.s32 5, %v361
        %v363 = vrot.slane %v305, %v362
        %v364 = vlaneseq
        %v365 = vshrl.u32 %v364, 7
        %v366 = vsub.s32 6, %v365
        %v367 = vrot.slane %v305, %v366
        %v368 = vlaneseq
        %v369 = vshrl.u32 %v368, 7
        %v370 = vsub.s32 7, %v369
        %v371 = vrot.slane %v305, %v370
        %v420 = vunpack.c.l.b16 %v240
        %v421 = vunpack.c.l.b16 %v241
        %v422 = vunpack.c.l.b16 %v242
        %v423 = vunpack.c.l.b16 %v243
        %v424 = vunpack.c.l.b16 %v244
        %v425 = vunpack.c.l.b16 %v245
        %v426 = vunpack.c.l.b16 %v246
        %v427 = vunpack.c.l.b16 %v247
        %v428 = vunpack.c.l.b16 %v248
        %v429 = vunpack.c.l.b16 %v249
        %v430 = vunpack.c.l.b16 %v250
        %v431 = vunpack.c.l.b16 %v251
        %v432 = vunpack.c.l.b16 %v252
        %v433 = vunpack.c.l.b16 %v253
        %v434 = vunpack.c.l.b16 %v254
        %v435 = vunpack.c.l.b16 %v255
        %v436 = vunpack.c.l.b16 %v256
        %v437 = vunpack.c.l.b16 %v257
        %v438 = vunpack.c.l.b16 %v258
        %v439 = vunpack.c.l.b16 %v259
        %v440 = vunpack.c.l.b16 %v260
        %v441 = vunpack.c.l.b16 %v261
        %v442 = vunpack.c.l.b16 %v262
        %v443 = vunpack.c.l.b16 %v263
        %v444 = vunpack.c.l.b16 %v264
        %v445 = vunpack.c.l.b16 %v265
        %v446 = vunpack.c.l.b16 %v266
        %v447 = vunpack.c.l.b16 %v267
        %v448 = vunpack.c.l.b16 %v268
        %v449 = vunpack.c.l.b16 %v269
        %v450 = vunpack.c.l.b16 %v270
        %v451 = vunpack.c.l.b16 %v271
        %v452 = vpack.c.b16 %v421, %v420
        %v453 = vpack.c.b16 %v423, %v422
        %v454 = vpack.c.b16 %v425, %v424
        %v455 = vpack.c.b16 %v427, %v426
        %v456 = vpack.c.b16 %v429, %v428
        %v457 = vpack.c.b16 %v431, %v430
        %v458 = vpack.c.b16 %v433, %v432
        %v459 = vpack.c.b16 %v435, %v434
        %v460 = vpack.c.b16 %v437, %v436
        %v461 = vpack.c.b16 %v439, %v438
        %v462 = vpack.c.b16 %v441, %v440
        %v463 = vpack.c.b16 %v443, %v442
        %v464 = vpack.c.b16 %v445, %v444
        %v465 = vpack.c.b16 %v447, %v446
        %v466 = vpack.c.b16 %v449, %v448
        %v467 = vpack.c.b16 %v451, %v450
        %v500 = vunpack.c.l.b16 %v272
        %v501 = vunpack.c.h.b16 %v272
        %v502 = vunpack.c.l.b16 %v273
        %v503 = vunpack.c.h.b16 %v273
        %v504 = vunpack.c.l.b16 %v274
        %v505 = vunpack.c.h.b16 %v274
        %v506 = vunpack.c.l.b16 %v275
        %v507 = vunpack.c.h.b16 %v275
        %v508 = vunpack.c.l.b16 %v276
        %v509 = vunpack.c.h.b16 %v276
        %v510 = vunpack.c.l.b16 %v277
        %v511 = vunpack.c.h.b16 %v277
        %v512 = vunpack.c.l.b16 %v278
        %v513 = vunpack.c.h.b16 %v278
        %v514 = vunpack.c.l.b16 %v279
        %v515 = vunpack.c.h.b16 %v279
        %v516 = vunpack.c.l.b16 %v280
        %v517 = vunpack.c.h.b16 %v280
        %v518 = vunpack.c.l.b16 %v281
        %v519 = vunpack.c.h.b16 %v281
        %v520 = vunpack.c.l.b16 %v282
        %v521 = vunpack.c.h.b16 %v282
        %v522 = vunpack.c.l.b16 %v283
        %v523 = vunpack.c.h.b16 %v283
        %v524 = vunpack.c.l.b16 %v284
        %v525 = vunpack.c.h.b16 %v284
        %v526 = vunpack.c.l.b16 %v285
        %v527 = vunpack.c.h.b16 %v285
        %v528 = vunpack.c.l.b16 %v286
        %v529 = vunpack.c.h.b16 %v286
        %v530 = vunpack.c.l.b16 %v287
        %v531 = vunpack.c.h.b16 %v287
        %v532 = vunpack.c.l.b16 %v288
        %v533 = vunpack.c.h.b16 %v288
        %v534 = vunpack.c.l.b16 %v289
        %v535 = vunpack.c.h.b16 %v289
        %v536 = vunpack.c.l.b16 %v290
        %v537 = vunpack.c.h.b16 %v290
        %v538 = vunpack.c.l.b16 %v291
        %v539 = vunpack.c.h.b16 %v291
        %v540 = vunpack.c.l.b16 %v292
        %v541 = vunpack.c.h.b16 %v292
        %v542 = vunpack.c.l.b16 %v293
        %v543 = vunpack.c.h.b16 %v293
        %v544 = vunpack.c.l.b16 %v294
        %v545 = vunpack.c.h.b16 %v294
        %v546 = vunpack.c.l.b16 %v295
        %v547 = vunpack.c.h.b16 %v295
        %v548 = vunpack.c.l.b16 %v296
        %v549 = vunpack.c.h.b16 %v296
        %v550 = vunpack.c.l.b16 %v297
        %v551 = vunpack.c.h.b16 %v297
        %v552 = vunpack.c.l.b16 %v298
        %v553 = vunpack.c.h.b16 %v298
        %v554 = vunpack.c.l.b16 %v299
        %v555 = vunpack.c.h.b16 %v299
        %v556 = vunpack.c.l.b16 %v300
        %v557 = vunpack.c.h.b16 %v300
        %v558 = vunpack.c.l.b16 %v301
        %v559 = vunpack.c.h.b16 %v301
        %v560 = vunpack.c.l.b16 %v302
        %v561 = vunpack.c.h.b16 %v302
        %v562 = vunpack.c.l.b16 %v303
        %v563 = vunpack.c.h.b16 %v303
        %v564 = vpack.c.b16 %v516, %v500
        %v565 = vpack.c.b16 %v517, %v501
        %v566 = vpack.c.b16 %v518, %v502
        %v567 = vpack.c.b16 %v519, %v503
        %v568 = vpack.c.b16 %v520, %v504
        %v569 = vpack.c.b16 %v521, %v505
        %v570 = vpack.c.b16 %v522, %v506
        %v571 = vpack.c.b16 %v523, %v507
        %v572 = vpack.c.b16 %v524, %v508
        %v573 = vpack.c.b16 %v525, %v509
        %v574 = vpack.c.b16 %v526, %v510
        %v575 = vpack.c.b16 %v527, %v511
        %v576 = vpack.c.b16 %v528, %v512
        %v577 = vpack.c.b16 %v529, %v513
        %v578 = vpack.c.b16 %v530, %v514
        %v579 = vpack.c.b16 %v531, %v515
        %v580 = vpack.c.b16 %v548, %v532
        %v581 = vpack.c.b16 %v549, %v533
        %v582 = vpack.c.b16 %v550, %v534
        %v583 = vpack.c.b16 %v551, %v535
        %v584 = vpack.c.b16 %v552, %v536
        %v585 = vpack.c.b16 %v553, %v537
        %v586 = vpack.c.b16 %v554, %v538
        %v587 = vpack.c.b16 %v555, %v539
        %v588 = vpack.c.b16 %v556, %v540
        %v589 = vpack.c.b16 %v557, %v541
        %v590 = vpack.c.b16 %v558, %v542
        %v591 = vpack.c.b16 %v559, %v543
        %v592 = vpack.c.b16 %v560, %v544
        %v593 = vpack.c.b16 %v561, %v545
        %v594 = vpack.c.b16 %v562, %v546
        %v595 = vpack.c.b16 %v563, %v547
        %vm612 = vcmask 220160
        %v614 = vsel %vm612, %v452, 0
        %v617 = vsel %vm612, %v453, 0
        %v620 = vsel %vm612, %v454, 0
        %v623 = vsel %vm612, %v455, 0
        %v626 = vsel %vm612, %v456, 0
        %v629 = vsel %vm612, %v457, 0
        %v632 = vsel %vm612, %v458, 0
        %v635 = vsel %vm612, %v459, 0
        %v638 = vsel %vm612, %v460, 0
        %v641 = vsel %vm612, %v461, 0
        %v644 = vsel %vm612, %v462, 0
        %v647 = vsel %vm612, %v463, 0
        %v650 = vsel %vm612, %v464, 0
        %v653 = vsel %vm612, %v465, 0
        %v656 = vsel %vm612, %v466, 0
        %v659 = vsel %vm612, %v467, 0
        %vm661 = vcmask 1044480
        %vm662 = vcmask 1045504
        %v663 = vsel %vm661, 4294967295, 65535
        %v664 = vsel %vm662, %v663, 0
        %v666 = vand.u32 %v580, %v664
        %v669 = vand.u32 %v581, %v664
        %v672 = vand.u32 %v582, %v664
        %v675 = vand.u32 %v583, %v664
        %v678 = vand.u32 %v584, %v664
        %v681 = vand.u32 %v585, %v664
        %v684 = vand.u32 %v586, %v664
        %v687 = vand.u32 %v587, %v664
        %v690 = vand.u32 %v588, %v664
        %v693 = vand.u32 %v589, %v664
        %v696 = vand.u32 %v590, %v664
        %v699 = vand.u32 %v591, %v664
        %v702 = vand.u32 %v592, %v664
        %v705 = vand.u32 %v593, %v664
        %v708 = vand.u32 %v594, %v664
        %v711 = vand.u32 %v595, %v664
        %713 = vmatprep.subr.bf16.mxu0 %v565
        %714 = vmatpush1.bf16.msra.mxu0 %v564
        %715 = vmatprep.subr.bf16.mxu0 %v669
        %716 = vmatpush1.bf16.msra.mxu0 %v666
        %717 = vmatprep.subr.bf16.mxu0 0
        %718 = vmatpush1.bf16.msra.mxu0 0
        %719 = vmatprep.subr.bf16.mxu0 0
        %720 = vmatpush1.bf16.msra.mxu0 0
        %721 = vmatprep.subr.bf16.mxu0 0
        %722 = vmatpush1.bf16.msra.mxu0 0
        %723 = vmatprep.subr.bf16.mxu0 0
        %724 = vmatpush1.bf16.msra.mxu0 0
        %725 = vmatprep.subr.bf16.mxu0 0
        %726 = vmatpush1.bf16.msra.mxu0 0
        %727 = vmatprep.subr.bf16.mxu0 0
        %728 = vmatpush1.bf16.msra.mxu0 0
        %729 = vmatprep.subr.bf16.mxu0 0
        %730 = vmatpush1.bf16.msra.mxu0 0
        %731 = vmatprep.subr.bf16.mxu0 0
        %732 = vmatpush1.bf16.msra.mxu0 0
        %733 = vmatprep.subr.bf16.mxu0 0
        %734 = vmatpush1.bf16.msra.mxu0 0
        %735 = vmatprep.subr.bf16.mxu0 0
        %736 = vmatpush1.bf16.msra.mxu0 0
        %737 = vmatprep.subr.bf16.mxu0 0
        %738 = vmatpush1.bf16.msra.mxu0 0
        %739 = vmatprep.subr.bf16.mxu0 0
        %740 = vmatpush1.bf16.msra.mxu0 0
        %741 = vmatprep.subr.bf16.mxu0 0
        %742 = vmatpush1.bf16.msra.mxu0 0
        %743 = vmatprep.subr.bf16.mxu0 0
        %744 = vmatpush1.bf16.msra.mxu0 0
        %745 = vmatprep.mubr.bf16.mxu0 0
        %746 = vmatmul.mubr.bf16.gmra.mrb[0].mxu0 %v614
        %v747 = vpop.f32.mrb[0].mxu0
        %v748 = vadd.f32 %v311, %v747
        %v749 = vpop.f32.mrb[0].mxu0
        %v750 = vadd.f32 %v315, %v749
        %v751 = vpop.f32.mrb[0].mxu0
        %v752 = vadd.f32 %v311, %v751
        %v753 = vpop.f32.mrb[0].mxu0
        %v754 = vadd.f32 %v315, %v753
        %755 = vmatprep.mubr.bf16.mxu0 0
        %756 = vmatmul.mubr.bf16.gmra.mrb[0].mxu0 %v617
        %v757 = vpop.f32.mrb[0].mxu0
        %v758 = vadd.f32 %v311, %v757
        %v759 = vpop.f32.mrb[0].mxu0
        %v760 = vadd.f32 %v315, %v759
        %v761 = vpop.f32.mrb[0].mxu0
        %v762 = vadd.f32 %v311, %v761
        %v763 = vpop.f32.mrb[0].mxu0
        %v764 = vadd.f32 %v315, %v763
        %765 = vmatprep.mubr.bf16.mxu0 0
        %766 = vmatmul.mubr.bf16.gmra.mrb[0].mxu0 %v620
        %v767 = vpop.f32.mrb[0].mxu0
        %v768 = vadd.f32 %v311, %v767
        %v769 = vpop.f32.mrb[0].mxu0
        %v770 = vadd.f32 %v315, %v769
        %v771 = vpop.f32.mrb[0].mxu0
        %v772 = vadd.f32 %v311, %v771
        %v773 = vpop.f32.mrb[0].mxu0
        %v774 = vadd.f32 %v315, %v773
        %775 = vmatprep.mubr.bf16.mxu0 0
        %776 = vmatmul.mubr.bf16.gmra.mrb[0].mxu0 %v623
        %v777 = vpop.f32.mrb[0].mxu0
        %v778 = vadd.f32 %v311, %v777
        %v779 = vpop.f32.mrb[0].mxu0
        %v780 = vadd.f32 %v315, %v779
        %v781 = vpop.f32.mrb[0].mxu0
        %v782 = vadd.f32 %v311, %v781
        %v783 = vpop.f32.mrb[0].mxu0
        %v784 = vadd.f32 %v315, %v783
        %785 = vmatprep.mubr.bf16.mxu0 0
        %786 = vmatmul.mubr.bf16.gmra.mrb[0].mxu0 %v626
        %v787 = vpop.f32.mrb[0].mxu0
        %v788 = vadd.f32 %v311, %v787
        %v789 = vpop.f32.mrb[0].mxu0
        %v790 = vadd.f32 %v315, %v789
        %v791 = vpop.f32.mrb[0].mxu0
        %v792 = vadd.f32 %v311, %v791
        %v793 = vpop.f32.mrb[0].mxu0
        %v794 = vadd.f32 %v315, %v793
        %795 = vmatprep.mubr.bf16.mxu0 0
        %796 = vmatmul.mubr.bf16.gmra.mrb[0].mxu0 %v629
        %v797 = vpop.f32.mrb[0].mxu0
        %v798 = vadd.f32 %v311, %v797
        %v799 = vpop.f32.mrb[0].mxu0
        %v800 = vadd.f32 %v315, %v799
        %v801 = vpop.f32.mrb[0].mxu0
        %v802 = vadd.f32 %v311, %v801
        %v803 = vpop.f32.mrb[0].mxu0
        %v804 = vadd.f32 %v315, %v803
        %805 = vmatprep.mubr.bf16.mxu0 0
        %806 = vmatmul.mubr.bf16.gmra.mrb[0].mxu0 %v632
        %v807 = vpop.f32.mrb[0].mxu0
        %v808 = vadd.f32 %v311, %v807
        %v809 = vpop.f32.mrb[0].mxu0
        %v810 = vadd.f32 %v315, %v809
        %v811 = vpop.f32.mrb[0].mxu0
        %v812 = vadd.f32 %v311, %v811
        %v813 = vpop.f32.mrb[0].mxu0
        %v814 = vadd.f32 %v315, %v813
        %815 = vmatprep.mubr.bf16.mxu0 0
        %816 = vmatmul.mubr.bf16.gmra.mrb[0].mxu0 %v635
        %v817 = vpop.f32.mrb[0].mxu0
        %v818 = vadd.f32 %v311, %v817
        %v819 = vpop.f32.mrb[0].mxu0
        %v820 = vadd.f32 %v315, %v819
        %v821 = vpop.f32.mrb[0].mxu0
        %v822 = vadd.f32 %v311, %v821
        %v823 = vpop.f32.mrb[0].mxu0
        %v824 = vadd.f32 %v315, %v823
        %825 = vmatprep.mubr.bf16.mxu0 0
        %826 = vmatmul.mubr.bf16.gmra.mrb[0].mxu0 %v638
        %v827 = vpop.f32.mrb[0].mxu0
        %v828 = vadd.f32 %v311, %v827
        %v829 = vpop.f32.mrb[0].mxu0
        %v830 = vadd.f32 %v315, %v829
        %v831 = vpop.f32.mrb[0].mxu0
        %v832 = vadd.f32 %v311, %v831
        %v833 = vpop.f32.mrb[0].mxu0
        %v834 = vadd.f32 %v315, %v833
        %835 = vmatprep.mubr.bf16.mxu0 0
        %836 = vmatmul.mubr.bf16.gmra.mrb[0].mxu0 %v641
        %v837 = vpop.f32.mrb[0].mxu0
        %v838 = vadd.f32 %v311, %v837
        %v839 = vpop.f32.mrb[0].mxu0
        %v840 = vadd.f32 %v315, %v839
        %v841 = vpop.f32.mrb[0].mxu0
        %v842 = vadd.f32 %v311, %v841
        %v843 = vpop.f32.mrb[0].mxu0
        %v844 = vadd.f32 %v315, %v843
        %845 = vmatprep.mubr.bf16.mxu0 0
        %846 = vmatmul.mubr.bf16.gmra.mrb[0].mxu0 %v644
        %v847 = vpop.f32.mrb[0].mxu0
        %v848 = vadd.f32 %v311, %v847
        %v849 = vpop.f32.mrb[0].mxu0
        %v850 = vadd.f32 %v315, %v849
        %v851 = vpop.f32.mrb[0].mxu0
        %v852 = vadd.f32 %v311, %v851
        %v853 = vpop.f32.mrb[0].mxu0
        %v854 = vadd.f32 %v315, %v853
        %855 = vmatprep.mubr.bf16.mxu0 0
        %856 = vmatmul.mubr.bf16.gmra.mrb[0].mxu0 %v647
        %v857 = vpop.f32.mrb[0].mxu0
        %v858 = vadd.f32 %v311, %v857
        %v859 = vpop.f32.mrb[0].mxu0
        %v860 = vadd.f32 %v315, %v859
        %v861 = vpop.f32.mrb[0].mxu0
        %v862 = vadd.f32 %v311, %v861
        %v863 = vpop.f32.mrb[0].mxu0
        %v864 = vadd.f32 %v315, %v863
        %865 = vmatprep.mubr.bf16.mxu0 0
        %866 = vmatmul.mubr.bf16.gmra.mrb[0].mxu0 %v650
        %v867 = vpop.f32.mrb[0].mxu0
        %v868 = vadd.f32 %v311, %v867
        %v869 = vpop.f32.mrb[0].mxu0
        %v870 = vadd.f32 %v315, %v869
        %v871 = vpop.f32.mrb[0].mxu0
        %v872 = vadd.f32 %v311, %v871
        %v873 = vpop.f32.mrb[0].mxu0
        %v874 = vadd.f32 %v315, %v873
        %875 = vmatprep.mubr.bf16.mxu0 0
        %876 = vmatmul.mubr.bf16.gmra.mrb[0].mxu0 %v653
        %v877 = vpop.f32.mrb[0].mxu0
        %v878 = vadd.f32 %v311, %v877
        %v879 = vpop.f32.mrb[0].mxu0
        %v880 = vadd.f32 %v315, %v879
        %v881 = vpop.f32.mrb[0].mxu0
        %v882 = vadd.f32 %v311, %v881
        %v883 = vpop.f32.mrb[0].mxu0
        %v884 = vadd.f32 %v315, %v883
        %885 = vmatprep.mubr.bf16.mxu0 0
        %886 = vmatmul.mubr.bf16.gmra.mrb[0].mxu0 %v656
        %v887 = vpop.f32.mrb[0].mxu0
        %v888 = vadd.f32 %v311, %v887
        %v889 = vpop.f32.mrb[0].mxu0
        %v890 = vadd.f32 %v315, %v889
        %v891 = vpop.f32.mrb[0].mxu0
        %v892 = vadd.f32 %v311, %v891
        %v893 = vpop.f32.mrb[0].mxu0
        %v894 = vadd.f32 %v315, %v893
        %895 = vmatprep.mubr.bf16.mxu0 0
        %896 = vmatmul.mubr.bf16.gmra.mrb[0].mxu0 %v659
        %v897 = vpop.f32.mrb[0].mxu0
        %v898 = vadd.f32 %v311, %v897
        %v899 = vpop.f32.mrb[0].mxu0
        %v900 = vadd.f32 %v315, %v899
        %v901 = vpop.f32.mrb[0].mxu0
        %v902 = vadd.f32 %v311, %v901
        %v903 = vpop.f32.mrb[0].mxu0
        %v904 = vadd.f32 %v315, %v903
        %905 = vdwg.mxu0
        %906 = vmatprep.subr.bf16.mxu0 %v567
        %907 = vmatpush1.bf16.msra.mxu0 %v566
        %908 = vmatprep.subr.bf16.mxu0 %v675
        %909 = vmatpush1.bf16.msra.mxu0 %v672
        %910 = vmatprep.subr.bf16.mxu0 0
        %911 = vmatpush1.bf16.msra.mxu0 0
        %912 = vmatprep.subr.bf16.mxu0 0
        %913 = vmatpush1.bf16.msra.mxu0 0
        %914 = vmatprep.subr.bf16.mxu0 0
        %915 = vmatpush1.bf16.msra.mxu0 0
        %916 = vmatprep.subr.bf16.mxu0 0
        %917 = vmatpush1.bf16.msra.mxu0 0
        %918 = vmatprep.subr.bf16.mxu0 0
        %919 = vmatpush1.bf16.msra.mxu0 0
        %920 = vmatprep.subr.bf16.mxu0 0
        %921 = vmatpush1.bf16.msra.mxu0 0
        %922 = vmatprep.subr.bf16.mxu0 0
        %923 = vmatpush1.bf16.msra.mxu0 0
        %924 = vmatprep.subr.bf16.mxu0 0
        %925 = vmatpush1.bf16.msra.mxu0 0
        %926 = vmatprep.subr.bf16.mxu0 0
        %927 = vmatpush1.bf16.msra.mxu0 0
        %928 = vmatprep.subr.bf16.mxu0 0
        %929 = vmatpush1.bf16.msra.mxu0 0
        %930 = vmatprep.subr.bf16.mxu0 0
        %931 = vmatpush1.bf16.msra.mxu0 0
        %932 = vmatprep.subr.bf16.mxu0 0
        %933 = vmatpush1.bf16.msra.mxu0 0
        %934 = vmatprep.subr.bf16.mxu0 0
        %935 = vmatpush1.bf16.msra.mxu0 0
        %936 = vmatprep.subr.bf16.mxu0 0
        %937 = vmatpush1.bf16.msra.mxu0 0
        %938 = vmatprep.mubr.bf16.mxu0 0
        %939 = vmatmul.mubr.bf16.gmra.mrb[0].mxu0 %v614
        %v940 = vpop.f32.mrb[0].mxu0
        %v941 = vadd.f32 %v319, %v940
        %v942 = vpop.f32.mrb[0].mxu0
        %v943 = vadd.f32 %v323, %v942
        %v944 = vpop.f32.mrb[0].mxu0
        %v945 = vadd.f32 %v319, %v944
        %v946 = vpop.f32.mrb[0].mxu0
        %v947 = vadd.f32 %v323, %v946
        %948 = vmatprep.mubr.bf16.mxu0 0
        %949 = vmatmul.mubr.bf16.gmra.mrb[0].mxu0 %v617
        %v950 = vpop.f32.mrb[0].mxu0
        %v951 = vadd.f32 %v319, %v950
        %v952 = vpop.f32.mrb[0].mxu0
        %v953 = vadd.f32 %v323, %v952
        %v954 = vpop.f32.mrb[0].mxu0
        %v955 = vadd.f32 %v319, %v954
        %v956 = vpop.f32.mrb[0].mxu0
        %v957 = vadd.f32 %v323, %v956
        %958 = vmatprep.mubr.bf16.mxu0 0
        %959 = vmatmul.mubr.bf16.gmra.mrb[0].mxu0 %v620
        %v960 = vpop.f32.mrb[0].mxu0
        %v961 = vadd.f32 %v319, %v960
        %v962 = vpop.f32.mrb[0].mxu0
        %v963 = vadd.f32 %v323, %v962
        %v964 = vpop.f32.mrb[0].mxu0
        %v965 = vadd.f32 %v319, %v964
        %v966 = vpop.f32.mrb[0].mxu0
        %v967 = vadd.f32 %v323, %v966
        %968 = vmatprep.mubr.bf16.mxu0 0
        %969 = vmatmul.mubr.bf16.gmra.mrb[0].mxu0 %v623
        %v970 = vpop.f32.mrb[0].mxu0
        %v971 = vadd.f32 %v319, %v970
        %v972 = vpop.f32.mrb[0].mxu0
        %v973 = vadd.f32 %v323, %v972
        %v974 = vpop.f32.mrb[0].mxu0
        %v975 = vadd.f32 %v319, %v974
        %v976 = vpop.f32.mrb[0].mxu0
        %v977 = vadd.f32 %v323, %v976
        %978 = vmatprep.mubr.bf16.mxu0 0
        %979 = vmatmul.mubr.bf16.gmra.mrb[0].mxu0 %v626
        %v980 = vpop.f32.mrb[0].mxu0
        %v981 = vadd.f32 %v319, %v980
        %v982 = vpop.f32.mrb[0].mxu0
        %v983 = vadd.f32 %v323, %v982
        %v984 = vpop.f32.mrb[0].mxu0
        %v985 = vadd.f32 %v319, %v984
        %v986 = vpop.f32.mrb[0].mxu0
        %v987 = vadd.f32 %v323, %v986
        %988 = vmatprep.mubr.bf16.mxu0 0
        %989 = vmatmul.mubr.bf16.gmra.mrb[0].mxu0 %v629
        %v990 = vpop.f32.mrb[0].mxu0
        %v991 = vadd.f32 %v319, %v990
        %v992 = vpop.f32.mrb[0].mxu0
        %v993 = vadd.f32 %v323, %v992
        %v994 = vpop.f32.mrb[0].mxu0
        %v995 = vadd.f32 %v319, %v994
        %v996 = vpop.f32.mrb[0].mxu0
        %v997 = vadd.f32 %v323, %v996
        %998 = vmatprep.mubr.bf16.mxu0 0
        %999 = vmatmul.mubr.bf16.gmra.mrb[0].mxu0 %v632
        %v1000 = vpop.f32.mrb[0].mxu0
        %v1001 = vadd.f32 %v319, %v1000
        %v1002 = vpop.f32.mrb[0].mxu0
        %v1003 = vadd.f32 %v323, %v1002
        %v1004 = vpop.f32.mrb[0].mxu0
        %v1005 = vadd.f32 %v319, %v1004
        %v1006 = vpop.f32.mrb[0].mxu0
        %v1007 = vadd.f32 %v323, %v1006
        %1008 = vmatprep.mubr.bf16.mxu0 0
        %1009 = vmatmul.mubr.bf16.gmra.mrb[0].mxu0 %v635
        %v1010 = vpop.f32.mrb[0].mxu0
        %v1011 = vadd.f32 %v319, %v1010
        %v1012 = vpop.f32.mrb[0].mxu0
        %v1013 = vadd.f32 %v323, %v1012
        %v1014 = vpop.f32.mrb[0].mxu0
        %v1015 = vadd.f32 %v319, %v1014
        %v1016 = vpop.f32.mrb[0].mxu0
        %v1017 = vadd.f32 %v323, %v1016
        %1018 = vmatprep.mubr.bf16.mxu0 0
        %1019 = vmatmul.mubr.bf16.gmra.mrb[0].mxu0 %v638
        %v1020 = vpop.f32.mrb[0].mxu0
        %v1021 = vadd.f32 %v319, %v1020
        %v1022 = vpop.f32.mrb[0].mxu0
        %v1023 = vadd.f32 %v323, %v1022
        %v1024 = vpop.f32.mrb[0].mxu0
        %v1025 = vadd.f32 %v319, %v1024
        %v1026 = vpop.f32.mrb[0].mxu0
        %v1027 = vadd.f32 %v323, %v1026
        %1028 = vmatprep.mubr.bf16.mxu0 0
        %1029 = vmatmul.mubr.bf16.gmra.mrb[0].mxu0 %v641
        %v1030 = vpop.f32.mrb[0].mxu0
        %v1031 = vadd.f32 %v319, %v1030
        %v1032 = vpop.f32.mrb[0].mxu0
        %v1033 = vadd.f32 %v323, %v1032
        %v1034 = vpop.f32.mrb[0].mxu0
        %v1035 = vadd.f32 %v319, %v1034
        %v1036 = vpop.f32.mrb[0].mxu0
        %v1037 = vadd.f32 %v323, %v1036
        %1038 = vmatprep.mubr.bf16.mxu0 0
        %1039 = vmatmul.mubr.bf16.gmra.mrb[0].mxu0 %v644
        %v1040 = vpop.f32.mrb[0].mxu0
        %v1041 = vadd.f32 %v319, %v1040
        %v1042 = vpop.f32.mrb[0].mxu0
        %v1043 = vadd.f32 %v323, %v1042
        %v1044 = vpop.f32.mrb[0].mxu0
        %v1045 = vadd.f32 %v319, %v1044
        %v1046 = vpop.f32.mrb[0].mxu0
        %v1047 = vadd.f32 %v323, %v1046
        %1048 = vmatprep.mubr.bf16.mxu0 0
        %1049 = vmatmul.mubr.bf16.gmra.mrb[0].mxu0 %v647
        %v1050 = vpop.f32.mrb[0].mxu0
        %v1051 = vadd.f32 %v319, %v1050
        %v1052 = vpop.f32.mrb[0].mxu0
        %v1053 = vadd.f32 %v323, %v1052
        %v1054 = vpop.f32.mrb[0].mxu0
        %v1055 = vadd.f32 %v319, %v1054
        %v1056 = vpop.f32.mrb[0].mxu0
        %v1057 = vadd.f32 %v323, %v1056
        %1058 = vmatprep.mubr.bf16.mxu0 0
        %1059 = vmatmul.mubr.bf16.gmra.mrb[0].mxu0 %v650
        %v1060 = vpop.f32.mrb[0].mxu0
        %v1061 = vadd.f32 %v319, %v1060
        %v1062 = vpop.f32.mrb[0].mxu0
        %v1063 = vadd.f32 %v323, %v1062
        %v1064 = vpop.f32.mrb[0].mxu0
        %v1065 = vadd.f32 %v319, %v1064
        %v1066 = vpop.f32.mrb[0].mxu0
        %v1067 = vadd.f32 %v323, %v1066
        %1068 = vmatprep.mubr.bf16.mxu0 0
        %1069 = vmatmul.mubr.bf16.gmra.mrb[0].mxu0 %v653
        %v1070 = vpop.f32.mrb[0].mxu0
        %v1071 = vadd.f32 %v319, %v1070
        %v1072 = vpop.f32.mrb[0].mxu0
        %v1073 = vadd.f32 %v323, %v1072
        %v1074 = vpop.f32.mrb[0].mxu0
        %v1075 = vadd.f32 %v319, %v1074
        %v1076 = vpop.f32.mrb[0].mxu0
        %v1077 = vadd.f32 %v323, %v1076
        %1078 = vmatprep.mubr.bf16.mxu0 0
        %1079 = vmatmul.mubr.bf16.gmra.mrb[0].mxu0 %v656
        %v1080 = vpop.f32.mrb[0].mxu0
        %v1081 = vadd.f32 %v319, %v1080
        %v1082 = vpop.f32.mrb[0].mxu0
        %v1083 = vadd.f32 %v323, %v1082
        %v1084 = vpop.f32.mrb[0].mxu0
        %v1085 = vadd.f32 %v319, %v1084
        %v1086 = vpop.f32.mrb[0].mxu0
        %v1087 = vadd.f32 %v323, %v1086
        %1088 = vmatprep.mubr.bf16.mxu0 0
        %1089 = vmatmul.mubr.bf16.gmra.mrb[0].mxu0 %v659
        %v1090 = vpop.f32.mrb[0].mxu0
        %v1091 = vadd.f32 %v319, %v1090
        %v1092 = vpop.f32.mrb[0].mxu0
        %v1093 = vadd.f32 %v323, %v1092
        %v1094 = vpop.f32.mrb[0].mxu0
        %v1095 = vadd.f32 %v319, %v1094
        %v1096 = vpop.f32.mrb[0].mxu0
        %v1097 = vadd.f32 %v323, %v1096
        %1098 = vdwg.mxu0
        %1099 = vmatprep.subr.bf16.mxu0 %v569
        %1100 = vmatpush1.bf16.msra.mxu0 %v568
        %1101 = vmatprep.subr.bf16.mxu0 %v681
        %1102 = vmatpush1.bf16.msra.mxu0 %v678
        %1103 = vmatprep.subr.bf16.mxu0 0
        %1104 = vmatpush1.bf16.msra.mxu0 0
        %1105 = vmatprep.subr.bf16.mxu0 0
        %1106 = vmatpush1.bf16.msra.mxu0 0
        %1107 = vmatprep.subr.bf16.mxu0 0
        %1108 = vmatpush1.bf16.msra.mxu0 0
        %1109 = vmatprep.subr.bf16.mxu0 0
        %1110 = vmatpush1.bf16.msra.mxu0 0
        %1111 = vmatprep.subr.bf16.mxu0 0
        %1112 = vmatpush1.bf16.msra.mxu0 0
        %1113 = vmatprep.subr.bf16.mxu0 0
        %1114 = vmatpush1.bf16.msra.mxu0 0
        %1115 = vmatprep.subr.bf16.mxu0 0
        %1116 = vmatpush1.bf16.msra.mxu0 0
        %1117 = vmatprep.subr.bf16.mxu0 0
        %1118 = vmatpush1.bf16.msra.mxu0 0
        %1119 = vmatprep.subr.bf16.mxu0 0
        %1120 = vmatpush1.bf16.msra.mxu0 0
        %1121 = vmatprep.subr.bf16.mxu0 0
        %1122 = vmatpush1.bf16.msra.mxu0 0
        %1123 = vmatprep.subr.bf16.mxu0 0
        %1124 = vmatpush1.bf16.msra.mxu0 0
        %1125 = vmatprep.subr.bf16.mxu0 0
        %1126 = vmatpush1.bf16.msra.mxu0 0
        %1127 = vmatprep.subr.bf16.mxu0 0
        %1128 = vmatpush1.bf16.msra.mxu0 0
        %1129 = vmatprep.subr.bf16.mxu0 0
        %1130 = vmatpush1.bf16.msra.mxu0 0
        %1131 = vmatprep.mubr.bf16.mxu0 0
        %1132 = vmatmul.mubr.bf16.gmra.mrb[0].mxu0 %v614
        %v1133 = vpop.f32.mrb[0].mxu0
        %v1134 = vadd.f32 %v327, %v1133
        %v1135 = vpop.f32.mrb[0].mxu0
        %v1136 = vadd.f32 %v331, %v1135
        %v1137 = vpop.f32.mrb[0].mxu0
        %v1138 = vadd.f32 %v327, %v1137
        %v1139 = vpop.f32.mrb[0].mxu0
        %v1140 = vadd.f32 %v331, %v1139
        %1141 = vmatprep.mubr.bf16.mxu0 0
        %1142 = vmatmul.mubr.bf16.gmra.mrb[0].mxu0 %v617
        %v1143 = vpop.f32.mrb[0].mxu0
        %v1144 = vadd.f32 %v327, %v1143
        %v1145 = vpop.f32.mrb[0].mxu0
        %v1146 = vadd.f32 %v331, %v1145
        %v1147 = vpop.f32.mrb[0].mxu0
        %v1148 = vadd.f32 %v327, %v1147
        %v1149 = vpop.f32.mrb[0].mxu0
        %v1150 = vadd.f32 %v331, %v1149
        %1151 = vmatprep.mubr.bf16.mxu0 0
        %1152 = vmatmul.mubr.bf16.gmra.mrb[0].mxu0 %v620
        %v1153 = vpop.f32.mrb[0].mxu0
        %v1154 = vadd.f32 %v327, %v1153
        %v1155 = vpop.f32.mrb[0].mxu0
        %v1156 = vadd.f32 %v331, %v1155
        %v1157 = vpop.f32.mrb[0].mxu0
        %v1158 = vadd.f32 %v327, %v1157
        %v1159 = vpop.f32.mrb[0].mxu0
        %v1160 = vadd.f32 %v331, %v1159
        %1161 = vmatprep.mubr.bf16.mxu0 0
        %1162 = vmatmul.mubr.bf16.gmra.mrb[0].mxu0 %v623
        %v1163 = vpop.f32.mrb[0].mxu0
        %v1164 = vadd.f32 %v327, %v1163
        %v1165 = vpop.f32.mrb[0].mxu0
        %v1166 = vadd.f32 %v331, %v1165
        %v1167 = vpop.f32.mrb[0].mxu0
        %v1168 = vadd.f32 %v327, %v1167
        %v1169 = vpop.f32.mrb[0].mxu0
        %v1170 = vadd.f32 %v331, %v1169
        %1171 = vmatprep.mubr.bf16.mxu0 0
        %1172 = vmatmul.mubr.bf16.gmra.mrb[0].mxu0 %v626
        %v1173 = vpop.f32.mrb[0].mxu0
        %v1174 = vadd.f32 %v327, %v1173
        %v1175 = vpop.f32.mrb[0].mxu0
        %v1176 = vadd.f32 %v331, %v1175
        %v1177 = vpop.f32.mrb[0].mxu0
        %v1178 = vadd.f32 %v327, %v1177
        %v1179 = vpop.f32.mrb[0].mxu0
        %v1180 = vadd.f32 %v331, %v1179
        %1181 = vmatprep.mubr.bf16.mxu0 0
        %1182 = vmatmul.mubr.bf16.gmra.mrb[0].mxu0 %v629
        %v1183 = vpop.f32.mrb[0].mxu0
        %v1184 = vadd.f32 %v327, %v1183
        %v1185 = vpop.f32.mrb[0].mxu0
        %v1186 = vadd.f32 %v331, %v1185
        %v1187 = vpop.f32.mrb[0].mxu0
        %v1188 = vadd.f32 %v327, %v1187
        %v1189 = vpop.f32.mrb[0].mxu0
        %v1190 = vadd.f32 %v331, %v1189
        %1191 = vmatprep.mubr.bf16.mxu0 0
        %1192 = vmatmul.mubr.bf16.gmra.mrb[0].mxu0 %v632
        %v1193 = vpop.f32.mrb[0].mxu0
        %v1194 = vadd.f32 %v327, %v1193
        %v1195 = vpop.f32.mrb[0].mxu0
        %v1196 = vadd.f32 %v331, %v1195
        %v1197 = vpop.f32.mrb[0].mxu0
        %v1198 = vadd.f32 %v327, %v1197
        %v1199 = vpop.f32.mrb[0].mxu0
        %v1200 = vadd.f32 %v331, %v1199
        %1201 = vmatprep.mubr.bf16.mxu0 0
        %1202 = vmatmul.mubr.bf16.gmra.mrb[0].mxu0 %v635
        %v1203 = vpop.f32.mrb[0].mxu0
        %v1204 = vadd.f32 %v327, %v1203
        %v1205 = vpop.f32.mrb[0].mxu0
        %v1206 = vadd.f32 %v331, %v1205
        %v1207 = vpop.f32.mrb[0].mxu0
        %v1208 = vadd.f32 %v327, %v1207
        %v1209 = vpop.f32.mrb[0].mxu0
        %v1210 = vadd.f32 %v331, %v1209
        %1211 = vmatprep.mubr.bf16.mxu0 0
        %1212 = vmatmul.mubr.bf16.gmra.mrb[0].mxu0 %v638
        %v1213 = vpop.f32.mrb[0].mxu0
        %v1214 = vadd.f32 %v327, %v1213
        %v1215 = vpop.f32.mrb[0].mxu0
        %v1216 = vadd.f32 %v331, %v1215
        %v1217 = vpop.f32.mrb[0].mxu0
        %v1218 = vadd.f32 %v327, %v1217
        %v1219 = vpop.f32.mrb[0].mxu0
        %v1220 = vadd.f32 %v331, %v1219
        %1221 = vmatprep.mubr.bf16.mxu0 0
        %1222 = vmatmul.mubr.bf16.gmra.mrb[0].mxu0 %v641
        %v1223 = vpop.f32.mrb[0].mxu0
        %v1224 = vadd.f32 %v327, %v1223
        %v1225 = vpop.f32.mrb[0].mxu0
        %v1226 = vadd.f32 %v331, %v1225
        %v1227 = vpop.f32.mrb[0].mxu0
        %v1228 = vadd.f32 %v327, %v1227
        %v1229 = vpop.f32.mrb[0].mxu0
        %v1230 = vadd.f32 %v331, %v1229
        %1231 = vmatprep.mubr.bf16.mxu0 0
        %1232 = vmatmul.mubr.bf16.gmra.mrb[0].mxu0 %v644
        %v1233 = vpop.f32.mrb[0].mxu0
        %v1234 = vadd.f32 %v327, %v1233
        %v1235 = vpop.f32.mrb[0].mxu0
        %v1236 = vadd.f32 %v331, %v1235
        %v1237 = vpop.f32.mrb[0].mxu0
        %v1238 = vadd.f32 %v327, %v1237
        %v1239 = vpop.f32.mrb[0].mxu0
        %v1240 = vadd.f32 %v331, %v1239
        %1241 = vmatprep.mubr.bf16.mxu0 0
        %1242 = vmatmul.mubr.bf16.gmra.mrb[0].mxu0 %v647
        %v1243 = vpop.f32.mrb[0].mxu0
        %v1244 = vadd.f32 %v327, %v1243
        %v1245 = vpop.f32.mrb[0].mxu0
        %v1246 = vadd.f32 %v331, %v1245
        %v1247 = vpop.f32.mrb[0].mxu0
        %v1248 = vadd.f32 %v327, %v1247
        %v1249 = vpop.f32.mrb[0].mxu0
        %v1250 = vadd.f32 %v331, %v1249
        %1251 = vmatprep.mubr.bf16.mxu0 0
        %1252 = vmatmul.mubr.bf16.gmra.mrb[0].mxu0 %v650
        %v1253 = vpop.f32.mrb[0].mxu0
        %v1254 = vadd.f32 %v327, %v1253
        %v1255 = vpop.f32.mrb[0].mxu0
        %v1256 = vadd.f32 %v331, %v1255
        %v1257 = vpop.f32.mrb[0].mxu0
        %v1258 = vadd.f32 %v327, %v1257
        %v1259 = vpop.f32.mrb[0].mxu0
        %v1260 = vadd.f32 %v331, %v1259
        %1261 = vmatprep.mubr.bf16.mxu0 0
        %1262 = vmatmul.mubr.bf16.gmra.mrb[0].mxu0 %v653
        %v1263 = vpop.f32.mrb[0].mxu0
        %v1264 = vadd.f32 %v327, %v1263
        %v1265 = vpop.f32.mrb[0].mxu0
        %v1266 = vadd.f32 %v331, %v1265
        %v1267 = vpop.f32.mrb[0].mxu0
        %v1268 = vadd.f32 %v327, %v1267
        %v1269 = vpop.f32.mrb[0].mxu0
        %v1270 = vadd.f32 %v331, %v1269
        %1271 = vmatprep.mubr.bf16.mxu0 0
        %1272 = vmatmul.mubr.bf16.gmra.mrb[0].mxu0 %v656
        %v1273 = vpop.f32.mrb[0].mxu0
        %v1274 = vadd.f32 %v327, %v1273
        %v1275 = vpop.f32.mrb[0].mxu0
        %v1276 = vadd.f32 %v331, %v1275
        %v1277 = vpop.f32.mrb[0].mxu0
        %v1278 = vadd.f32 %v327, %v1277
        %v1279 = vpop.f32.mrb[0].mxu0
        %v1280 = vadd.f32 %v331, %v1279
        %1281 = vmatprep.mubr.bf16.mxu0 0
        %1282 = vmatmul.mubr.bf16.gmra.mrb[0].mxu0 %v659
        %v1283 = vpop.f32.mrb[0].mxu0
        %v1284 = vadd.f32 %v327, %v1283
        %v1285 = vpop.f32.mrb[0].mxu0
        %v1286 = vadd.f32 %v331, %v1285
        %v1287 = vpop.f32.mrb[0].mxu0
        %v1288 = vadd.f32 %v327, %v1287
        %v1289 = vpop.f32.mrb[0].mxu0
        %v1290 = vadd.f32 %v331, %v1289
        %1291 = vdwg.mxu0
        %1292 = vmatprep.subr.bf16.mxu0 %v571
        %1293 = vmatpush1.bf16.msra.mxu0 %v570
        %1294 = vmatprep.subr.bf16.mxu0 %v687
        %1295 = vmatpush1.bf16.msra.mxu0 %v684
        %1296 = vmatprep.subr.bf16.mxu0 0
        %1297 = vmatpush1.bf16.msra.mxu0 0
        %1298 = vmatprep.subr.bf16.mxu0 0
        %1299 = vmatpush1.bf16.msra.mxu0 0
        %1300 = vmatprep.subr.bf16.mxu0 0
        %1301 = vmatpush1.bf16.msra.mxu0 0
        %1302 = vmatprep.subr.bf16.mxu0 0
        %1303 = vmatpush1.bf16.msra.mxu0 0
        %1304 = vmatprep.subr.bf16.mxu0 0
        %1305 = vmatpush1.bf16.msra.mxu0 0
        %1306 = vmatprep.subr.bf16.mxu0 0
        %1307 = vmatpush1.bf16.msra.mxu0 0
        %1308 = vmatprep.subr.bf16.mxu0 0
        %1309 = vmatpush1.bf16.msra.mxu0 0
        %1310 = vmatprep.subr.bf16.mxu0 0
        %1311 = vmatpush1.bf16.msra.mxu0 0
        %1312 = vmatprep.subr.bf16.mxu0 0
        %1313 = vmatpush1.bf16.msra.mxu0 0
        %1314 = vmatprep.subr.bf16.mxu0 0
        %1315 = vmatpush1.bf16.msra.mxu0 0
        %1316 = vmatprep.subr.bf16.mxu0 0
        %1317 = vmatpush1.bf16.msra.mxu0 0
        %1318 = vmatprep.subr.bf16.mxu0 0
        %1319 = vmatpush1.bf16.msra.mxu0 0
        %1320 = vmatprep.subr.bf16.mxu0 0
        %1321 = vmatpush1.bf16.msra.mxu0 0
        %1322 = vmatprep.subr.bf16.mxu0 0
        %1323 = vmatpush1.bf16.msra.mxu0 0
        %1324 = vmatprep.mubr.bf16.mxu0 0
        %1325 = vmatmul.mubr.bf16.gmra.mrb[0].mxu0 %v614
        %v1326 = vpop.f32.mrb[0].mxu0
        %v1327 = vadd.f32 %v335, %v1326
        %v1328 = vpop.f32.mrb[0].mxu0
        %v1329 = vadd.f32 %v339, %v1328
        %v1330 = vpop.f32.mrb[0].mxu0
        %v1331 = vadd.f32 %v335, %v1330
        %v1332 = vpop.f32.mrb[0].mxu0
        %v1333 = vadd.f32 %v339, %v1332
        %1334 = vmatprep.mubr.bf16.mxu0 0
        %1335 = vmatmul.mubr.bf16.gmra.mrb[0].mxu0 %v617
        %v1336 = vpop.f32.mrb[0].mxu0
        %v1337 = vadd.f32 %v335, %v1336
        %v1338 = vpop.f32.mrb[0].mxu0
        %v1339 = vadd.f32 %v339, %v1338
        %v1340 = vpop.f32.mrb[0].mxu0
        %v1341 = vadd.f32 %v335, %v1340
        %v1342 = vpop.f32.mrb[0].mxu0
        %v1343 = vadd.f32 %v339, %v1342
        %1344 = vmatprep.mubr.bf16.mxu0 0
        %1345 = vmatmul.mubr.bf16.gmra.mrb[0].mxu0 %v620
        %v1346 = vpop.f32.mrb[0].mxu0
        %v1347 = vadd.f32 %v335, %v1346
        %v1348 = vpop.f32.mrb[0].mxu0
        %v1349 = vadd.f32 %v339, %v1348
        %v1350 = vpop.f32.mrb[0].mxu0
        %v1351 = vadd.f32 %v335, %v1350
        %v1352 = vpop.f32.mrb[0].mxu0
        %v1353 = vadd.f32 %v339, %v1352
        %1354 = vmatprep.mubr.bf16.mxu0 0
        %1355 = vmatmul.mubr.bf16.gmra.mrb[0].mxu0 %v623
        %v1356 = vpop.f32.mrb[0].mxu0
        %v1357 = vadd.f32 %v335, %v1356
        %v1358 = vpop.f32.mrb[0].mxu0
        %v1359 = vadd.f32 %v339, %v1358
        %v1360 = vpop.f32.mrb[0].mxu0
        %v1361 = vadd.f32 %v335, %v1360
        %v1362 = vpop.f32.mrb[0].mxu0
        %v1363 = vadd.f32 %v339, %v1362
        %1364 = vmatprep.mubr.bf16.mxu0 0
        %1365 = vmatmul.mubr.bf16.gmra.mrb[0].mxu0 %v626
        %v1366 = vpop.f32.mrb[0].mxu0
        %v1367 = vadd.f32 %v335, %v1366
        %v1368 = vpop.f32.mrb[0].mxu0
        %v1369 = vadd.f32 %v339, %v1368
        %v1370 = vpop.f32.mrb[0].mxu0
        %v1371 = vadd.f32 %v335, %v1370
        %v1372 = vpop.f32.mrb[0].mxu0
        %v1373 = vadd.f32 %v339, %v1372
        %1374 = vmatprep.mubr.bf16.mxu0 0
        %1375 = vmatmul.mubr.bf16.gmra.mrb[0].mxu0 %v629
        %v1376 = vpop.f32.mrb[0].mxu0
        %v1377 = vadd.f32 %v335, %v1376
        %v1378 = vpop.f32.mrb[0].mxu0
        %v1379 = vadd.f32 %v339, %v1378
        %v1380 = vpop.f32.mrb[0].mxu0
        %v1381 = vadd.f32 %v335, %v1380
        %v1382 = vpop.f32.mrb[0].mxu0
        %v1383 = vadd.f32 %v339, %v1382
        %1384 = vmatprep.mubr.bf16.mxu0 0
        %1385 = vmatmul.mubr.bf16.gmra.mrb[0].mxu0 %v632
        %v1386 = vpop.f32.mrb[0].mxu0
        %v1387 = vadd.f32 %v335, %v1386
        %v1388 = vpop.f32.mrb[0].mxu0
        %v1389 = vadd.f32 %v339, %v1388
        %v1390 = vpop.f32.mrb[0].mxu0
        %v1391 = vadd.f32 %v335, %v1390
        %v1392 = vpop.f32.mrb[0].mxu0
        %v1393 = vadd.f32 %v339, %v1392
        %1394 = vmatprep.mubr.bf16.mxu0 0
        %1395 = vmatmul.mubr.bf16.gmra.mrb[0].mxu0 %v635
        %v1396 = vpop.f32.mrb[0].mxu0
        %v1397 = vadd.f32 %v335, %v1396
        %v1398 = vpop.f32.mrb[0].mxu0
        %v1399 = vadd.f32 %v339, %v1398
        %v1400 = vpop.f32.mrb[0].mxu0
        %v1401 = vadd.f32 %v335, %v1400
        %v1402 = vpop.f32.mrb[0].mxu0
        %v1403 = vadd.f32 %v339, %v1402
        %1404 = vmatprep.mubr.bf16.mxu0 0
        %1405 = vmatmul.mubr.bf16.gmra.mrb[0].mxu0 %v638
        %v1406 = vpop.f32.mrb[0].mxu0
        %v1407 = vadd.f32 %v335, %v1406
        %v1408 = vpop.f32.mrb[0].mxu0
        %v1409 = vadd.f32 %v339, %v1408
        %v1410 = vpop.f32.mrb[0].mxu0
        %v1411 = vadd.f32 %v335, %v1410
        %v1412 = vpop.f32.mrb[0].mxu0
        %v1413 = vadd.f32 %v339, %v1412
        %1414 = vmatprep.mubr.bf16.mxu0 0
        %1415 = vmatmul.mubr.bf16.gmra.mrb[0].mxu0 %v641
        %v1416 = vpop.f32.mrb[0].mxu0
        %v1417 = vadd.f32 %v335, %v1416
        %v1418 = vpop.f32.mrb[0].mxu0
        %v1419 = vadd.f32 %v339, %v1418
        %v1420 = vpop.f32.mrb[0].mxu0
        %v1421 = vadd.f32 %v335, %v1420
        %v1422 = vpop.f32.mrb[0].mxu0
        %v1423 = vadd.f32 %v339, %v1422
        %1424 = vmatprep.mubr.bf16.mxu0 0
        %1425 = vmatmul.mubr.bf16.gmra.mrb[0].mxu0 %v644
        %v1426 = vpop.f32.mrb[0].mxu0
        %v1427 = vadd.f32 %v335, %v1426
        %v1428 = vpop.f32.mrb[0].mxu0
        %v1429 = vadd.f32 %v339, %v1428
        %v1430 = vpop.f32.mrb[0].mxu0
        %v1431 = vadd.f32 %v335, %v1430
        %v1432 = vpop.f32.mrb[0].mxu0
        %v1433 = vadd.f32 %v339, %v1432
        %1434 = vmatprep.mubr.bf16.mxu0 0
        %1435 = vmatmul.mubr.bf16.gmra.mrb[0].mxu0 %v647
        %v1436 = vpop.f32.mrb[0].mxu0
        %v1437 = vadd.f32 %v335, %v1436
        %v1438 = vpop.f32.mrb[0].mxu0
        %v1439 = vadd.f32 %v339, %v1438
        %v1440 = vpop.f32.mrb[0].mxu0
        %v1441 = vadd.f32 %v335, %v1440
        %v1442 = vpop.f32.mrb[0].mxu0
        %v1443 = vadd.f32 %v339, %v1442
        %1444 = vmatprep.mubr.bf16.mxu0 0
        %1445 = vmatmul.mubr.bf16.gmra.mrb[0].mxu0 %v650
        %v1446 = vpop.f32.mrb[0].mxu0
        %v1447 = vadd.f32 %v335, %v1446
        %v1448 = vpop.f32.mrb[0].mxu0
        %v1449 = vadd.f32 %v339, %v1448
        %v1450 = vpop.f32.mrb[0].mxu0
        %v1451 = vadd.f32 %v335, %v1450
        %v1452 = vpop.f32.mrb[0].mxu0
        %v1453 = vadd.f32 %v339, %v1452
        %1454 = vmatprep.mubr.bf16.mxu0 0
        %1455 = vmatmul.mubr.bf16.gmra.mrb[0].mxu0 %v653
        %v1456 = vpop.f32.mrb[0].mxu0
        %v1457 = vadd.f32 %v335, %v1456
        %v1458 = vpop.f32.mrb[0].mxu0
        %v1459 = vadd.f32 %v339, %v1458
        %v1460 = vpop.f32.mrb[0].mxu0
        %v1461 = vadd.f32 %v335, %v1460
        %v1462 = vpop.f32.mrb[0].mxu0
        %v1463 = vadd.f32 %v339, %v1462
        %1464 = vmatprep.mubr.bf16.mxu0 0
        %1465 = vmatmul.mubr.bf16.gmra.mrb[0].mxu0 %v656
        %v1466 = vpop.f32.mrb[0].mxu0
        %v1467 = vadd.f32 %v335, %v1466
        %v1468 = vpop.f32.mrb[0].mxu0
        %v1469 = vadd.f32 %v339, %v1468
        %v1470 = vpop.f32.mrb[0].mxu0
        %v1471 = vadd.f32 %v335, %v1470
        %v1472 = vpop.f32.mrb[0].mxu0
        %v1473 = vadd.f32 %v339, %v1472
        %1474 = vmatprep.mubr.bf16.mxu0 0
        %1475 = vmatmul.mubr.bf16.gmra.mrb[0].mxu0 %v659
        %v1476 = vpop.f32.mrb[0].mxu0
        %v1477 = vadd.f32 %v335, %v1476
        %v1478 = vpop.f32.mrb[0].mxu0
        %v1479 = vadd.f32 %v339, %v1478
        %v1480 = vpop.f32.mrb[0].mxu0
        %v1481 = vadd.f32 %v335, %v1480
        %v1482 = vpop.f32.mrb[0].mxu0
        %v1483 = vadd.f32 %v339, %v1482
        %1484 = vdwg.mxu0
        %1485 = vmatprep.subr.bf16.mxu0 %v573
        %1486 = vmatpush1.bf16.msra.mxu0 %v572
        %1487 = vmatprep.subr.bf16.mxu0 %v693
        %1488 = vmatpush1.bf16.msra.mxu0 %v690
        %1489 = vmatprep.subr.bf16.mxu0 0
        %1490 = vmatpush1.bf16.msra.mxu0 0
        %1491 = vmatprep.subr.bf16.mxu0 0
        %1492 = vmatpush1.bf16.msra.mxu0 0
        %1493 = vmatprep.subr.bf16.mxu0 0
        %1494 = vmatpush1.bf16.msra.mxu0 0
        %1495 = vmatprep.subr.bf16.mxu0 0
        %1496 = vmatpush1.bf16.msra.mxu0 0
        %1497 = vmatprep.subr.bf16.mxu0 0
        %1498 = vmatpush1.bf16.msra.mxu0 0
        %1499 = vmatprep.subr.bf16.mxu0 0
        %1500 = vmatpush1.bf16.msra.mxu0 0
        %1501 = vmatprep.subr.bf16.mxu0 0
        %1502 = vmatpush1.bf16.msra.mxu0 0
        %1503 = vmatprep.subr.bf16.mxu0 0
        %1504 = vmatpush1.bf16.msra.mxu0 0
        %1505 = vmatprep.subr.bf16.mxu0 0
        %1506 = vmatpush1.bf16.msra.mxu0 0
        %1507 = vmatprep.subr.bf16.mxu0 0
        %1508 = vmatpush1.bf16.msra.mxu0 0
        %1509 = vmatprep.subr.bf16.mxu0 0
        %1510 = vmatpush1.bf16.msra.mxu0 0
        %1511 = vmatprep.subr.bf16.mxu0 0
        %1512 = vmatpush1.bf16.msra.mxu0 0
        %1513 = vmatprep.subr.bf16.mxu0 0
        %1514 = vmatpush1.bf16.msra.mxu0 0
        %1515 = vmatprep.subr.bf16.mxu0 0
        %1516 = vmatpush1.bf16.msra.mxu0 0
        %1517 = vmatprep.mubr.bf16.mxu0 0
        %1518 = vmatmul.mubr.bf16.gmra.mrb[0].mxu0 %v614
        %v1519 = vpop.f32.mrb[0].mxu0
        %v1520 = vadd.f32 %v343, %v1519
        %v1521 = vpop.f32.mrb[0].mxu0
        %v1522 = vadd.f32 %v347, %v1521
        %v1523 = vpop.f32.mrb[0].mxu0
        %v1524 = vadd.f32 %v343, %v1523
        %v1525 = vpop.f32.mrb[0].mxu0
        %v1526 = vadd.f32 %v347, %v1525
        %1527 = vmatprep.mubr.bf16.mxu0 0
        %1528 = vmatmul.mubr.bf16.gmra.mrb[0].mxu0 %v617
        %v1529 = vpop.f32.mrb[0].mxu0
        %v1530 = vadd.f32 %v343, %v1529
        %v1531 = vpop.f32.mrb[0].mxu0
        %v1532 = vadd.f32 %v347, %v1531
        %v1533 = vpop.f32.mrb[0].mxu0
        %v1534 = vadd.f32 %v343, %v1533
        %v1535 = vpop.f32.mrb[0].mxu0
        %v1536 = vadd.f32 %v347, %v1535
        %1537 = vmatprep.mubr.bf16.mxu0 0
        %1538 = vmatmul.mubr.bf16.gmra.mrb[0].mxu0 %v620
        %v1539 = vpop.f32.mrb[0].mxu0
        %v1540 = vadd.f32 %v343, %v1539
        %v1541 = vpop.f32.mrb[0].mxu0
        %v1542 = vadd.f32 %v347, %v1541
        %v1543 = vpop.f32.mrb[0].mxu0
        %v1544 = vadd.f32 %v343, %v1543
        %v1545 = vpop.f32.mrb[0].mxu0
        %v1546 = vadd.f32 %v347, %v1545
        %1547 = vmatprep.mubr.bf16.mxu0 0
        %1548 = vmatmul.mubr.bf16.gmra.mrb[0].mxu0 %v623
        %v1549 = vpop.f32.mrb[0].mxu0
        %v1550 = vadd.f32 %v343, %v1549
        %v1551 = vpop.f32.mrb[0].mxu0
        %v1552 = vadd.f32 %v347, %v1551
        %v1553 = vpop.f32.mrb[0].mxu0
        %v1554 = vadd.f32 %v343, %v1553
        %v1555 = vpop.f32.mrb[0].mxu0
        %v1556 = vadd.f32 %v347, %v1555
        %1557 = vmatprep.mubr.bf16.mxu0 0
        %1558 = vmatmul.mubr.bf16.gmra.mrb[0].mxu0 %v626
        %v1559 = vpop.f32.mrb[0].mxu0
        %v1560 = vadd.f32 %v343, %v1559
        %v1561 = vpop.f32.mrb[0].mxu0
        %v1562 = vadd.f32 %v347, %v1561
        %v1563 = vpop.f32.mrb[0].mxu0
        %v1564 = vadd.f32 %v343, %v1563
        %v1565 = vpop.f32.mrb[0].mxu0
        %v1566 = vadd.f32 %v347, %v1565
        %1567 = vmatprep.mubr.bf16.mxu0 0
        %1568 = vmatmul.mubr.bf16.gmra.mrb[0].mxu0 %v629
        %v1569 = vpop.f32.mrb[0].mxu0
        %v1570 = vadd.f32 %v343, %v1569
        %v1571 = vpop.f32.mrb[0].mxu0
        %v1572 = vadd.f32 %v347, %v1571
        %v1573 = vpop.f32.mrb[0].mxu0
        %v1574 = vadd.f32 %v343, %v1573
        %v1575 = vpop.f32.mrb[0].mxu0
        %v1576 = vadd.f32 %v347, %v1575
        %1577 = vmatprep.mubr.bf16.mxu0 0
        %1578 = vmatmul.mubr.bf16.gmra.mrb[0].mxu0 %v632
        %v1579 = vpop.f32.mrb[0].mxu0
        %v1580 = vadd.f32 %v343, %v1579
        %v1581 = vpop.f32.mrb[0].mxu0
        %v1582 = vadd.f32 %v347, %v1581
        %v1583 = vpop.f32.mrb[0].mxu0
        %v1584 = vadd.f32 %v343, %v1583
        %v1585 = vpop.f32.mrb[0].mxu0
        %v1586 = vadd.f32 %v347, %v1585
        %1587 = vmatprep.mubr.bf16.mxu0 0
        %1588 = vmatmul.mubr.bf16.gmra.mrb[0].mxu0 %v635
        %v1589 = vpop.f32.mrb[0].mxu0
        %v1590 = vadd.f32 %v343, %v1589
        %v1591 = vpop.f32.mrb[0].mxu0
        %v1592 = vadd.f32 %v347, %v1591
        %v1593 = vpop.f32.mrb[0].mxu0
        %v1594 = vadd.f32 %v343, %v1593
        %v1595 = vpop.f32.mrb[0].mxu0
        %v1596 = vadd.f32 %v347, %v1595
        %1597 = vmatprep.mubr.bf16.mxu0 0
        %1598 = vmatmul.mubr.bf16.gmra.mrb[0].mxu0 %v638
        %v1599 = vpop.f32.mrb[0].mxu0
        %v1600 = vadd.f32 %v343, %v1599
        %v1601 = vpop.f32.mrb[0].mxu0
        %v1602 = vadd.f32 %v347, %v1601
        %v1603 = vpop.f32.mrb[0].mxu0
        %v1604 = vadd.f32 %v343, %v1603
        %v1605 = vpop.f32.mrb[0].mxu0
        %v1606 = vadd.f32 %v347, %v1605
        %1607 = vmatprep.mubr.bf16.mxu0 0
        %1608 = vmatmul.mubr.bf16.gmra.mrb[0].mxu0 %v641
        %v1609 = vpop.f32.mrb[0].mxu0
        %v1610 = vadd.f32 %v343, %v1609
        %v1611 = vpop.f32.mrb[0].mxu0
        %v1612 = vadd.f32 %v347, %v1611
        %v1613 = vpop.f32.mrb[0].mxu0
        %v1614 = vadd.f32 %v343, %v1613
        %v1615 = vpop.f32.mrb[0].mxu0
        %v1616 = vadd.f32 %v347, %v1615
        %1617 = vmatprep.mubr.bf16.mxu0 0
        %1618 = vmatmul.mubr.bf16.gmra.mrb[0].mxu0 %v644
        %v1619 = vpop.f32.mrb[0].mxu0
        %v1620 = vadd.f32 %v343, %v1619
        %v1621 = vpop.f32.mrb[0].mxu0
        %v1622 = vadd.f32 %v347, %v1621
        %v1623 = vpop.f32.mrb[0].mxu0
        %v1624 = vadd.f32 %v343, %v1623
        %v1625 = vpop.f32.mrb[0].mxu0
        %v1626 = vadd.f32 %v347, %v1625
        %1627 = vmatprep.mubr.bf16.mxu0 0
        %1628 = vmatmul.mubr.bf16.gmra.mrb[0].mxu0 %v647
        %v1629 = vpop.f32.mrb[0].mxu0
        %v1630 = vadd.f32 %v343, %v1629
        %v1631 = vpop.f32.mrb[0].mxu0
        %v1632 = vadd.f32 %v347, %v1631
        %v1633 = vpop.f32.mrb[0].mxu0
        %v1634 = vadd.f32 %v343, %v1633
        %v1635 = vpop.f32.mrb[0].mxu0
        %v1636 = vadd.f32 %v347, %v1635
        %1637 = vmatprep.mubr.bf16.mxu0 0
        %1638 = vmatmul.mubr.bf16.gmra.mrb[0].mxu0 %v650
        %v1639 = vpop.f32.mrb[0].mxu0
        %v1640 = vadd.f32 %v343, %v1639
        %v1641 = vpop.f32.mrb[0].mxu0
        %v1642 = vadd.f32 %v347, %v1641
        %v1643 = vpop.f32.mrb[0].mxu0
        %v1644 = vadd.f32 %v343, %v1643
        %v1645 = vpop.f32.mrb[0].mxu0
        %v1646 = vadd.f32 %v347, %v1645
        %1647 = vmatprep.mubr.bf16.mxu0 0
        %1648 = vmatmul.mubr.bf16.gmra.mrb[0].mxu0 %v653
        %v1649 = vpop.f32.mrb[0].mxu0
        %v1650 = vadd.f32 %v343, %v1649
        %v1651 = vpop.f32.mrb[0].mxu0
        %v1652 = vadd.f32 %v347, %v1651
        %v1653 = vpop.f32.mrb[0].mxu0
        %v1654 = vadd.f32 %v343, %v1653
        %v1655 = vpop.f32.mrb[0].mxu0
        %v1656 = vadd.f32 %v347, %v1655
        %1657 = vmatprep.mubr.bf16.mxu0 0
        %1658 = vmatmul.mubr.bf16.gmra.mrb[0].mxu0 %v656
        %v1659 = vpop.f32.mrb[0].mxu0
        %v1660 = vadd.f32 %v343, %v1659
        %v1661 = vpop.f32.mrb[0].mxu0
        %v1662 = vadd.f32 %v347, %v1661
        %v1663 = vpop.f32.mrb[0].mxu0
        %v1664 = vadd.f32 %v343, %v1663
        %v1665 = vpop.f32.mrb[0].mxu0
        %v1666 = vadd.f32 %v347, %v1665
        %1667 = vmatprep.mubr.bf16.mxu0 0
        %1668 = vmatmul.mubr.bf16.gmra.mrb[0].mxu0 %v659
        %v1669 = vpop.f32.mrb[0].mxu0
        %v1670 = vadd.f32 %v343, %v1669
        %v1671 = vpop.f32.mrb[0].mxu0
        %v1672 = vadd.f32 %v347, %v1671
        %v1673 = vpop.f32.mrb[0].mxu0
        %v1674 = vadd.f32 %v343, %v1673
        %v1675 = vpop.f32.mrb[0].mxu0
        %v1676 = vadd.f32 %v347, %v1675
        %1677 = vdwg.mxu0
        %1678 = vmatprep.subr.bf16.mxu0 %v575
        %1679 = vmatpush1.bf16.msra.mxu0 %v574
        %1680 = vmatprep.subr.bf16.mxu0 %v699
        %1681 = vmatpush1.bf16.msra.mxu0 %v696
        %1682 = vmatprep.subr.bf16.mxu0 0
        %1683 = vmatpush1.bf16.msra.mxu0 0
        %1684 = vmatprep.subr.bf16.mxu0 0
        %1685 = vmatpush1.bf16.msra.mxu0 0
        %1686 = vmatprep.subr.bf16.mxu0 0
        %1687 = vmatpush1.bf16.msra.mxu0 0
        %1688 = vmatprep.subr.bf16.mxu0 0
        %1689 = vmatpush1.bf16.msra.mxu0 0
        %1690 = vmatprep.subr.bf16.mxu0 0
        %1691 = vmatpush1.bf16.msra.mxu0 0
        %1692 = vmatprep.subr.bf16.mxu0 0
        %1693 = vmatpush1.bf16.msra.mxu0 0
        %1694 = vmatprep.subr.bf16.mxu0 0
        %1695 = vmatpush1.bf16.msra.mxu0 0
        %1696 = vmatprep.subr.bf16.mxu0 0
        %1697 = vmatpush1.bf16.msra.mxu0 0
        %1698 = vmatprep.subr.bf16.mxu0 0
        %1699 = vmatpush1.bf16.msra.mxu0 0
        %1700 = vmatprep.subr.bf16.mxu0 0
        %1701 = vmatpush1.bf16.msra.mxu0 0
        %1702 = vmatprep.subr.bf16.mxu0 0
        %1703 = vmatpush1.bf16.msra.mxu0 0
        %1704 = vmatprep.subr.bf16.mxu0 0
        %1705 = vmatpush1.bf16.msra.mxu0 0
        %1706 = vmatprep.subr.bf16.mxu0 0
        %1707 = vmatpush1.bf16.msra.mxu0 0
        %1708 = vmatprep.subr.bf16.mxu0 0
        %1709 = vmatpush1.bf16.msra.mxu0 0
        %1710 = vmatprep.mubr.bf16.mxu0 0
        %1711 = vmatmul.mubr.bf16.gmra.mrb[0].mxu0 %v614
        %v1712 = vpop.f32.mrb[0].mxu0
        %v1713 = vadd.f32 %v351, %v1712
        %v1714 = vpop.f32.mrb[0].mxu0
        %v1715 = vadd.f32 %v355, %v1714
        %v1716 = vpop.f32.mrb[0].mxu0
        %v1717 = vadd.f32 %v351, %v1716
        %v1718 = vpop.f32.mrb[0].mxu0
        %v1719 = vadd.f32 %v355, %v1718
        %1720 = vmatprep.mubr.bf16.mxu0 0
        %1721 = vmatmul.mubr.bf16.gmra.mrb[0].mxu0 %v617
        %v1722 = vpop.f32.mrb[0].mxu0
        %v1723 = vadd.f32 %v351, %v1722
        %v1724 = vpop.f32.mrb[0].mxu0
        %v1725 = vadd.f32 %v355, %v1724
        %v1726 = vpop.f32.mrb[0].mxu0
        %v1727 = vadd.f32 %v351, %v1726
        %v1728 = vpop.f32.mrb[0].mxu0
        %v1729 = vadd.f32 %v355, %v1728
        %1730 = vmatprep.mubr.bf16.mxu0 0
        %1731 = vmatmul.mubr.bf16.gmra.mrb[0].mxu0 %v620
        %v1732 = vpop.f32.mrb[0].mxu0
        %v1733 = vadd.f32 %v351, %v1732
        %v1734 = vpop.f32.mrb[0].mxu0
        %v1735 = vadd.f32 %v355, %v1734
        %v1736 = vpop.f32.mrb[0].mxu0
        %v1737 = vadd.f32 %v351, %v1736
        %v1738 = vpop.f32.mrb[0].mxu0
        %v1739 = vadd.f32 %v355, %v1738
        %1740 = vmatprep.mubr.bf16.mxu0 0
        %1741 = vmatmul.mubr.bf16.gmra.mrb[0].mxu0 %v623
        %v1742 = vpop.f32.mrb[0].mxu0
        %v1743 = vadd.f32 %v351, %v1742
        %v1744 = vpop.f32.mrb[0].mxu0
        %v1745 = vadd.f32 %v355, %v1744
        %v1746 = vpop.f32.mrb[0].mxu0
        %v1747 = vadd.f32 %v351, %v1746
        %v1748 = vpop.f32.mrb[0].mxu0
        %v1749 = vadd.f32 %v355, %v1748
        %1750 = vmatprep.mubr.bf16.mxu0 0
        %1751 = vmatmul.mubr.bf16.gmra.mrb[0].mxu0 %v626
        %v1752 = vpop.f32.mrb[0].mxu0
        %v1753 = vadd.f32 %v351, %v1752
        %v1754 = vpop.f32.mrb[0].mxu0
        %v1755 = vadd.f32 %v355, %v1754
        %v1756 = vpop.f32.mrb[0].mxu0
        %v1757 = vadd.f32 %v351, %v1756
        %v1758 = vpop.f32.mrb[0].mxu0
        %v1759 = vadd.f32 %v355, %v1758
        %1760 = vmatprep.mubr.bf16.mxu0 0
        %1761 = vmatmul.mubr.bf16.gmra.mrb[0].mxu0 %v629
        %v1762 = vpop.f32.mrb[0].mxu0
        %v1763 = vadd.f32 %v351, %v1762
        %v1764 = vpop.f32.mrb[0].mxu0
        %v1765 = vadd.f32 %v355, %v1764
        %v1766 = vpop.f32.mrb[0].mxu0
        %v1767 = vadd.f32 %v351, %v1766
        %v1768 = vpop.f32.mrb[0].mxu0
        %v1769 = vadd.f32 %v355, %v1768
        %1770 = vmatprep.mubr.bf16.mxu0 0
        %1771 = vmatmul.mubr.bf16.gmra.mrb[0].mxu0 %v632
        %v1772 = vpop.f32.mrb[0].mxu0
        %v1773 = vadd.f32 %v351, %v1772
        %v1774 = vpop.f32.mrb[0].mxu0
        %v1775 = vadd.f32 %v355, %v1774
        %v1776 = vpop.f32.mrb[0].mxu0
        %v1777 = vadd.f32 %v351, %v1776
        %v1778 = vpop.f32.mrb[0].mxu0
        %v1779 = vadd.f32 %v355, %v1778
        %1780 = vmatprep.mubr.bf16.mxu0 0
        %1781 = vmatmul.mubr.bf16.gmra.mrb[0].mxu0 %v635
        %v1782 = vpop.f32.mrb[0].mxu0
        %v1783 = vadd.f32 %v351, %v1782
        %v1784 = vpop.f32.mrb[0].mxu0
        %v1785 = vadd.f32 %v355, %v1784
        %v1786 = vpop.f32.mrb[0].mxu0
        %v1787 = vadd.f32 %v351, %v1786
        %v1788 = vpop.f32.mrb[0].mxu0
        %v1789 = vadd.f32 %v355, %v1788
        %1790 = vmatprep.mubr.bf16.mxu0 0
        %1791 = vmatmul.mubr.bf16.gmra.mrb[0].mxu0 %v638
        %v1792 = vpop.f32.mrb[0].mxu0
        %v1793 = vadd.f32 %v351, %v1792
        %v1794 = vpop.f32.mrb[0].mxu0
        %v1795 = vadd.f32 %v355, %v1794
        %v1796 = vpop.f32.mrb[0].mxu0
        %v1797 = vadd.f32 %v351, %v1796
        %v1798 = vpop.f32.mrb[0].mxu0
        %v1799 = vadd.f32 %v355, %v1798
        %1800 = vmatprep.mubr.bf16.mxu0 0
        %1801 = vmatmul.mubr.bf16.gmra.mrb[0].mxu0 %v641
        %v1802 = vpop.f32.mrb[0].mxu0
        %v1803 = vadd.f32 %v351, %v1802
        %v1804 = vpop.f32.mrb[0].mxu0
        %v1805 = vadd.f32 %v355, %v1804
        %v1806 = vpop.f32.mrb[0].mxu0
        %v1807 = vadd.f32 %v351, %v1806
        %v1808 = vpop.f32.mrb[0].mxu0
        %v1809 = vadd.f32 %v355, %v1808
        %1810 = vmatprep.mubr.bf16.mxu0 0
        %1811 = vmatmul.mubr.bf16.gmra.mrb[0].mxu0 %v644
        %v1812 = vpop.f32.mrb[0].mxu0
        %v1813 = vadd.f32 %v351, %v1812
        %v1814 = vpop.f32.mrb[0].mxu0
        %v1815 = vadd.f32 %v355, %v1814
        %v1816 = vpop.f32.mrb[0].mxu0
        %v1817 = vadd.f32 %v351, %v1816
        %v1818 = vpop.f32.mrb[0].mxu0
        %v1819 = vadd.f32 %v355, %v1818
        %1820 = vmatprep.mubr.bf16.mxu0 0
        %1821 = vmatmul.mubr.bf16.gmra.mrb[0].mxu0 %v647
        %v1822 = vpop.f32.mrb[0].mxu0
        %v1823 = vadd.f32 %v351, %v1822
        %v1824 = vpop.f32.mrb[0].mxu0
        %v1825 = vadd.f32 %v355, %v1824
        %v1826 = vpop.f32.mrb[0].mxu0
        %v1827 = vadd.f32 %v351, %v1826
        %v1828 = vpop.f32.mrb[0].mxu0
        %v1829 = vadd.f32 %v355, %v1828
        %1830 = vmatprep.mubr.bf16.mxu0 0
        %1831 = vmatmul.mubr.bf16.gmra.mrb[0].mxu0 %v650
        %v1832 = vpop.f32.mrb[0].mxu0
        %v1833 = vadd.f32 %v351, %v1832
        %v1834 = vpop.f32.mrb[0].mxu0
        %v1835 = vadd.f32 %v355, %v1834
        %v1836 = vpop.f32.mrb[0].mxu0
        %v1837 = vadd.f32 %v351, %v1836
        %v1838 = vpop.f32.mrb[0].mxu0
        %v1839 = vadd.f32 %v355, %v1838
        %1840 = vmatprep.mubr.bf16.mxu0 0
        %1841 = vmatmul.mubr.bf16.gmra.mrb[0].mxu0 %v653
        %v1842 = vpop.f32.mrb[0].mxu0
        %v1843 = vadd.f32 %v351, %v1842
        %v1844 = vpop.f32.mrb[0].mxu0
        %v1845 = vadd.f32 %v355, %v1844
        %v1846 = vpop.f32.mrb[0].mxu0
        %v1847 = vadd.f32 %v351, %v1846
        %v1848 = vpop.f32.mrb[0].mxu0
        %v1849 = vadd.f32 %v355, %v1848
        %1850 = vmatprep.mubr.bf16.mxu0 0
        %1851 = vmatmul.mubr.bf16.gmra.mrb[0].mxu0 %v656
        %v1852 = vpop.f32.mrb[0].mxu0
        %v1853 = vadd.f32 %v351, %v1852
        %v1854 = vpop.f32.mrb[0].mxu0
        %v1855 = vadd.f32 %v355, %v1854
        %v1856 = vpop.f32.mrb[0].mxu0
        %v1857 = vadd.f32 %v351, %v1856
        %v1858 = vpop.f32.mrb[0].mxu0
        %v1859 = vadd.f32 %v355, %v1858
        %1860 = vmatprep.mubr.bf16.mxu0 0
        %1861 = vmatmul.mubr.bf16.gmra.mrb[0].mxu0 %v659
        %v1862 = vpop.f32.mrb[0].mxu0
        %v1863 = vadd.f32 %v351, %v1862
        %v1864 = vpop.f32.mrb[0].mxu0
        %v1865 = vadd.f32 %v355, %v1864
        %v1866 = vpop.f32.mrb[0].mxu0
        %v1867 = vadd.f32 %v351, %v1866
        %v1868 = vpop.f32.mrb[0].mxu0
        %v1869 = vadd.f32 %v355, %v1868
        %1870 = vdwg.mxu0
        %1871 = vmatprep.subr.bf16.mxu0 %v577
        %1872 = vmatpush1.bf16.msra.mxu0 %v576
        %1873 = vmatprep.subr.bf16.mxu0 %v705
        %1874 = vmatpush1.bf16.msra.mxu0 %v702
        %1875 = vmatprep.subr.bf16.mxu0 0
        %1876 = vmatpush1.bf16.msra.mxu0 0
        %1877 = vmatprep.subr.bf16.mxu0 0
        %1878 = vmatpush1.bf16.msra.mxu0 0
        %1879 = vmatprep.subr.bf16.mxu0 0
        %1880 = vmatpush1.bf16.msra.mxu0 0
        %1881 = vmatprep.subr.bf16.mxu0 0
        %1882 = vmatpush1.bf16.msra.mxu0 0
        %1883 = vmatprep.subr.bf16.mxu0 0
        %1884 = vmatpush1.bf16.msra.mxu0 0
        %1885 = vmatprep.subr.bf16.mxu0 0
        %1886 = vmatpush1.bf16.msra.mxu0 0
        %1887 = vmatprep.subr.bf16.mxu0 0
        %1888 = vmatpush1.bf16.msra.mxu0 0
        %1889 = vmatprep.subr.bf16.mxu0 0
        %1890 = vmatpush1.bf16.msra.mxu0 0
        %1891 = vmatprep.subr.bf16.mxu0 0
        %1892 = vmatpush1.bf16.msra.mxu0 0
        %1893 = vmatprep.subr.bf16.mxu0 0
        %1894 = vmatpush1.bf16.msra.mxu0 0
        %1895 = vmatprep.subr.bf16.mxu0 0
        %1896 = vmatpush1.bf16.msra.mxu0 0
        %1897 = vmatprep.subr.bf16.mxu0 0
        %1898 = vmatpush1.bf16.msra.mxu0 0
        %1899 = vmatprep.subr.bf16.mxu0 0
        %1900 = vmatpush1.bf16.msra.mxu0 0
        %1901 = vmatprep.subr.bf16.mxu0 0
        %1902 = vmatpush1.bf16.msra.mxu0 0
        %1903 = vmatprep.mubr.bf16.mxu0 0
        %1904 = vmatmul.mubr.bf16.gmra.mrb[0].mxu0 %v614
        %v1905 = vpop.f32.mrb[0].mxu0
        %v1906 = vadd.f32 %v359, %v1905
        %v1907 = vpop.f32.mrb[0].mxu0
        %v1908 = vadd.f32 %v363, %v1907
        %v1909 = vpop.f32.mrb[0].mxu0
        %v1910 = vadd.f32 %v359, %v1909
        %v1911 = vpop.f32.mrb[0].mxu0
        %v1912 = vadd.f32 %v363, %v1911
        %1913 = vmatprep.mubr.bf16.mxu0 0
        %1914 = vmatmul.mubr.bf16.gmra.mrb[0].mxu0 %v617
        %v1915 = vpop.f32.mrb[0].mxu0
        %v1916 = vadd.f32 %v359, %v1915
        %v1917 = vpop.f32.mrb[0].mxu0
        %v1918 = vadd.f32 %v363, %v1917
        %v1919 = vpop.f32.mrb[0].mxu0
        %v1920 = vadd.f32 %v359, %v1919
        %v1921 = vpop.f32.mrb[0].mxu0
        %v1922 = vadd.f32 %v363, %v1921
        %1923 = vmatprep.mubr.bf16.mxu0 0
        %1924 = vmatmul.mubr.bf16.gmra.mrb[0].mxu0 %v620
        %v1925 = vpop.f32.mrb[0].mxu0
        %v1926 = vadd.f32 %v359, %v1925
        %v1927 = vpop.f32.mrb[0].mxu0
        %v1928 = vadd.f32 %v363, %v1927
        %v1929 = vpop.f32.mrb[0].mxu0
        %v1930 = vadd.f32 %v359, %v1929
        %v1931 = vpop.f32.mrb[0].mxu0
        %v1932 = vadd.f32 %v363, %v1931
        %1933 = vmatprep.mubr.bf16.mxu0 0
        %1934 = vmatmul.mubr.bf16.gmra.mrb[0].mxu0 %v623
        %v1935 = vpop.f32.mrb[0].mxu0
        %v1936 = vadd.f32 %v359, %v1935
        %v1937 = vpop.f32.mrb[0].mxu0
        %v1938 = vadd.f32 %v363, %v1937
        %v1939 = vpop.f32.mrb[0].mxu0
        %v1940 = vadd.f32 %v359, %v1939
        %v1941 = vpop.f32.mrb[0].mxu0
        %v1942 = vadd.f32 %v363, %v1941
        %1943 = vmatprep.mubr.bf16.mxu0 0
        %1944 = vmatmul.mubr.bf16.gmra.mrb[0].mxu0 %v626
        %v1945 = vpop.f32.mrb[0].mxu0
        %v1946 = vadd.f32 %v359, %v1945
        %v1947 = vpop.f32.mrb[0].mxu0
        %v1948 = vadd.f32 %v363, %v1947
        %v1949 = vpop.f32.mrb[0].mxu0
        %v1950 = vadd.f32 %v359, %v1949
        %v1951 = vpop.f32.mrb[0].mxu0
        %v1952 = vadd.f32 %v363, %v1951
        %1953 = vmatprep.mubr.bf16.mxu0 0
        %1954 = vmatmul.mubr.bf16.gmra.mrb[0].mxu0 %v629
        %v1955 = vpop.f32.mrb[0].mxu0
        %v1956 = vadd.f32 %v359, %v1955
        %v1957 = vpop.f32.mrb[0].mxu0
        %v1958 = vadd.f32 %v363, %v1957
        %v1959 = vpop.f32.mrb[0].mxu0
        %v1960 = vadd.f32 %v359, %v1959
        %v1961 = vpop.f32.mrb[0].mxu0
        %v1962 = vadd.f32 %v363, %v1961
        %1963 = vmatprep.mubr.bf16.mxu0 0
        %1964 = vmatmul.mubr.bf16.gmra.mrb[0].mxu0 %v632
        %v1965 = vpop.f32.mrb[0].mxu0
        %v1966 = vadd.f32 %v359, %v1965
        %v1967 = vpop.f32.mrb[0].mxu0
        %v1968 = vadd.f32 %v363, %v1967
        %v1969 = vpop.f32.mrb[0].mxu0
        %v1970 = vadd.f32 %v359, %v1969
        %v1971 = vpop.f32.mrb[0].mxu0
        %v1972 = vadd.f32 %v363, %v1971
        %1973 = vmatprep.mubr.bf16.mxu0 0
        %1974 = vmatmul.mubr.bf16.gmra.mrb[0].mxu0 %v635
        %v1975 = vpop.f32.mrb[0].mxu0
        %v1976 = vadd.f32 %v359, %v1975
        %v1977 = vpop.f32.mrb[0].mxu0
        %v1978 = vadd.f32 %v363, %v1977
        %v1979 = vpop.f32.mrb[0].mxu0
        %v1980 = vadd.f32 %v359, %v1979
        %v1981 = vpop.f32.mrb[0].mxu0
        %v1982 = vadd.f32 %v363, %v1981
        %1983 = vmatprep.mubr.bf16.mxu0 0
        %1984 = vmatmul.mubr.bf16.gmra.mrb[0].mxu0 %v638
        %v1985 = vpop.f32.mrb[0].mxu0
        %v1986 = vadd.f32 %v359, %v1985
        %v1987 = vpop.f32.mrb[0].mxu0
        %v1988 = vadd.f32 %v363, %v1987
        %v1989 = vpop.f32.mrb[0].mxu0
        %v1990 = vadd.f32 %v359, %v1989
        %v1991 = vpop.f32.mrb[0].mxu0
        %v1992 = vadd.f32 %v363, %v1991
        %1993 = vmatprep.mubr.bf16.mxu0 0
        %1994 = vmatmul.mubr.bf16.gmra.mrb[0].mxu0 %v641
        %v1995 = vpop.f32.mrb[0].mxu0
        %v1996 = vadd.f32 %v359, %v1995
        %v1997 = vpop.f32.mrb[0].mxu0
        %v1998 = vadd.f32 %v363, %v1997
        %v1999 = vpop.f32.mrb[0].mxu0
        %v2000 = vadd.f32 %v359, %v1999
        %v2001 = vpop.f32.mrb[0].mxu0
        %v2002 = vadd.f32 %v363, %v2001
        %2003 = vmatprep.mubr.bf16.mxu0 0
        %2004 = vmatmul.mubr.bf16.gmra.mrb[0].mxu0 %v644
        %v2005 = vpop.f32.mrb[0].mxu0
        %v2006 = vadd.f32 %v359, %v2005
        %v2007 = vpop.f32.mrb[0].mxu0
        %v2008 = vadd.f32 %v363, %v2007
        %v2009 = vpop.f32.mrb[0].mxu0
        %v2010 = vadd.f32 %v359, %v2009
        %v2011 = vpop.f32.mrb[0].mxu0
        %v2012 = vadd.f32 %v363, %v2011
        %2013 = vmatprep.mubr.bf16.mxu0 0
        %2014 = vmatmul.mubr.bf16.gmra.mrb[0].mxu0 %v647
        %v2015 = vpop.f32.mrb[0].mxu0
        %v2016 = vadd.f32 %v359, %v2015
        %v2017 = vpop.f32.mrb[0].mxu0
        %v2018 = vadd.f32 %v363, %v2017
        %v2019 = vpop.f32.mrb[0].mxu0
        %v2020 = vadd.f32 %v359, %v2019
        %v2021 = vpop.f32.mrb[0].mxu0
        %v2022 = vadd.f32 %v363, %v2021
        %2023 = vmatprep.mubr.bf16.mxu0 0
        %2024 = vmatmul.mubr.bf16.gmra.mrb[0].mxu0 %v650
        %v2025 = vpop.f32.mrb[0].mxu0
        %v2026 = vadd.f32 %v359, %v2025
        %v2027 = vpop.f32.mrb[0].mxu0
        %v2028 = vadd.f32 %v363, %v2027
        %v2029 = vpop.f32.mrb[0].mxu0
        %v2030 = vadd.f32 %v359, %v2029
        %v2031 = vpop.f32.mrb[0].mxu0
        %v2032 = vadd.f32 %v363, %v2031
        %2033 = vmatprep.mubr.bf16.mxu0 0
        %2034 = vmatmul.mubr.bf16.gmra.mrb[0].mxu0 %v653
        %v2035 = vpop.f32.mrb[0].mxu0
        %v2036 = vadd.f32 %v359, %v2035
        %v2037 = vpop.f32.mrb[0].mxu0
        %v2038 = vadd.f32 %v363, %v2037
        %v2039 = vpop.f32.mrb[0].mxu0
        %v2040 = vadd.f32 %v359, %v2039
        %v2041 = vpop.f32.mrb[0].mxu0
        %v2042 = vadd.f32 %v363, %v2041
        %2043 = vmatprep.mubr.bf16.mxu0 0
        %2044 = vmatmul.mubr.bf16.gmra.mrb[0].mxu0 %v656
        %v2045 = vpop.f32.mrb[0].mxu0
        %v2046 = vadd.f32 %v359, %v2045
        %v2047 = vpop.f32.mrb[0].mxu0
        %v2048 = vadd.f32 %v363, %v2047
        %v2049 = vpop.f32.mrb[0].mxu0
        %v2050 = vadd.f32 %v359, %v2049
        %v2051 = vpop.f32.mrb[0].mxu0
        %v2052 = vadd.f32 %v363, %v2051
        %2053 = vmatprep.mubr.bf16.mxu0 0
        %2054 = vmatmul.mubr.bf16.gmra.mrb[0].mxu0 %v659
        %v2055 = vpop.f32.mrb[0].mxu0
        %v2056 = vadd.f32 %v359, %v2055
        %v2057 = vpop.f32.mrb[0].mxu0
        %v2058 = vadd.f32 %v363, %v2057
        %v2059 = vpop.f32.mrb[0].mxu0
        %v2060 = vadd.f32 %v359, %v2059
        %v2061 = vpop.f32.mrb[0].mxu0
        %v2062 = vadd.f32 %v363, %v2061
        %2063 = vdwg.mxu0
        %2064 = vmatprep.subr.bf16.mxu0 %v579
        %2065 = vmatpush1.bf16.msra.mxu0 %v578
        %2066 = vmatprep.subr.bf16.mxu0 %v711
        %2067 = vmatpush1.bf16.msra.mxu0 %v708
        %2068 = vmatprep.subr.bf16.mxu0 0
        %2069 = vmatpush1.bf16.msra.mxu0 0
        %2070 = vmatprep.subr.bf16.mxu0 0
        %2071 = vmatpush1.bf16.msra.mxu0 0
        %2072 = vmatprep.subr.bf16.mxu0 0
        %2073 = vmatpush1.bf16.msra.mxu0 0
        %2074 = vmatprep.subr.bf16.mxu0 0
        %2075 = vmatpush1.bf16.msra.mxu0 0
        %2076 = vmatprep.subr.bf16.mxu0 0
        %2077 = vmatpush1.bf16.msra.mxu0 0
        %2078 = vmatprep.subr.bf16.mxu0 0
        %2079 = vmatpush1.bf16.msra.mxu0 0
        %2080 = vmatprep.subr.bf16.mxu0 0
        %2081 = vmatpush1.bf16.msra.mxu0 0
        %2082 = vmatprep.subr.bf16.mxu0 0
        %2083 = vmatpush1.bf16.msra.mxu0 0
        %2084 = vmatprep.subr.bf16.mxu0 0
        %2085 = vmatpush1.bf16.msra.mxu0 0
        %2086 = vmatprep.subr.bf16.mxu0 0
        %2087 = vmatpush1.bf16.msra.mxu0 0
        %2088 = vmatprep.subr.bf16.mxu0 0
        %2089 = vmatpush1.bf16.msra.mxu0 0
        %2090 = vmatprep.subr.bf16.mxu0 0
        %2091 = vmatpush1.bf16.msra.mxu0 0
        %2092 = vmatprep.subr.bf16.mxu0 0
        %2093 = vmatpush1.bf16.msra.mxu0 0
        %2094 = vmatprep.subr.bf16.mxu0 0
        %2095 = vmatpush1.bf16.msra.mxu0 0
        %2096 = vmatprep.mubr.bf16.mxu0 0
        %2097 = vmatmul.mubr.bf16.gmra.mrb[0].mxu0 %v614
        %v2098 = vpop.f32.mrb[0].mxu0
        %v2099 = vadd.f32 %v367, %v2098
        %v2100 = vpop.f32.mrb[0].mxu0
        %v2101 = vadd.f32 %v371, %v2100
        %v2102 = vpop.f32.mrb[0].mxu0
        %v2103 = vadd.f32 %v367, %v2102
        %v2104 = vpop.f32.mrb[0].mxu0
        %v2105 = vadd.f32 %v371, %v2104
        %2106 = vmatprep.mubr.bf16.mxu0 0
        %2107 = vmatmul.mubr.bf16.gmra.mrb[0].mxu0 %v617
        %v2108 = vpop.f32.mrb[0].mxu0
        %v2109 = vadd.f32 %v367, %v2108
        %v2110 = vpop.f32.mrb[0].mxu0
        %v2111 = vadd.f32 %v371, %v2110
        %v2112 = vpop.f32.mrb[0].mxu0
        %v2113 = vadd.f32 %v367, %v2112
        %v2114 = vpop.f32.mrb[0].mxu0
        %v2115 = vadd.f32 %v371, %v2114
        %2116 = vmatprep.mubr.bf16.mxu0 0
        %2117 = vmatmul.mubr.bf16.gmra.mrb[0].mxu0 %v620
        %v2118 = vpop.f32.mrb[0].mxu0
        %v2119 = vadd.f32 %v367, %v2118
        %v2120 = vpop.f32.mrb[0].mxu0
        %v2121 = vadd.f32 %v371, %v2120
        %v2122 = vpop.f32.mrb[0].mxu0
        %v2123 = vadd.f32 %v367, %v2122
        %v2124 = vpop.f32.mrb[0].mxu0
        %v2125 = vadd.f32 %v371, %v2124
        %2126 = vmatprep.mubr.bf16.mxu0 0
        %2127 = vmatmul.mubr.bf16.gmra.mrb[0].mxu0 %v623
        %v2128 = vpop.f32.mrb[0].mxu0
        %v2129 = vadd.f32 %v367, %v2128
        %v2130 = vpop.f32.mrb[0].mxu0
        %v2131 = vadd.f32 %v371, %v2130
        %v2132 = vpop.f32.mrb[0].mxu0
        %v2133 = vadd.f32 %v367, %v2132
        %v2134 = vpop.f32.mrb[0].mxu0
        %v2135 = vadd.f32 %v371, %v2134
        %2136 = vmatprep.mubr.bf16.mxu0 0
        %2137 = vmatmul.mubr.bf16.gmra.mrb[0].mxu0 %v626
        %v2138 = vpop.f32.mrb[0].mxu0
        %v2139 = vadd.f32 %v367, %v2138
        %v2140 = vpop.f32.mrb[0].mxu0
        %v2141 = vadd.f32 %v371, %v2140
        %v2142 = vpop.f32.mrb[0].mxu0
        %v2143 = vadd.f32 %v367, %v2142
        %v2144 = vpop.f32.mrb[0].mxu0
        %v2145 = vadd.f32 %v371, %v2144
        %2146 = vmatprep.mubr.bf16.mxu0 0
        %2147 = vmatmul.mubr.bf16.gmra.mrb[0].mxu0 %v629
        %v2148 = vpop.f32.mrb[0].mxu0
        %v2149 = vadd.f32 %v367, %v2148
        %v2150 = vpop.f32.mrb[0].mxu0
        %v2151 = vadd.f32 %v371, %v2150
        %v2152 = vpop.f32.mrb[0].mxu0
        %v2153 = vadd.f32 %v367, %v2152
        %v2154 = vpop.f32.mrb[0].mxu0
        %v2155 = vadd.f32 %v371, %v2154
        %2156 = vmatprep.mubr.bf16.mxu0 0
        %2157 = vmatmul.mubr.bf16.gmra.mrb[0].mxu0 %v632
        %v2158 = vpop.f32.mrb[0].mxu0
        %v2159 = vadd.f32 %v367, %v2158
        %v2160 = vpop.f32.mrb[0].mxu0
        %v2161 = vadd.f32 %v371, %v2160
        %v2162 = vpop.f32.mrb[0].mxu0
        %v2163 = vadd.f32 %v367, %v2162
        %v2164 = vpop.f32.mrb[0].mxu0
        %v2165 = vadd.f32 %v371, %v2164
        %2166 = vmatprep.mubr.bf16.mxu0 0
        %2167 = vmatmul.mubr.bf16.gmra.mrb[0].mxu0 %v635
        %v2168 = vpop.f32.mrb[0].mxu0
        %v2169 = vadd.f32 %v367, %v2168
        %v2170 = vpop.f32.mrb[0].mxu0
        %v2171 = vadd.f32 %v371, %v2170
        %v2172 = vpop.f32.mrb[0].mxu0
        %v2173 = vadd.f32 %v367, %v2172
        %v2174 = vpop.f32.mrb[0].mxu0
        %v2175 = vadd.f32 %v371, %v2174
        %2176 = vmatprep.mubr.bf16.mxu0 0
        %2177 = vmatmul.mubr.bf16.gmra.mrb[0].mxu0 %v638
        %v2178 = vpop.f32.mrb[0].mxu0
        %v2179 = vadd.f32 %v367, %v2178
        %v2180 = vpop.f32.mrb[0].mxu0
        %v2181 = vadd.f32 %v371, %v2180
        %v2182 = vpop.f32.mrb[0].mxu0
        %v2183 = vadd.f32 %v367, %v2182
        %v2184 = vpop.f32.mrb[0].mxu0
        %v2185 = vadd.f32 %v371, %v2184
        %2186 = vmatprep.mubr.bf16.mxu0 0
        %2187 = vmatmul.mubr.bf16.gmra.mrb[0].mxu0 %v641
        %v2188 = vpop.f32.mrb[0].mxu0
        %v2189 = vadd.f32 %v367, %v2188
        %v2190 = vpop.f32.mrb[0].mxu0
        %v2191 = vadd.f32 %v371, %v2190
        %v2192 = vpop.f32.mrb[0].mxu0
        %v2193 = vadd.f32 %v367, %v2192
        %v2194 = vpop.f32.mrb[0].mxu0
        %v2195 = vadd.f32 %v371, %v2194
        %2196 = vmatprep.mubr.bf16.mxu0 0
        %2197 = vmatmul.mubr.bf16.gmra.mrb[0].mxu0 %v644
        %v2198 = vpop.f32.mrb[0].mxu0
        %v2199 = vadd.f32 %v367, %v2198
        %v2200 = vpop.f32.mrb[0].mxu0
        %v2201 = vadd.f32 %v371, %v2200
        %v2202 = vpop.f32.mrb[0].mxu0
        %v2203 = vadd.f32 %v367, %v2202
        %v2204 = vpop.f32.mrb[0].mxu0
        %v2205 = vadd.f32 %v371, %v2204
        %2206 = vmatprep.mubr.bf16.mxu0 0
        %2207 = vmatmul.mubr.bf16.gmra.mrb[0].mxu0 %v647
        %v2208 = vpop.f32.mrb[0].mxu0
        %v2209 = vadd.f32 %v367, %v2208
        %v2210 = vpop.f32.mrb[0].mxu0
        %v2211 = vadd.f32 %v371, %v2210
        %v2212 = vpop.f32.mrb[0].mxu0
        %v2213 = vadd.f32 %v367, %v2212
        %v2214 = vpop.f32.mrb[0].mxu0
        %v2215 = vadd.f32 %v371, %v2214
        %2216 = vmatprep.mubr.bf16.mxu0 0
        %2217 = vmatmul.mubr.bf16.gmra.mrb[0].mxu0 %v650
        %v2218 = vpop.f32.mrb[0].mxu0
        %v2219 = vadd.f32 %v367, %v2218
        %v2220 = vpop.f32.mrb[0].mxu0
        %v2221 = vadd.f32 %v371, %v2220
        %v2222 = vpop.f32.mrb[0].mxu0
        %v2223 = vadd.f32 %v367, %v2222
        %v2224 = vpop.f32.mrb[0].mxu0
        %v2225 = vadd.f32 %v371, %v2224
        %2226 = vmatprep.mubr.bf16.mxu0 0
        %2227 = vmatmul.mubr.bf16.gmra.mrb[0].mxu0 %v653
        %v2228 = vpop.f32.mrb[0].mxu0
        %v2229 = vadd.f32 %v367, %v2228
        %v2230 = vpop.f32.mrb[0].mxu0
        %v2231 = vadd.f32 %v371, %v2230
        %v2232 = vpop.f32.mrb[0].mxu0
        %v2233 = vadd.f32 %v367, %v2232
        %v2234 = vpop.f32.mrb[0].mxu0
        %v2235 = vadd.f32 %v371, %v2234
        %2236 = vmatprep.mubr.bf16.mxu0 0
        %2237 = vmatmul.mubr.bf16.gmra.mrb[0].mxu0 %v656
        %v2238 = vpop.f32.mrb[0].mxu0
        %v2239 = vadd.f32 %v367, %v2238
        %v2240 = vpop.f32.mrb[0].mxu0
        %v2241 = vadd.f32 %v371, %v2240
        %v2242 = vpop.f32.mrb[0].mxu0
        %v2243 = vadd.f32 %v367, %v2242
        %v2244 = vpop.f32.mrb[0].mxu0
        %v2245 = vadd.f32 %v371, %v2244
        %2246 = vmatprep.mubr.bf16.mxu0 0
        %2247 = vmatmul.mubr.bf16.gmra.mrb[0].mxu0 %v659
        %v2248 = vpop.f32.mrb[0].mxu0
        %v2249 = vadd.f32 %v367, %v2248
        %v2250 = vpop.f32.mrb[0].mxu0
        %v2251 = vadd.f32 %v371, %v2250
        %v2252 = vpop.f32.mrb[0].mxu0
        %v2253 = vadd.f32 %v367, %v2252
        %v2254 = vpop.f32.mrb[0].mxu0
        %v2255 = vadd.f32 %v371, %v2254
        %2256 = vdwg.mxu0
        %v2257 = vmax.f32 %v748, 0.0
        %v2258 = vmax.f32 %v750, 0.0
        %v2259 = vmax.f32 %v941, 0.0
        %v2260 = vmax.f32 %v943, 0.0
        %v2261 = vmax.f32 %v1134, 0.0
        %v2262 = vmax.f32 %v1136, 0.0
        %v2263 = vmax.f32 %v1327, 0.0
        %v2264 = vmax.f32 %v1329, 0.0
        %v2265 = vmax.f32 %v1520, 0.0
        %v2266 = vmax.f32 %v1522, 0.0
        %v2267 = vmax.f32 %v1713, 0.0
        %v2268 = vmax.f32 %v1715, 0.0
        %v2269 = vmax.f32 %v1906, 0.0
        %v2270 = vmax.f32 %v1908, 0.0
        %v2271 = vmax.f32 %v2099, 0.0
        %v2272 = vmax.f32 %v2101, 0.0
        %v2273 = vmax.f32 %v752, 0.0
        %v2274 = vmax.f32 %v754, 0.0
        %v2275 = vmax.f32 %v945, 0.0
        %v2276 = vmax.f32 %v947, 0.0
        %v2277 = vmax.f32 %v1138, 0.0
        %v2278 = vmax.f32 %v1140, 0.0
        %v2279 = vmax.f32 %v1331, 0.0
        %v2280 = vmax.f32 %v1333, 0.0
        %v2281 = vmax.f32 %v1524, 0.0
        %v2282 = vmax.f32 %v1526, 0.0
        %v2283 = vmax.f32 %v1717, 0.0
        %v2284 = vmax.f32 %v1719, 0.0
        %v2285 = vmax.f32 %v1910, 0.0
        %v2286 = vmax.f32 %v1912, 0.0
        %v2287 = vmax.f32 %v2103, 0.0
        %v2288 = vmax.f32 %v2105, 0.0
        %v2289 = vmax.f32 %v758, 0.0
        %v2290 = vmax.f32 %v760, 0.0
        %v2291 = vmax.f32 %v951, 0.0
        %v2292 = vmax.f32 %v953, 0.0
        %v2293 = vmax.f32 %v1144, 0.0
        %v2294 = vmax.f32 %v1146, 0.0
        %v2295 = vmax.f32 %v1337, 0.0
        %v2296 = vmax.f32 %v1339, 0.0
        %v2297 = vmax.f32 %v1530, 0.0
        %v2298 = vmax.f32 %v1532, 0.0
        %v2299 = vmax.f32 %v1723, 0.0
        %v2300 = vmax.f32 %v1725, 0.0
        %v2301 = vmax.f32 %v1916, 0.0
        %v2302 = vmax.f32 %v1918, 0.0
        %v2303 = vmax.f32 %v2109, 0.0
        %v2304 = vmax.f32 %v2111, 0.0
        %v2305 = vmax.f32 %v762, 0.0
        %v2306 = vmax.f32 %v764, 0.0
        %v2307 = vmax.f32 %v955, 0.0
        %v2308 = vmax.f32 %v957, 0.0
        %v2309 = vmax.f32 %v1148, 0.0
        %v2310 = vmax.f32 %v1150, 0.0
        %v2311 = vmax.f32 %v1341, 0.0
        %v2312 = vmax.f32 %v1343, 0.0
        %v2313 = vmax.f32 %v1534, 0.0
        %v2314 = vmax.f32 %v1536, 0.0
        %v2315 = vmax.f32 %v1727, 0.0
        %v2316 = vmax.f32 %v1729, 0.0
        %v2317 = vmax.f32 %v1920, 0.0
        %v2318 = vmax.f32 %v1922, 0.0
        %v2319 = vmax.f32 %v2113, 0.0
        %v2320 = vmax.f32 %v2115, 0.0
        %v2321 = vmax.f32 %v768, 0.0
        %v2322 = vmax.f32 %v770, 0.0
        %v2323 = vmax.f32 %v961, 0.0
        %v2324 = vmax.f32 %v963, 0.0
        %v2325 = vmax.f32 %v1154, 0.0
        %v2326 = vmax.f32 %v1156, 0.0
        %v2327 = vmax.f32 %v1347, 0.0
        %v2328 = vmax.f32 %v1349, 0.0
        %v2329 = vmax.f32 %v1540, 0.0
        %v2330 = vmax.f32 %v1542, 0.0
        %v2331 = vmax.f32 %v1733, 0.0
        %v2332 = vmax.f32 %v1735, 0.0
        %v2333 = vmax.f32 %v1926, 0.0
        %v2334 = vmax.f32 %v1928, 0.0
        %v2335 = vmax.f32 %v2119, 0.0
        %v2336 = vmax.f32 %v2121, 0.0
        %v2337 = vmax.f32 %v772, 0.0
        %v2338 = vmax.f32 %v774, 0.0
        %v2339 = vmax.f32 %v965, 0.0
        %v2340 = vmax.f32 %v967, 0.0
        %v2341 = vmax.f32 %v1158, 0.0
        %v2342 = vmax.f32 %v1160, 0.0
        %v2343 = vmax.f32 %v1351, 0.0
        %v2344 = vmax.f32 %v1353, 0.0
        %v2345 = vmax.f32 %v1544, 0.0
        %v2346 = vmax.f32 %v1546, 0.0
        %v2347 = vmax.f32 %v1737, 0.0
        %v2348 = vmax.f32 %v1739, 0.0
        %v2349 = vmax.f32 %v1930, 0.0
        %v2350 = vmax.f32 %v1932, 0.0
        %v2351 = vmax.f32 %v2123, 0.0
        %v2352 = vmax.f32 %v2125, 0.0
        %v2353 = vmax.f32 %v778, 0.0
        %v2354 = vmax.f32 %v780, 0.0
        %v2355 = vmax.f32 %v971, 0.0
        %v2356 = vmax.f32 %v973, 0.0
        %v2357 = vmax.f32 %v1164, 0.0
        %v2358 = vmax.f32 %v1166, 0.0
        %v2359 = vmax.f32 %v1357, 0.0
        %v2360 = vmax.f32 %v1359, 0.0
        %v2361 = vmax.f32 %v1550, 0.0
        %v2362 = vmax.f32 %v1552, 0.0
        %v2363 = vmax.f32 %v1743, 0.0
        %v2364 = vmax.f32 %v1745, 0.0
        %v2365 = vmax.f32 %v1936, 0.0
        %v2366 = vmax.f32 %v1938, 0.0
        %v2367 = vmax.f32 %v2129, 0.0
        %v2368 = vmax.f32 %v2131, 0.0
        %v2369 = vmax.f32 %v782, 0.0
        %v2370 = vmax.f32 %v784, 0.0
        %v2371 = vmax.f32 %v975, 0.0
        %v2372 = vmax.f32 %v977, 0.0
        %v2373 = vmax.f32 %v1168, 0.0
        %v2374 = vmax.f32 %v1170, 0.0
        %v2375 = vmax.f32 %v1361, 0.0
        %v2376 = vmax.f32 %v1363, 0.0
        %v2377 = vmax.f32 %v1554, 0.0
        %v2378 = vmax.f32 %v1556, 0.0
        %v2379 = vmax.f32 %v1747, 0.0
        %v2380 = vmax.f32 %v1749, 0.0
        %v2381 = vmax.f32 %v1940, 0.0
        %v2382 = vmax.f32 %v1942, 0.0
        %v2383 = vmax.f32 %v2133, 0.0
        %v2384 = vmax.f32 %v2135, 0.0
        %v2385 = vmax.f32 %v788, 0.0
        %v2386 = vmax.f32 %v790, 0.0
        %v2387 = vmax.f32 %v981, 0.0
        %v2388 = vmax.f32 %v983, 0.0
        %v2389 = vmax.f32 %v1174, 0.0
        %v2390 = vmax.f32 %v1176, 0.0
        %v2391 = vmax.f32 %v1367, 0.0
        %v2392 = vmax.f32 %v1369, 0.0
        %v2393 = vmax.f32 %v1560, 0.0
        %v2394 = vmax.f32 %v1562, 0.0
        %v2395 = vmax.f32 %v1753, 0.0
        %v2396 = vmax.f32 %v1755, 0.0
        %v2397 = vmax.f32 %v1946, 0.0
        %v2398 = vmax.f32 %v1948, 0.0
        %v2399 = vmax.f32 %v2139, 0.0
        %v2400 = vmax.f32 %v2141, 0.0
        %v2401 = vmax.f32 %v792, 0.0
        %v2402 = vmax.f32 %v794, 0.0
        %v2403 = vmax.f32 %v985, 0.0
        %v2404 = vmax.f32 %v987, 0.0
        %v2405 = vmax.f32 %v1178, 0.0
        %v2406 = vmax.f32 %v1180, 0.0
        %v2407 = vmax.f32 %v1371, 0.0
        %v2408 = vmax.f32 %v1373, 0.0
        %v2409 = vmax.f32 %v1564, 0.0
        %v2410 = vmax.f32 %v1566, 0.0
        %v2411 = vmax.f32 %v1757, 0.0
        %v2412 = vmax.f32 %v1759, 0.0
        %v2413 = vmax.f32 %v1950, 0.0
        %v2414 = vmax.f32 %v1952, 0.0
        %v2415 = vmax.f32 %v2143, 0.0
        %v2416 = vmax.f32 %v2145, 0.0
        %v2417 = vmax.f32 %v798, 0.0
        %v2418 = vmax.f32 %v800, 0.0
        %v2419 = vmax.f32 %v991, 0.0
        %v2420 = vmax.f32 %v993, 0.0
        %v2421 = vmax.f32 %v1184, 0.0
        %v2422 = vmax.f32 %v1186, 0.0
        %v2423 = vmax.f32 %v1377, 0.0
        %v2424 = vmax.f32 %v1379, 0.0
        %v2425 = vmax.f32 %v1570, 0.0
        %v2426 = vmax.f32 %v1572, 0.0
        %v2427 = vmax.f32 %v1763, 0.0
        %v2428 = vmax.f32 %v1765, 0.0
        %v2429 = vmax.f32 %v1956, 0.0
        %v2430 = vmax.f32 %v1958, 0.0
        %v2431 = vmax.f32 %v2149, 0.0
        %v2432 = vmax.f32 %v2151, 0.0
        %v2433 = vmax.f32 %v802, 0.0
        %v2434 = vmax.f32 %v804, 0.0
        %v2435 = vmax.f32 %v995, 0.0
        %v2436 = vmax.f32 %v997, 0.0
        %v2437 = vmax.f32 %v1188, 0.0
        %v2438 = vmax.f32 %v1190, 0.0
        %v2439 = vmax.f32 %v1381, 0.0
        %v2440 = vmax.f32 %v1383, 0.0
        %v2441 = vmax.f32 %v1574, 0.0
        %v2442 = vmax.f32 %v1576, 0.0
        %v2443 = vmax.f32 %v1767, 0.0
        %v2444 = vmax.f32 %v1769, 0.0
        %v2445 = vmax.f32 %v1960, 0.0
        %v2446 = vmax.f32 %v1962, 0.0
        %v2447 = vmax.f32 %v2153, 0.0
        %v2448 = vmax.f32 %v2155, 0.0
        %v2449 = vmax.f32 %v808, 0.0
        %v2450 = vmax.f32 %v810, 0.0
        %v2451 = vmax.f32 %v1001, 0.0
        %v2452 = vmax.f32 %v1003, 0.0
        %v2453 = vmax.f32 %v1194, 0.0
        %v2454 = vmax.f32 %v1196, 0.0
        %v2455 = vmax.f32 %v1387, 0.0
        %v2456 = vmax.f32 %v1389, 0.0
        %v2457 = vmax.f32 %v1580, 0.0
        %v2458 = vmax.f32 %v1582, 0.0
        %v2459 = vmax.f32 %v1773, 0.0
        %v2460 = vmax.f32 %v1775, 0.0
        %v2461 = vmax.f32 %v1966, 0.0
        %v2462 = vmax.f32 %v1968, 0.0
        %v2463 = vmax.f32 %v2159, 0.0
        %v2464 = vmax.f32 %v2161, 0.0
        %v2465 = vmax.f32 %v812, 0.0
        %v2466 = vmax.f32 %v814, 0.0
        %v2467 = vmax.f32 %v1005, 0.0
        %v2468 = vmax.f32 %v1007, 0.0
        %v2469 = vmax.f32 %v1198, 0.0
        %v2470 = vmax.f32 %v1200, 0.0
        %v2471 = vmax.f32 %v1391, 0.0
        %v2472 = vmax.f32 %v1393, 0.0
        %v2473 = vmax.f32 %v1584, 0.0
        %v2474 = vmax.f32 %v1586, 0.0
        %v2475 = vmax.f32 %v1777, 0.0
        %v2476 = vmax.f32 %v1779, 0.0
        %v2477 = vmax.f32 %v1970, 0.0
        %v2478 = vmax.f32 %v1972, 0.0
        %v2479 = vmax.f32 %v2163, 0.0
        %v2480 = vmax.f32 %v2165, 0.0
        %v2481 = vmax.f32 %v818, 0.0
        %v2482 = vmax.f32 %v820, 0.0
        %v2483 = vmax.f32 %v1011, 0.0
        %v2484 = vmax.f32 %v1013, 0.0
        %v2485 = vmax.f32 %v1204, 0.0
        %v2486 = vmax.f32 %v1206, 0.0
        %v2487 = vmax.f32 %v1397, 0.0
        %v2488 = vmax.f32 %v1399, 0.0
        %v2489 = vmax.f32 %v1590, 0.0
        %v2490 = vmax.f32 %v1592, 0.0
        %v2491 = vmax.f32 %v1783, 0.0
        %v2492 = vmax.f32 %v1785, 0.0
        %v2493 = vmax.f32 %v1976, 0.0
        %v2494 = vmax.f32 %v1978, 0.0
        %v2495 = vmax.f32 %v2169, 0.0
        %v2496 = vmax.f32 %v2171, 0.0
        %v2497 = vmax.f32 %v822, 0.0
        %v2498 = vmax.f32 %v824, 0.0
        %v2499 = vmax.f32 %v1015, 0.0
        %v2500 = vmax.f32 %v1017, 0.0
        %v2501 = vmax.f32 %v1208, 0.0
        %v2502 = vmax.f32 %v1210, 0.0
        %v2503 = vmax.f32 %v1401, 0.0
        %v2504 = vmax.f32 %v1403, 0.0
        %v2505 = vmax.f32 %v1594, 0.0
        %v2506 = vmax.f32 %v1596, 0.0
        %v2507 = vmax.f32 %v1787, 0.0
        %v2508 = vmax.f32 %v1789, 0.0
        %v2509 = vmax.f32 %v1980, 0.0
        %v2510 = vmax.f32 %v1982, 0.0
        %v2511 = vmax.f32 %v2173, 0.0
        %v2512 = vmax.f32 %v2175, 0.0
        %v2513 = vmax.f32 %v828, 0.0
        %v2514 = vmax.f32 %v830, 0.0
        %v2515 = vmax.f32 %v1021, 0.0
        %v2516 = vmax.f32 %v1023, 0.0
        %v2517 = vmax.f32 %v1214, 0.0
        %v2518 = vmax.f32 %v1216, 0.0
        %v2519 = vmax.f32 %v1407, 0.0
        %v2520 = vmax.f32 %v1409, 0.0
        %v2521 = vmax.f32 %v1600, 0.0
        %v2522 = vmax.f32 %v1602, 0.0
        %v2523 = vmax.f32 %v1793, 0.0
        %v2524 = vmax.f32 %v1795, 0.0
        %v2525 = vmax.f32 %v1986, 0.0
        %v2526 = vmax.f32 %v1988, 0.0
        %v2527 = vmax.f32 %v2179, 0.0
        %v2528 = vmax.f32 %v2181, 0.0
        %v2529 = vmax.f32 %v832, 0.0
        %v2530 = vmax.f32 %v834, 0.0
        %v2531 = vmax.f32 %v1025, 0.0
        %v2532 = vmax.f32 %v1027, 0.0
        %v2533 = vmax.f32 %v1218, 0.0
        %v2534 = vmax.f32 %v1220, 0.0
        %v2535 = vmax.f32 %v1411, 0.0
        %v2536 = vmax.f32 %v1413, 0.0
        %v2537 = vmax.f32 %v1604, 0.0
        %v2538 = vmax.f32 %v1606, 0.0
        %v2539 = vmax.f32 %v1797, 0.0
        %v2540 = vmax.f32 %v1799, 0.0
        %v2541 = vmax.f32 %v1990, 0.0
        %v2542 = vmax.f32 %v1992, 0.0
        %v2543 = vmax.f32 %v2183, 0.0
        %v2544 = vmax.f32 %v2185, 0.0
        %v2545 = vmax.f32 %v838, 0.0
        %v2546 = vmax.f32 %v840, 0.0
        %v2547 = vmax.f32 %v1031, 0.0
        %v2548 = vmax.f32 %v1033, 0.0
        %v2549 = vmax.f32 %v1224, 0.0
        %v2550 = vmax.f32 %v1226, 0.0
        %v2551 = vmax.f32 %v1417, 0.0
        %v2552 = vmax.f32 %v1419, 0.0
        %v2553 = vmax.f32 %v1610, 0.0
        %v2554 = vmax.f32 %v1612, 0.0
        %v2555 = vmax.f32 %v1803, 0.0
        %v2556 = vmax.f32 %v1805, 0.0
        %v2557 = vmax.f32 %v1996, 0.0
        %v2558 = vmax.f32 %v1998, 0.0
        %v2559 = vmax.f32 %v2189, 0.0
        %v2560 = vmax.f32 %v2191, 0.0
        %v2561 = vmax.f32 %v842, 0.0
        %v2562 = vmax.f32 %v844, 0.0
        %v2563 = vmax.f32 %v1035, 0.0
        %v2564 = vmax.f32 %v1037, 0.0
        %v2565 = vmax.f32 %v1228, 0.0
        %v2566 = vmax.f32 %v1230, 0.0
        %v2567 = vmax.f32 %v1421, 0.0
        %v2568 = vmax.f32 %v1423, 0.0
        %v2569 = vmax.f32 %v1614, 0.0
        %v2570 = vmax.f32 %v1616, 0.0
        %v2571 = vmax.f32 %v1807, 0.0
        %v2572 = vmax.f32 %v1809, 0.0
        %v2573 = vmax.f32 %v2000, 0.0
        %v2574 = vmax.f32 %v2002, 0.0
        %v2575 = vmax.f32 %v2193, 0.0
        %v2576 = vmax.f32 %v2195, 0.0
        %v2577 = vmax.f32 %v848, 0.0
        %v2578 = vmax.f32 %v850, 0.0
        %v2579 = vmax.f32 %v1041, 0.0
        %v2580 = vmax.f32 %v1043, 0.0
        %v2581 = vmax.f32 %v1234, 0.0
        %v2582 = vmax.f32 %v1236, 0.0
        %v2583 = vmax.f32 %v1427, 0.0
        %v2584 = vmax.f32 %v1429, 0.0
        %v2585 = vmax.f32 %v1620, 0.0
        %v2586 = vmax.f32 %v1622, 0.0
        %v2587 = vmax.f32 %v1813, 0.0
        %v2588 = vmax.f32 %v1815, 0.0
        %v2589 = vmax.f32 %v2006, 0.0
        %v2590 = vmax.f32 %v2008, 0.0
        %v2591 = vmax.f32 %v2199, 0.0
        %v2592 = vmax.f32 %v2201, 0.0
        %v2593 = vmax.f32 %v852, 0.0
        %v2594 = vmax.f32 %v854, 0.0
        %v2595 = vmax.f32 %v1045, 0.0
        %v2596 = vmax.f32 %v1047, 0.0
        %v2597 = vmax.f32 %v1238, 0.0
        %v2598 = vmax.f32 %v1240, 0.0
        %v2599 = vmax.f32 %v1431, 0.0
        %v2600 = vmax.f32 %v1433, 0.0
        %v2601 = vmax.f32 %v1624, 0.0
        %v2602 = vmax.f32 %v1626, 0.0
        %v2603 = vmax.f32 %v1817, 0.0
        %v2604 = vmax.f32 %v1819, 0.0
        %v2605 = vmax.f32 %v2010, 0.0
        %v2606 = vmax.f32 %v2012, 0.0
        %v2607 = vmax.f32 %v2203, 0.0
        %v2608 = vmax.f32 %v2205, 0.0
        %v2609 = vmax.f32 %v858, 0.0
        %v2610 = vmax.f32 %v860, 0.0
        %v2611 = vmax.f32 %v1051, 0.0
        %v2612 = vmax.f32 %v1053, 0.0
        %v2613 = vmax.f32 %v1244, 0.0
        %v2614 = vmax.f32 %v1246, 0.0
        %v2615 = vmax.f32 %v1437, 0.0
        %v2616 = vmax.f32 %v1439, 0.0
        %v2617 = vmax.f32 %v1630, 0.0
        %v2618 = vmax.f32 %v1632, 0.0
        %v2619 = vmax.f32 %v1823, 0.0
        %v2620 = vmax.f32 %v1825, 0.0
        %v2621 = vmax.f32 %v2016, 0.0
        %v2622 = vmax.f32 %v2018, 0.0
        %v2623 = vmax.f32 %v2209, 0.0
        %v2624 = vmax.f32 %v2211, 0.0
        %v2625 = vmax.f32 %v862, 0.0
        %v2626 = vmax.f32 %v864, 0.0
        %v2627 = vmax.f32 %v1055, 0.0
        %v2628 = vmax.f32 %v1057, 0.0
        %v2629 = vmax.f32 %v1248, 0.0
        %v2630 = vmax.f32 %v1250, 0.0
        %v2631 = vmax.f32 %v1441, 0.0
        %v2632 = vmax.f32 %v1443, 0.0
        %v2633 = vmax.f32 %v1634, 0.0
        %v2634 = vmax.f32 %v1636, 0.0
        %v2635 = vmax.f32 %v1827, 0.0
        %v2636 = vmax.f32 %v1829, 0.0
        %v2637 = vmax.f32 %v2020, 0.0
        %v2638 = vmax.f32 %v2022, 0.0
        %v2639 = vmax.f32 %v2213, 0.0
        %v2640 = vmax.f32 %v2215, 0.0
        %v2641 = vmax.f32 %v868, 0.0
        %v2642 = vmax.f32 %v870, 0.0
        %v2643 = vmax.f32 %v1061, 0.0
        %v2644 = vmax.f32 %v1063, 0.0
        %v2645 = vmax.f32 %v1254, 0.0
        %v2646 = vmax.f32 %v1256, 0.0
        %v2647 = vmax.f32 %v1447, 0.0
        %v2648 = vmax.f32 %v1449, 0.0
        %v2649 = vmax.f32 %v1640, 0.0
        %v2650 = vmax.f32 %v1642, 0.0
        %v2651 = vmax.f32 %v1833, 0.0
        %v2652 = vmax.f32 %v1835, 0.0
        %v2653 = vmax.f32 %v2026, 0.0
        %v2654 = vmax.f32 %v2028, 0.0
        %v2655 = vmax.f32 %v2219, 0.0
        %v2656 = vmax.f32 %v2221, 0.0
        %v2657 = vmax.f32 %v872, 0.0
        %v2658 = vmax.f32 %v874, 0.0
        %v2659 = vmax.f32 %v1065, 0.0
        %v2660 = vmax.f32 %v1067, 0.0
        %v2661 = vmax.f32 %v1258, 0.0
        %v2662 = vmax.f32 %v1260, 0.0
        %v2663 = vmax.f32 %v1451, 0.0
        %v2664 = vmax.f32 %v1453, 0.0
        %v2665 = vmax.f32 %v1644, 0.0
        %v2666 = vmax.f32 %v1646, 0.0
        %v2667 = vmax.f32 %v1837, 0.0
        %v2668 = vmax.f32 %v1839, 0.0
        %v2669 = vmax.f32 %v2030, 0.0
        %v2670 = vmax.f32 %v2032, 0.0
        %v2671 = vmax.f32 %v2223, 0.0
        %v2672 = vmax.f32 %v2225, 0.0
        %v2673 = vmax.f32 %v878, 0.0
        %v2674 = vmax.f32 %v880, 0.0
        %v2675 = vmax.f32 %v1071, 0.0
        %v2676 = vmax.f32 %v1073, 0.0
        %v2677 = vmax.f32 %v1264, 0.0
        %v2678 = vmax.f32 %v1266, 0.0
        %v2679 = vmax.f32 %v1457, 0.0
        %v2680 = vmax.f32 %v1459, 0.0
        %v2681 = vmax.f32 %v1650, 0.0
        %v2682 = vmax.f32 %v1652, 0.0
        %v2683 = vmax.f32 %v1843, 0.0
        %v2684 = vmax.f32 %v1845, 0.0
        %v2685 = vmax.f32 %v2036, 0.0
        %v2686 = vmax.f32 %v2038, 0.0
        %v2687 = vmax.f32 %v2229, 0.0
        %v2688 = vmax.f32 %v2231, 0.0
        %v2689 = vmax.f32 %v882, 0.0
        %v2690 = vmax.f32 %v884, 0.0
        %v2691 = vmax.f32 %v1075, 0.0
        %v2692 = vmax.f32 %v1077, 0.0
        %v2693 = vmax.f32 %v1268, 0.0
        %v2694 = vmax.f32 %v1270, 0.0
        %v2695 = vmax.f32 %v1461, 0.0
        %v2696 = vmax.f32 %v1463, 0.0
        %v2697 = vmax.f32 %v1654, 0.0
        %v2698 = vmax.f32 %v1656, 0.0
        %v2699 = vmax.f32 %v1847, 0.0
        %v2700 = vmax.f32 %v1849, 0.0
        %v2701 = vmax.f32 %v2040, 0.0
        %v2702 = vmax.f32 %v2042, 0.0
        %v2703 = vmax.f32 %v2233, 0.0
        %v2704 = vmax.f32 %v2235, 0.0
        %v2705 = vmax.f32 %v888, 0.0
        %v2706 = vmax.f32 %v890, 0.0
        %v2707 = vmax.f32 %v1081, 0.0
        %v2708 = vmax.f32 %v1083, 0.0
        %v2709 = vmax.f32 %v1274, 0.0
        %v2710 = vmax.f32 %v1276, 0.0
        %v2711 = vmax.f32 %v1467, 0.0
        %v2712 = vmax.f32 %v1469, 0.0
        %v2713 = vmax.f32 %v1660, 0.0
        %v2714 = vmax.f32 %v1662, 0.0
        %v2715 = vmax.f32 %v1853, 0.0
        %v2716 = vmax.f32 %v1855, 0.0
        %v2717 = vmax.f32 %v2046, 0.0
        %v2718 = vmax.f32 %v2048, 0.0
        %v2719 = vmax.f32 %v2239, 0.0
        %v2720 = vmax.f32 %v2241, 0.0
        %v2721 = vmax.f32 %v892, 0.0
        %v2722 = vmax.f32 %v894, 0.0
        %v2723 = vmax.f32 %v1085, 0.0
        %v2724 = vmax.f32 %v1087, 0.0
        %v2725 = vmax.f32 %v1278, 0.0
        %v2726 = vmax.f32 %v1280, 0.0
        %v2727 = vmax.f32 %v1471, 0.0
        %v2728 = vmax.f32 %v1473, 0.0
        %v2729 = vmax.f32 %v1664, 0.0
        %v2730 = vmax.f32 %v1666, 0.0
        %v2731 = vmax.f32 %v1857, 0.0
        %v2732 = vmax.f32 %v1859, 0.0
        %v2733 = vmax.f32 %v2050, 0.0
        %v2734 = vmax.f32 %v2052, 0.0
        %v2735 = vmax.f32 %v2243, 0.0
        %v2736 = vmax.f32 %v2245, 0.0
        %v2737 = vmax.f32 %v898, 0.0
        %v2738 = vmax.f32 %v900, 0.0
        %v2739 = vmax.f32 %v1091, 0.0
        %v2740 = vmax.f32 %v1093, 0.0
        %v2741 = vmax.f32 %v1284, 0.0
        %v2742 = vmax.f32 %v1286, 0.0
        %v2743 = vmax.f32 %v1477, 0.0
        %v2744 = vmax.f32 %v1479, 0.0
        %v2745 = vmax.f32 %v1670, 0.0
        %v2746 = vmax.f32 %v1672, 0.0
        %v2747 = vmax.f32 %v1863, 0.0
        %v2748 = vmax.f32 %v1865, 0.0
        %v2749 = vmax.f32 %v2056, 0.0
        %v2750 = vmax.f32 %v2058, 0.0
        %v2751 = vmax.f32 %v2249, 0.0
        %v2752 = vmax.f32 %v2251, 0.0
        %v2753 = vmax.f32 %v902, 0.0
        %v2754 = vmax.f32 %v904, 0.0
        %v2755 = vmax.f32 %v1095, 0.0
        %v2756 = vmax.f32 %v1097, 0.0
        %v2757 = vmax.f32 %v1288, 0.0
        %v2758 = vmax.f32 %v1290, 0.0
        %v2759 = vmax.f32 %v1481, 0.0
        %v2760 = vmax.f32 %v1483, 0.0
        %v2761 = vmax.f32 %v1674, 0.0
        %v2762 = vmax.f32 %v1676, 0.0
        %v2763 = vmax.f32 %v1867, 0.0
        %v2764 = vmax.f32 %v1869, 0.0
        %v2765 = vmax.f32 %v2060, 0.0
        %v2766 = vmax.f32 %v2062, 0.0
        %v2767 = vmax.f32 %v2253, 0.0
        %v2768 = vmax.f32 %v2255, 0.0
        %v2769 = vld [vmem:[#allocation2] sm:$0xff]
        %v2770 = vld [vmem:[#allocation2 + $0x8] sm:$0xff]
        %v2771 = vadd.f32 %v2257, %v2273
        %v2772 = vadd.f32 %v2771, %v2289
        %v2773 = vadd.f32 %v2772, %v2305
        %v2774 = vadd.f32 %v2773, %v2321
        %v2775 = vadd.f32 %v2774, %v2337
        %v2776 = vadd.f32 %v2775, %v2353
        %v2777 = vadd.f32 %v2776, %v2369
        %v2778 = vadd.f32 %v2777, %v2385
        %v2779 = vadd.f32 %v2778, %v2401
        %v2780 = vadd.f32 %v2779, %v2417
        %v2781 = vadd.f32 %v2780, %v2433
        %v2782 = vadd.f32 %v2781, %v2449
        %v2783 = vadd.f32 %v2782, %v2465
        %v2784 = vadd.f32 %v2783, %v2481
        %v2785 = vadd.f32 %v2784, %v2497
        %v2786 = vadd.f32 %v2785, %v2513
        %v2787 = vadd.f32 %v2786, %v2529
        %v2788 = vadd.f32 %v2787, %v2545
        %v2789 = vadd.f32 %v2788, %v2561
        %v2790 = vadd.f32 %v2789, %v2577
        %v2791 = vadd.f32 %v2790, %v2593
        %v2792 = vadd.f32 %v2791, %v2609
        %v2793 = vadd.f32 %v2792, %v2625
        %v2794 = vadd.f32 %v2793, %v2641
        %v2795 = vadd.f32 %v2794, %v2657
        %v2796 = vadd.f32 %v2795, %v2673
        %v2797 = vadd.f32 %v2796, %v2689
        %v2798 = vadd.f32 %v2797, %v2705
        %v2799 = vadd.f32 %v2798, %v2721
        %v2800 = vadd.f32 %v2799, %v2737
        %v2801 = vadd.f32 %v2800, %v2753
        %v2802 = vrot.slane %v2801, 4
        %v2803 = vadd.f32 %v2801, %v2802
        %v2804 = vrot.slane %v2803, 2
        %v2805 = vadd.f32 %v2803, %v2804
        %v2806 = vrot.slane %v2805, 1
        %v2807 = vadd.f32 %v2805, %v2806
        %v2808 = vadd.f32 %v2258, %v2274
        %v2809 = vadd.f32 %v2808, %v2290
        %v2810 = vadd.f32 %v2809, %v2306
        %v2811 = vadd.f32 %v2810, %v2322
        %v2812 = vadd.f32 %v2811, %v2338
        %v2813 = vadd.f32 %v2812, %v2354
        %v2814 = vadd.f32 %v2813, %v2370
        %v2815 = vadd.f32 %v2814, %v2386
        %v2816 = vadd.f32 %v2815, %v2402
        %v2817 = vadd.f32 %v2816, %v2418
        %v2818 = vadd.f32 %v2817, %v2434
        %v2819 = vadd.f32 %v2818, %v2450
        %v2820 = vadd.f32 %v2819, %v2466
        %v2821 = vadd.f32 %v2820, %v2482
        %v2822 = vadd.f32 %v2821, %v2498
        %v2823 = vadd.f32 %v2822, %v2514
        %v2824 = vadd.f32 %v2823, %v2530
        %v2825 = vadd.f32 %v2824, %v2546
        %v2826 = vadd.f32 %v2825, %v2562
        %v2827 = vadd.f32 %v2826, %v2578
        %v2828 = vadd.f32 %v2827, %v2594
        %v2829 = vadd.f32 %v2828, %v2610
        %v2830 = vadd.f32 %v2829, %v2626
        %v2831 = vadd.f32 %v2830, %v2642
        %v2832 = vadd.f32 %v2831, %v2658
        %v2833 = vadd.f32 %v2832, %v2674
        %v2834 = vadd.f32 %v2833, %v2690
        %v2835 = vadd.f32 %v2834, %v2706
        %v2836 = vadd.f32 %v2835, %v2722
        %v2837 = vadd.f32 %v2836, %v2738
        %v2838 = vadd.f32 %v2837, %v2754
        %v2839 = vrot.slane %v2838, 4
        %v2840 = vadd.f32 %v2838, %v2839
        %v2841 = vrot.slane %v2840, 2
        %v2842 = vadd.f32 %v2840, %v2841
        %v2843 = vrot.slane %v2842, 1
        %v2844 = vadd.f32 %v2842, %v2843
        %v2845 = vadd.f32 %v2259, %v2275
        %v2846 = vadd.f32 %v2845, %v2291
        %v2847 = vadd.f32 %v2846, %v2307
        %v2848 = vadd.f32 %v2847, %v2323
        %v2849 = vadd.f32 %v2848, %v2339
        %v2850 = vadd.f32 %v2849, %v2355
        %v2851 = vadd.f32 %v2850, %v2371
        %v2852 = vadd.f32 %v2851, %v2387
        %v2853 = vadd.f32 %v2852, %v2403
        %v2854 = vadd.f32 %v2853, %v2419
        %v2855 = vadd.f32 %v2854, %v2435
        %v2856 = vadd.f32 %v2855, %v2451
        %v2857 = vadd.f32 %v2856, %v2467
        %v2858 = vadd.f32 %v2857, %v2483
        %v2859 = vadd.f32 %v2858, %v2499
        %v2860 = vadd.f32 %v2859, %v2515
        %v2861 = vadd.f32 %v2860, %v2531
        %v2862 = vadd.f32 %v2861, %v2547
        %v2863 = vadd.f32 %v2862, %v2563
        %v2864 = vadd.f32 %v2863, %v2579
        %v2865 = vadd.f32 %v2864, %v2595
        %v2866 = vadd.f32 %v2865, %v2611
        %v2867 = vadd.f32 %v2866, %v2627
        %v2868 = vadd.f32 %v2867, %v2643
        %v2869 = vadd.f32 %v2868, %v2659
        %v2870 = vadd.f32 %v2869, %v2675
        %v2871 = vadd.f32 %v2870, %v2691
        %v2872 = vadd.f32 %v2871, %v2707
        %v2873 = vadd.f32 %v2872, %v2723
        %v2874 = vadd.f32 %v2873, %v2739
        %v2875 = vadd.f32 %v2874, %v2755
        %v2876 = vrot.slane %v2875, 4
        %v2877 = vadd.f32 %v2875, %v2876
        %v2878 = vrot.slane %v2877, 2
        %v2879 = vadd.f32 %v2877, %v2878
        %v2880 = vrot.slane %v2879, 1
        %v2881 = vadd.f32 %v2879, %v2880
        %v2882 = vadd.f32 %v2260, %v2276
        %v2883 = vadd.f32 %v2882, %v2292
        %v2884 = vadd.f32 %v2883, %v2308
        %v2885 = vadd.f32 %v2884, %v2324
        %v2886 = vadd.f32 %v2885, %v2340
        %v2887 = vadd.f32 %v2886, %v2356
        %v2888 = vadd.f32 %v2887, %v2372
        %v2889 = vadd.f32 %v2888, %v2388
        %v2890 = vadd.f32 %v2889, %v2404
        %v2891 = vadd.f32 %v2890, %v2420
        %v2892 = vadd.f32 %v2891, %v2436
        %v2893 = vadd.f32 %v2892, %v2452
        %v2894 = vadd.f32 %v2893, %v2468
        %v2895 = vadd.f32 %v2894, %v2484
        %v2896 = vadd.f32 %v2895, %v2500
        %v2897 = vadd.f32 %v2896, %v2516
        %v2898 = vadd.f32 %v2897, %v2532
        %v2899 = vadd.f32 %v2898, %v2548
        %v2900 = vadd.f32 %v2899, %v2564
        %v2901 = vadd.f32 %v2900, %v2580
        %v2902 = vadd.f32 %v2901, %v2596
        %v2903 = vadd.f32 %v2902, %v2612
        %v2904 = vadd.f32 %v2903, %v2628
        %v2905 = vadd.f32 %v2904, %v2644
        %v2906 = vadd.f32 %v2905, %v2660
        %v2907 = vadd.f32 %v2906, %v2676
        %v2908 = vadd.f32 %v2907, %v2692
        %v2909 = vadd.f32 %v2908, %v2708
        %v2910 = vadd.f32 %v2909, %v2724
        %v2911 = vadd.f32 %v2910, %v2740
        %v2912 = vadd.f32 %v2911, %v2756
        %v2913 = vrot.slane %v2912, 4
        %v2914 = vadd.f32 %v2912, %v2913
        %v2915 = vrot.slane %v2914, 2
        %v2916 = vadd.f32 %v2914, %v2915
        %v2917 = vrot.slane %v2916, 1
        %v2918 = vadd.f32 %v2916, %v2917
        %v2919 = vadd.f32 %v2261, %v2277
        %v2920 = vadd.f32 %v2919, %v2293
        %v2921 = vadd.f32 %v2920, %v2309
        %v2922 = vadd.f32 %v2921, %v2325
        %v2923 = vadd.f32 %v2922, %v2341
        %v2924 = vadd.f32 %v2923, %v2357
        %v2925 = vadd.f32 %v2924, %v2373
        %v2926 = vadd.f32 %v2925, %v2389
        %v2927 = vadd.f32 %v2926, %v2405
        %v2928 = vadd.f32 %v2927, %v2421
        %v2929 = vadd.f32 %v2928, %v2437
        %v2930 = vadd.f32 %v2929, %v2453
        %v2931 = vadd.f32 %v2930, %v2469
        %v2932 = vadd.f32 %v2931, %v2485
        %v2933 = vadd.f32 %v2932, %v2501
        %v2934 = vadd.f32 %v2933, %v2517
        %v2935 = vadd.f32 %v2934, %v2533
        %v2936 = vadd.f32 %v2935, %v2549
        %v2937 = vadd.f32 %v2936, %v2565
        %v2938 = vadd.f32 %v2937, %v2581
        %v2939 = vadd.f32 %v2938, %v2597
        %v2940 = vadd.f32 %v2939, %v2613
        %v2941 = vadd.f32 %v2940, %v2629
        %v2942 = vadd.f32 %v2941, %v2645
        %v2943 = vadd.f32 %v2942, %v2661
        %v2944 = vadd.f32 %v2943, %v2677
        %v2945 = vadd.f32 %v2944, %v2693
        %v2946 = vadd.f32 %v2945, %v2709
        %v2947 = vadd.f32 %v2946, %v2725
        %v2948 = vadd.f32 %v2947, %v2741
        %v2949 = vadd.f32 %v2948, %v2757
        %v2950 = vrot.slane %v2949, 4
        %v2951 = vadd.f32 %v2949, %v2950
        %v2952 = vrot.slane %v2951, 2
        %v2953 = vadd.f32 %v2951, %v2952
        %v2954 = vrot.slane %v2953, 1
        %v2955 = vadd.f32 %v2953, %v2954
        %v2956 = vadd.f32 %v2262, %v2278
        %v2957 = vadd.f32 %v2956, %v2294
        %v2958 = vadd.f32 %v2957, %v2310
        %v2959 = vadd.f32 %v2958, %v2326
        %v2960 = vadd.f32 %v2959, %v2342
        %v2961 = vadd.f32 %v2960, %v2358
        %v2962 = vadd.f32 %v2961, %v2374
        %v2963 = vadd.f32 %v2962, %v2390
        %v2964 = vadd.f32 %v2963, %v2406
        %v2965 = vadd.f32 %v2964, %v2422
        %v2966 = vadd.f32 %v2965, %v2438
        %v2967 = vadd.f32 %v2966, %v2454
        %v2968 = vadd.f32 %v2967, %v2470
        %v2969 = vadd.f32 %v2968, %v2486
        %v2970 = vadd.f32 %v2969, %v2502
        %v2971 = vadd.f32 %v2970, %v2518
        %v2972 = vadd.f32 %v2971, %v2534
        %v2973 = vadd.f32 %v2972, %v2550
        %v2974 = vadd.f32 %v2973, %v2566
        %v2975 = vadd.f32 %v2974, %v2582
        %v2976 = vadd.f32 %v2975, %v2598
        %v2977 = vadd.f32 %v2976, %v2614
        %v2978 = vadd.f32 %v2977, %v2630
        %v2979 = vadd.f32 %v2978, %v2646
        %v2980 = vadd.f32 %v2979, %v2662
        %v2981 = vadd.f32 %v2980, %v2678
        %v2982 = vadd.f32 %v2981, %v2694
        %v2983 = vadd.f32 %v2982, %v2710
        %v2984 = vadd.f32 %v2983, %v2726
        %v2985 = vadd.f32 %v2984, %v2742
        %v2986 = vadd.f32 %v2985, %v2758
        %v2987 = vrot.slane %v2986, 4
        %v2988 = vadd.f32 %v2986, %v2987
        %v2989 = vrot.slane %v2988, 2
        %v2990 = vadd.f32 %v2988, %v2989
        %v2991 = vrot.slane %v2990, 1
        %v2992 = vadd.f32 %v2990, %v2991
        %v2993 = vadd.f32 %v2263, %v2279
        %v2994 = vadd.f32 %v2993, %v2295
        %v2995 = vadd.f32 %v2994, %v2311
        %v2996 = vadd.f32 %v2995, %v2327
        %v2997 = vadd.f32 %v2996, %v2343
        %v2998 = vadd.f32 %v2997, %v2359
        %v2999 = vadd.f32 %v2998, %v2375
        %v3000 = vadd.f32 %v2999, %v2391
        %v3001 = vadd.f32 %v3000, %v2407
        %v3002 = vadd.f32 %v3001, %v2423
        %v3003 = vadd.f32 %v3002, %v2439
        %v3004 = vadd.f32 %v3003, %v2455
        %v3005 = vadd.f32 %v3004, %v2471
        %v3006 = vadd.f32 %v3005, %v2487
        %v3007 = vadd.f32 %v3006, %v2503
        %v3008 = vadd.f32 %v3007, %v2519
        %v3009 = vadd.f32 %v3008, %v2535
        %v3010 = vadd.f32 %v3009, %v2551
        %v3011 = vadd.f32 %v3010, %v2567
        %v3012 = vadd.f32 %v3011, %v2583
        %v3013 = vadd.f32 %v3012, %v2599
        %v3014 = vadd.f32 %v3013, %v2615
        %v3015 = vadd.f32 %v3014, %v2631
        %v3016 = vadd.f32 %v3015, %v2647
        %v3017 = vadd.f32 %v3016, %v2663
        %v3018 = vadd.f32 %v3017, %v2679
        %v3019 = vadd.f32 %v3018, %v2695
        %v3020 = vadd.f32 %v3019, %v2711
        %v3021 = vadd.f32 %v3020, %v2727
        %v3022 = vadd.f32 %v3021, %v2743
        %v3023 = vadd.f32 %v3022, %v2759
        %v3024 = vrot.slane %v3023, 4
        %v3025 = vadd.f32 %v3023, %v3024
        %v3026 = vrot.slane %v3025, 2
        %v3027 = vadd.f32 %v3025, %v3026
        %v3028 = vrot.slane %v3027, 1
        %v3029 = vadd.f32 %v3027, %v3028
        %v3030 = vadd.f32 %v2264, %v2280
        %v3031 = vadd.f32 %v3030, %v2296
        %v3032 = vadd.f32 %v3031, %v2312
        %v3033 = vadd.f32 %v3032, %v2328
        %v3034 = vadd.f32 %v3033, %v2344
        %v3035 = vadd.f32 %v3034, %v2360
        %v3036 = vadd.f32 %v3035, %v2376
        %v3037 = vadd.f32 %v3036, %v2392
        %v3038 = vadd.f32 %v3037, %v2408
        %v3039 = vadd.f32 %v3038, %v2424
        %v3040 = vadd.f32 %v3039, %v2440
        %v3041 = vadd.f32 %v3040, %v2456
        %v3042 = vadd.f32 %v3041, %v2472
        %v3043 = vadd.f32 %v3042, %v2488
        %v3044 = vadd.f32 %v3043, %v2504
        %v3045 = vadd.f32 %v3044, %v2520
        %v3046 = vadd.f32 %v3045, %v2536
        %v3047 = vadd.f32 %v3046, %v2552
        %v3048 = vadd.f32 %v3047, %v2568
        %v3049 = vadd.f32 %v3048, %v2584
        %v3050 = vadd.f32 %v3049, %v2600
        %v3051 = vadd.f32 %v3050, %v2616
        %v3052 = vadd.f32 %v3051, %v2632
        %v3053 = vadd.f32 %v3052, %v2648
        %v3054 = vadd.f32 %v3053, %v2664
        %v3055 = vadd.f32 %v3054, %v2680
        %v3056 = vadd.f32 %v3055, %v2696
        %v3057 = vadd.f32 %v3056, %v2712
        %v3058 = vadd.f32 %v3057, %v2728
        %v3059 = vadd.f32 %v3058, %v2744
        %v3060 = vadd.f32 %v3059, %v2760
        %v3061 = vrot.slane %v3060, 4
        %v3062 = vadd.f32 %v3060, %v3061
        %v3063 = vrot.slane %v3062, 2
        %v3064 = vadd.f32 %v3062, %v3063
        %v3065 = vrot.slane %v3064, 1
        %v3066 = vadd.f32 %v3064, %v3065
        %v3067 = vadd.f32 %v2265, %v2281
        %v3068 = vadd.f32 %v3067, %v2297
        %v3069 = vadd.f32 %v3068, %v2313
        %v3070 = vadd.f32 %v3069, %v2329
        %v3071 = vadd.f32 %v3070, %v2345
        %v3072 = vadd.f32 %v3071, %v2361
        %v3073 = vadd.f32 %v3072, %v2377
        %v3074 = vadd.f32 %v3073, %v2393
        %v3075 = vadd.f32 %v3074, %v2409
        %v3076 = vadd.f32 %v3075, %v2425
        %v3077 = vadd.f32 %v3076, %v2441
        %v3078 = vadd.f32 %v3077, %v2457
        %v3079 = vadd.f32 %v3078, %v2473
        %v3080 = vadd.f32 %v3079, %v2489
        %v3081 = vadd.f32 %v3080, %v2505
        %v3082 = vadd.f32 %v3081, %v2521
        %v3083 = vadd.f32 %v3082, %v2537
        %v3084 = vadd.f32 %v3083, %v2553
        %v3085 = vadd.f32 %v3084, %v2569
        %v3086 = vadd.f32 %v3085, %v2585
        %v3087 = vadd.f32 %v3086, %v2601
        %v3088 = vadd.f32 %v3087, %v2617
        %v3089 = vadd.f32 %v3088, %v2633
        %v3090 = vadd.f32 %v3089, %v2649
        %v3091 = vadd.f32 %v3090, %v2665
        %v3092 = vadd.f32 %v3091, %v2681
        %v3093 = vadd.f32 %v3092, %v2697
        %v3094 = vadd.f32 %v3093, %v2713
        %v3095 = vadd.f32 %v3094, %v2729
        %v3096 = vadd.f32 %v3095, %v2745
        %v3097 = vadd.f32 %v3096, %v2761
        %v3098 = vrot.slane %v3097, 4
        %v3099 = vadd.f32 %v3097, %v3098
        %v3100 = vrot.slane %v3099, 2
        %v3101 = vadd.f32 %v3099, %v3100
        %v3102 = vrot.slane %v3101, 1
        %v3103 = vadd.f32 %v3101, %v3102
        %v3104 = vadd.f32 %v2266, %v2282
        %v3105 = vadd.f32 %v3104, %v2298
        %v3106 = vadd.f32 %v3105, %v2314
        %v3107 = vadd.f32 %v3106, %v2330
        %v3108 = vadd.f32 %v3107, %v2346
        %v3109 = vadd.f32 %v3108, %v2362
        %v3110 = vadd.f32 %v3109, %v2378
        %v3111 = vadd.f32 %v3110, %v2394
        %v3112 = vadd.f32 %v3111, %v2410
        %v3113 = vadd.f32 %v3112, %v2426
        %v3114 = vadd.f32 %v3113, %v2442
        %v3115 = vadd.f32 %v3114, %v2458
        %v3116 = vadd.f32 %v3115, %v2474
        %v3117 = vadd.f32 %v3116, %v2490
        %v3118 = vadd.f32 %v3117, %v2506
        %v3119 = vadd.f32 %v3118, %v2522
        %v3120 = vadd.f32 %v3119, %v2538
        %v3121 = vadd.f32 %v3120, %v2554
        %v3122 = vadd.f32 %v3121, %v2570
        %v3123 = vadd.f32 %v3122, %v2586
        %v3124 = vadd.f32 %v3123, %v2602
        %v3125 = vadd.f32 %v3124, %v2618
        %v3126 = vadd.f32 %v3125, %v2634
        %v3127 = vadd.f32 %v3126, %v2650
        %v3128 = vadd.f32 %v3127, %v2666
        %v3129 = vadd.f32 %v3128, %v2682
        %v3130 = vadd.f32 %v3129, %v2698
        %v3131 = vadd.f32 %v3130, %v2714
        %v3132 = vadd.f32 %v3131, %v2730
        %v3133 = vadd.f32 %v3132, %v2746
        %v3134 = vadd.f32 %v3133, %v2762
        %v3135 = vrot.slane %v3134, 4
        %v3136 = vadd.f32 %v3134, %v3135
        %v3137 = vrot.slane %v3136, 2
        %v3138 = vadd.f32 %v3136, %v3137
        %v3139 = vrot.slane %v3138, 1
        %v3140 = vadd.f32 %v3138, %v3139
        %v3141 = vadd.f32 %v2267, %v2283
        %v3142 = vadd.f32 %v3141, %v2299
        %v3143 = vadd.f32 %v3142, %v2315
        %v3144 = vadd.f32 %v3143, %v2331
        %v3145 = vadd.f32 %v3144, %v2347
        %v3146 = vadd.f32 %v3145, %v2363
        %v3147 = vadd.f32 %v3146, %v2379
        %v3148 = vadd.f32 %v3147, %v2395
        %v3149 = vadd.f32 %v3148, %v2411
        %v3150 = vadd.f32 %v3149, %v2427
        %v3151 = vadd.f32 %v3150, %v2443
        %v3152 = vadd.f32 %v3151, %v2459
        %v3153 = vadd.f32 %v3152, %v2475
        %v3154 = vadd.f32 %v3153, %v2491
        %v3155 = vadd.f32 %v3154, %v2507
        %v3156 = vadd.f32 %v3155, %v2523
        %v3157 = vadd.f32 %v3156, %v2539
        %v3158 = vadd.f32 %v3157, %v2555
        %v3159 = vadd.f32 %v3158, %v2571
        %v3160 = vadd.f32 %v3159, %v2587
        %v3161 = vadd.f32 %v3160, %v2603
        %v3162 = vadd.f32 %v3161, %v2619
        %v3163 = vadd.f32 %v3162, %v2635
        %v3164 = vadd.f32 %v3163, %v2651
        %v3165 = vadd.f32 %v3164, %v2667
        %v3166 = vadd.f32 %v3165, %v2683
        %v3167 = vadd.f32 %v3166, %v2699
        %v3168 = vadd.f32 %v3167, %v2715
        %v3169 = vadd.f32 %v3168, %v2731
        %v3170 = vadd.f32 %v3169, %v2747
        %v3171 = vadd.f32 %v3170, %v2763
        %v3172 = vrot.slane %v3171, 4
        %v3173 = vadd.f32 %v3171, %v3172
        %v3174 = vrot.slane %v3173, 2
        %v3175 = vadd.f32 %v3173, %v3174
        %v3176 = vrot.slane %v3175, 1
        %v3177 = vadd.f32 %v3175, %v3176
        %v3178 = vadd.f32 %v2268, %v2284
        %v3179 = vadd.f32 %v3178, %v2300
        %v3180 = vadd.f32 %v3179, %v2316
        %v3181 = vadd.f32 %v3180, %v2332
        %v3182 = vadd.f32 %v3181, %v2348
        %v3183 = vadd.f32 %v3182, %v2364
        %v3184 = vadd.f32 %v3183, %v2380
        %v3185 = vadd.f32 %v3184, %v2396
        %v3186 = vadd.f32 %v3185, %v2412
        %v3187 = vadd.f32 %v3186, %v2428
        %v3188 = vadd.f32 %v3187, %v2444
        %v3189 = vadd.f32 %v3188, %v2460
        %v3190 = vadd.f32 %v3189, %v2476
        %v3191 = vadd.f32 %v3190, %v2492
        %v3192 = vadd.f32 %v3191, %v2508
        %v3193 = vadd.f32 %v3192, %v2524
        %v3194 = vadd.f32 %v3193, %v2540
        %v3195 = vadd.f32 %v3194, %v2556
        %v3196 = vadd.f32 %v3195, %v2572
        %v3197 = vadd.f32 %v3196, %v2588
        %v3198 = vadd.f32 %v3197, %v2604
        %v3199 = vadd.f32 %v3198, %v2620
        %v3200 = vadd.f32 %v3199, %v2636
        %v3201 = vadd.f32 %v3200, %v2652
        %v3202 = vadd.f32 %v3201, %v2668
        %v3203 = vadd.f32 %v3202, %v2684
        %v3204 = vadd.f32 %v3203, %v2700
        %v3205 = vadd.f32 %v3204, %v2716
        %v3206 = vadd.f32 %v3205, %v2732
        %v3207 = vadd.f32 %v3206, %v2748
        %v3208 = vadd.f32 %v3207, %v2764
        %v3209 = vrot.slane %v3208, 4
        %v3210 = vadd.f32 %v3208, %v3209
        %v3211 = vrot.slane %v3210, 2
        %v3212 = vadd.f32 %v3210, %v3211
        %v3213 = vrot.slane %v3212, 1
        %v3214 = vadd.f32 %v3212, %v3213
        %v3215 = vadd.f32 %v2269, %v2285
        %v3216 = vadd.f32 %v3215, %v2301
        %v3217 = vadd.f32 %v3216, %v2317
        %v3218 = vadd.f32 %v3217, %v2333
        %v3219 = vadd.f32 %v3218, %v2349
        %v3220 = vadd.f32 %v3219, %v2365
        %v3221 = vadd.f32 %v3220, %v2381
        %v3222 = vadd.f32 %v3221, %v2397
        %v3223 = vadd.f32 %v3222, %v2413
        %v3224 = vadd.f32 %v3223, %v2429
        %v3225 = vadd.f32 %v3224, %v2445
        %v3226 = vadd.f32 %v3225, %v2461
        %v3227 = vadd.f32 %v3226, %v2477
        %v3228 = vadd.f32 %v3227, %v2493
        %v3229 = vadd.f32 %v3228, %v2509
        %v3230 = vadd.f32 %v3229, %v2525
        %v3231 = vadd.f32 %v3230, %v2541
        %v3232 = vadd.f32 %v3231, %v2557
        %v3233 = vadd.f32 %v3232, %v2573
        %v3234 = vadd.f32 %v3233, %v2589
        %v3235 = vadd.f32 %v3234, %v2605
        %v3236 = vadd.f32 %v3235, %v2621
        %v3237 = vadd.f32 %v3236, %v2637
        %v3238 = vadd.f32 %v3237, %v2653
        %v3239 = vadd.f32 %v3238, %v2669
        %v3240 = vadd.f32 %v3239, %v2685
        %v3241 = vadd.f32 %v3240, %v2701
        %v3242 = vadd.f32 %v3241, %v2717
        %v3243 = vadd.f32 %v3242, %v2733
        %v3244 = vadd.f32 %v3243, %v2749
        %v3245 = vadd.f32 %v3244, %v2765
        %v3246 = vrot.slane %v3245, 4
        %v3247 = vadd.f32 %v3245, %v3246
        %v3248 = vrot.slane %v3247, 2
        %v3249 = vadd.f32 %v3247, %v3248
        %v3250 = vrot.slane %v3249, 1
        %v3251 = vadd.f32 %v3249, %v3250
        %v3252 = vadd.f32 %v2270, %v2286
        %v3253 = vadd.f32 %v3252, %v2302
        %v3254 = vadd.f32 %v3253, %v2318
        %v3255 = vadd.f32 %v3254, %v2334
        %v3256 = vadd.f32 %v3255, %v2350
        %v3257 = vadd.f32 %v3256, %v2366
        %v3258 = vadd.f32 %v3257, %v2382
        %v3259 = vadd.f32 %v3258, %v2398
        %v3260 = vadd.f32 %v3259, %v2414
        %v3261 = vadd.f32 %v3260, %v2430
        %v3262 = vadd.f32 %v3261, %v2446
        %v3263 = vadd.f32 %v3262, %v2462
        %v3264 = vadd.f32 %v3263, %v2478
        %v3265 = vadd.f32 %v3264, %v2494
        %v3266 = vadd.f32 %v3265, %v2510
        %v3267 = vadd.f32 %v3266, %v2526
        %v3268 = vadd.f32 %v3267, %v2542
        %v3269 = vadd.f32 %v3268, %v2558
        %v3270 = vadd.f32 %v3269, %v2574
        %v3271 = vadd.f32 %v3270, %v2590
        %v3272 = vadd.f32 %v3271, %v2606
        %v3273 = vadd.f32 %v3272, %v2622
        %v3274 = vadd.f32 %v3273, %v2638
        %v3275 = vadd.f32 %v3274, %v2654
        %v3276 = vadd.f32 %v3275, %v2670
        %v3277 = vadd.f32 %v3276, %v2686
        %v3278 = vadd.f32 %v3277, %v2702
        %v3279 = vadd.f32 %v3278, %v2718
        %v3280 = vadd.f32 %v3279, %v2734
        %v3281 = vadd.f32 %v3280, %v2750
        %v3282 = vadd.f32 %v3281, %v2766
        %v3283 = vrot.slane %v3282, 4
        %v3284 = vadd.f32 %v3282, %v3283
        %v3285 = vrot.slane %v3284, 2
        %v3286 = vadd.f32 %v3284, %v3285
        %v3287 = vrot.slane %v3286, 1
        %v3288 = vadd.f32 %v3286, %v3287
        %v3289 = vadd.f32 %v2271, %v2287
        %v3290 = vadd.f32 %v3289, %v2303
        %v3291 = vadd.f32 %v3290, %v2319
        %v3292 = vadd.f32 %v3291, %v2335
        %v3293 = vadd.f32 %v3292, %v2351
        %v3294 = vadd.f32 %v3293, %v2367
        %v3295 = vadd.f32 %v3294, %v2383
        %v3296 = vadd.f32 %v3295, %v2399
        %v3297 = vadd.f32 %v3296, %v2415
        %v3298 = vadd.f32 %v3297, %v2431
        %v3299 = vadd.f32 %v3298, %v2447
        %v3300 = vadd.f32 %v3299, %v2463
        %v3301 = vadd.f32 %v3300, %v2479
        %v3302 = vadd.f32 %v3301, %v2495
        %v3303 = vadd.f32 %v3302, %v2511
        %v3304 = vadd.f32 %v3303, %v2527
        %v3305 = vadd.f32 %v3304, %v2543
        %v3306 = vadd.f32 %v3305, %v2559
        %v3307 = vadd.f32 %v3306, %v2575
        %v3308 = vadd.f32 %v3307, %v2591
        %v3309 = vadd.f32 %v3308, %v2607
        %v3310 = vadd.f32 %v3309, %v2623
        %v3311 = vadd.f32 %v3310, %v2639
        %v3312 = vadd.f32 %v3311, %v2655
        %v3313 = vadd.f32 %v3312, %v2671
        %v3314 = vadd.f32 %v3313, %v2687
        %v3315 = vadd.f32 %v3314, %v2703
        %v3316 = vadd.f32 %v3315, %v2719
        %v3317 = vadd.f32 %v3316, %v2735
        %v3318 = vadd.f32 %v3317, %v2751
        %v3319 = vadd.f32 %v3318, %v2767
        %v3320 = vrot.slane %v3319, 4
        %v3321 = vadd.f32 %v3319, %v3320
        %v3322 = vrot.slane %v3321, 2
        %v3323 = vadd.f32 %v3321, %v3322
        %v3324 = vrot.slane %v3323, 1
        %v3325 = vadd.f32 %v3323, %v3324
        %v3326 = vadd.f32 %v2272, %v2288
        %v3327 = vadd.f32 %v3326, %v2304
        %v3328 = vadd.f32 %v3327, %v2320
        %v3329 = vadd.f32 %v3328, %v2336
        %v3330 = vadd.f32 %v3329, %v2352
        %v3331 = vadd.f32 %v3330, %v2368
        %v3332 = vadd.f32 %v3331, %v2384
        %v3333 = vadd.f32 %v3332, %v2400
        %v3334 = vadd.f32 %v3333, %v2416
        %v3335 = vadd.f32 %v3334, %v2432
        %v3336 = vadd.f32 %v3335, %v2448
        %v3337 = vadd.f32 %v3336, %v2464
        %v3338 = vadd.f32 %v3337, %v2480
        %v3339 = vadd.f32 %v3338, %v2496
        %v3340 = vadd.f32 %v3339, %v2512
        %v3341 = vadd.f32 %v3340, %v2528
        %v3342 = vadd.f32 %v3341, %v2544
        %v3343 = vadd.f32 %v3342, %v2560
        %v3344 = vadd.f32 %v3343, %v2576
        %v3345 = vadd.f32 %v3344, %v2592
        %v3346 = vadd.f32 %v3345, %v2608
        %v3347 = vadd.f32 %v3346, %v2624
        %v3348 = vadd.f32 %v3347, %v2640
        %v3349 = vadd.f32 %v3348, %v2656
        %v3350 = vadd.f32 %v3349, %v2672
        %v3351 = vadd.f32 %v3350, %v2688
        %v3352 = vadd.f32 %v3351, %v2704
        %v3353 = vadd.f32 %v3352, %v2720
        %v3354 = vadd.f32 %v3353, %v2736
        %v3355 = vadd.f32 %v3354, %v2752
        %v3356 = vadd.f32 %v3355, %v2768
        %v3357 = vrot.slane %v3356, 4
        %v3358 = vadd.f32 %v3356, %v3357
        %v3359 = vrot.slane %v3358, 2
        %v3360 = vadd.f32 %v3358, %v3359
        %v3361 = vrot.slane %v3360, 1
        %v3362 = vadd.f32 %v3360, %v3361
        %v3379 = vcombine.low %v2807, %v2844
        %v3380 = vcombine.low %v2881, %v2918
        %v3381 = vcombine.low %v2955, %v2992
        %v3382 = vcombine.low %v3029, %v3066
        %v3384 = vunpack.c.l.s4 1966171168
        %v3385 = vunpack.c.0.s8 %v3384
        %v3386 = vlaneseq
        %v3387 = vshrl.u32 %v3386, 7
        %v3388 = vsub.s32 %v3385, %v3387
        %v3389 = vrot.slane %v3379, %v3388
        %v3391 = vunpack.c.l.s4 1966171168
        %v3392 = vunpack.c.0.s8 %v3391
        %v3393 = vlaneseq
        %v3394 = vshrl.u32 %v3393, 7
        %v3395 = vsub.s32 %v3392, %v3394
        %v3396 = vrot.slane %v3380, %v3395
        %v3398 = vunpack.c.l.s4 1966171168
        %v3399 = vunpack.c.0.s8 %v3398
        %v3400 = vlaneseq
        %v3401 = vshrl.u32 %v3400, 7
        %v3402 = vsub.s32 %v3399, %v3401
        %v3403 = vrot.slane %v3381, %v3402
        %v3405 = vunpack.c.l.s4 1966171168
        %v3406 = vunpack.c.0.s8 %v3405
        %v3407 = vlaneseq
        %v3408 = vshrl.u32 %v3407, 7
        %v3409 = vsub.s32 %v3406, %v3408
        %v3410 = vrot.slane %v3382, %v3409
        %v3411 = vcombine.low %v3389, %v3396
        %v3412 = vcombine.low %v3403, %v3410
        %v3414 = vunpack.c.l.s4 1966171168
        %v3415 = vunpack.c.0.s8 %v3414
        %v3416 = vlaneseq
        %v3417 = vshrl.u32 %v3416, 7
        %v3418 = vsub.s32 %v3415, %v3417
        %v3419 = vrot.slane %v3411, %v3418
        %v3421 = vunpack.c.l.s4 1966171168
        %v3422 = vunpack.c.0.s8 %v3421
        %v3423 = vlaneseq
        %v3424 = vshrl.u32 %v3423, 7
        %v3425 = vsub.s32 %v3422, %v3424
        %v3426 = vrot.slane %v3412, %v3425
        %v3427 = vcombine.low %v3419, %v3426
        %v3428 = vcombine.low %v3103, %v3140
        %v3429 = vcombine.low %v3177, %v3214
        %v3430 = vcombine.low %v3251, %v3288
        %v3431 = vcombine.low %v3325, %v3362
        %v3433 = vunpack.c.l.s4 1966171168
        %v3434 = vunpack.c.0.s8 %v3433
        %v3435 = vlaneseq
        %v3436 = vshrl.u32 %v3435, 7
        %v3437 = vsub.s32 %v3434, %v3436
        %v3438 = vrot.slane %v3428, %v3437
        %v3440 = vunpack.c.l.s4 1966171168
        %v3441 = vunpack.c.0.s8 %v3440
        %v3442 = vlaneseq
        %v3443 = vshrl.u32 %v3442, 7
        %v3444 = vsub.s32 %v3441, %v3443
        %v3445 = vrot.slane %v3429, %v3444
        %v3447 = vunpack.c.l.s4 1966171168
        %v3448 = vunpack.c.0.s8 %v3447
        %v3449 = vlaneseq
        %v3450 = vshrl.u32 %v3449, 7
        %v3451 = vsub.s32 %v3448, %v3450
        %v3452 = vrot.slane %v3430, %v3451
        %v3454 = vunpack.c.l.s4 1966171168
        %v3455 = vunpack.c.0.s8 %v3454
        %v3456 = vlaneseq
        %v3457 = vshrl.u32 %v3456, 7
        %v3458 = vsub.s32 %v3455, %v3457
        %v3459 = vrot.slane %v3431, %v3458
        %v3460 = vcombine.low %v3438, %v3445
        %v3461 = vcombine.low %v3452, %v3459
        %v3463 = vunpack.c.l.s4 1966171168
        %v3464 = vunpack.c.0.s8 %v3463
        %v3465 = vlaneseq
        %v3466 = vshrl.u32 %v3465, 7
        %v3467 = vsub.s32 %v3464, %v3466
        %v3468 = vrot.slane %v3460, %v3467
        %v3470 = vunpack.c.l.s4 1966171168
        %v3471 = vunpack.c.0.s8 %v3470
        %v3472 = vlaneseq
        %v3473 = vshrl.u32 %v3472, 7
        %v3474 = vsub.s32 %v3471, %v3473
        %v3475 = vrot.slane %v3461, %v3474
        %v3476 = vcombine.low %v3468, %v3475
        %v3479 = vadd.f32 %v2769, %v3427
        %v3480 = vadd.f32 %v2770, %v3476
        %3481 = vst [vmem:[#allocation2] sm:$0xff] %v3479
        %3482 = vst [vmem:[#allocation2 + $0x8] sm:$0xff] %v3480
        // Predicated region
        $region49: #{tpu_custom_call.1} parent=31 // pred_check
          %p3483 = pneg %p234
        $region50: #{tpu_custom_call.1} parent=31 // pred_check_branch
          %3485 = sbr.rel (%p3483) target = $region52
        $region51: #{tpu_custom_call.1} parent=31 // pred_region
          %v3486 = vld [vmem:[#allocation2] sm:$0xff]
          %v3487 = vld [vmem:[#allocation2 + $0x8] sm:$0xff]
          %v3488 = vmul.f32 %v3486, 0.00390625
          %v3489 = vmul.f32 %v3487, 0.00390625
          %3490 = vst [vmem:[%s231] sm:$0xff] %v3488
          %3491 = vst [vmem:[%s231 + $0x8] sm:$0xff] %v3489
        $region52: #{tpu_custom_call.1} parent=31 // pred_fallthru
          _
        %s3492 = sand.u32 %s111, 1
        %s3493 = scalar_lea.sflag [#allocation5], %s3492
        %s3494 = sand.u32 %s111, 1
        %s3495 = smul.addr %s3494, 16
        %s3496 = scalar_lea.vmem [#allocation9], %s3495
        // Predicated region
        $region53: #{tpu_custom_call.1} parent=31 // pred_check
          %p3497 = pneg %p121
        $region54: #{tpu_custom_call.1} parent=31 // pred_check_branch
          %3499 = sbr.rel (%p3497) target = $region56
        $region55: #{tpu_custom_call.1} parent=31 // pred_region
          %s3501 = ssub.s32 256, 256
          %3502 = vsyncadd %s3493, %s3501
          %s3503 = smul.addr %s25, 16
          %s3504 = smul.addr %s3503, 16
          %s3505 = scalar_lea.hbm %s3, %s3504
          %s3507 = sshll.u32 %s3496, 4
          %s3508 = int_to_ptr.vmem [resolvable:$true] %s3507
          %3510 = dma.vmem_to_hbm [thread:$0]  %s3508, 256, %s3505, %s3493
        $region56: #{tpu_custom_call.1} parent=31 // pred_fallthru
          _
      $region32: #{tpu_custom_call.1} parent=5 // pred_fallthru
        _
      %p3511 = scmp.le.s32.totalorder 2, %s16
      // Predicated region
      $region57: #{tpu_custom_call.1} parent=5 // pred_check
        %p3512 = pneg %p3511
      $region58: #{tpu_custom_call.1} parent=5 // pred_check_branch
        %3514 = sbr.rel (%p3512) target = $region60
      $region59: #{tpu_custom_call.1} parent=5 // pred_region
        %s3515 = ssub.s32 %s16, 2
        // Predicated region
        $region61: #{tpu_custom_call.1} parent=59 // pred_check
          %p3516 = pneg %p127
        $region62: #{tpu_custom_call.1} parent=59 // pred_check_branch
          %3518 = sbr.rel (%p3516) target = $region64
        $region63: #{tpu_custom_call.1} parent=59 // pred_region
          %s3519 = sand.u32 %s112, 1
          %s3520 = scalar_lea.sflag [#allocation5], %s3519
          %s3521 = sand.u32 %s112, 1
          %s3522 = smul.addr %s3521, 16
          %s3523 = scalar_lea.vmem [#allocation9], %s3522
          %3524 = dma.done %s3520, 256
        $region64: #{tpu_custom_call.1} parent=59 // pred_fallthru
          _
      $region60: #{tpu_custom_call.1} parent=5 // pred_fallthru
        _
    $region6: #{tpu_custom_call.1} parent=1 // loop_footer
      %s20 = sadd.s32 1, %s16
    $region7: #{tpu_custom_call.1} parent=1 // loop_footer_branch
      %15 = sbr.rel target = $region3
    $region8: #{tpu_custom_call.1} parent=1 // loop_exit
      _
    %3525 = vsyncpa [#allocation4], 1
    %s3526 = scalar_lea.sflag [#allocation4], 1
    %3527 = vsyncpa %s3526, 1
    %3528 = vsyncpa [#allocation7], 1
    %3529 = vsyncpa [#allocation5], 1
    %s3530 = scalar_lea.sflag [#allocation5], 1
    %3531 = vsyncpa %s3530, 1

</llo_original>
